<compile_context>
chip_gen: v6e
topology: v6e:2x2x1
jax: 0.10.0
libtpu: 0.0.40
codegen_flags: <defaults>
</compile_context>

<pallas_src>
import numpy as np
import jax
import jax.numpy as jnp
from jax import lax
from jax.experimental import pallas as pl
from jax.experimental.pallas import tpu as pltpu


DH = 128   # padded hidden width (ch = 96 -> 128); exact (zero padding)


def _round_up(n, m):
    return ((n + m - 1) // m) * m


def _invariant_poly_constants():
    """Constant matrices so flatten(gs^T Q gs) = ((gs @ L) * (gs @ R)) @ S."""
    q = np.array([1.0, -1.0, -1.0, -1.0], np.float32)
    L = np.zeros((16, 64), np.float32)
    R = np.zeros((16, 64), np.float32)
    S = np.zeros((64, 16), np.float32)
    for k in range(4):
        for i in range(4):
            for j in range(4):
                c = 4 * i + j
                col = 16 * k + c
                L[4 * k + i, col] = 1.0
                R[4 * k + j, col] = 1.0
                S[col, c] = q[k]
    # InvariantPoly(eye(4)) = flatten(Q)
    valid = np.diag(q).reshape(1, 16).astype(np.float32)
    return L, R, S, valid


def _choose_tile(B, block_rows):
    """Pick the batch tile: big, MXU-M-aligned, and >=2 tiles when B allows (v7x)."""
    tb = min(max(block_rows, 8), _round_up(B, 8))
    if tb >= 256:
        tb = (tb // 256) * 256            # MXU M granularity on v6e/v7x
    else:
        tb = _round_up(tb, 8)
    if (B + tb - 1) // tb < 2 and B > 512:
        tb = max(256, _round_up((B + 1) // 2, 256))   # keep both v7x TCs fed
    return tb


def _make_kernel(tile_rows):
    def kernel(nb_ref,                                       # SMEM scalar prefetch: true batch size
               x_ref, z_ref, w1x_ref, w1z_ref, b1_ref,
               w2_ref, b2_ref, wcat_ref, bcat_ref, s_ref, valid_ref,
               gs_ref, part_ref):
        i = pl.program_id(0)

        # ---- layer 1: split-K over (x, z); bf16 MXU, f32 accumulation ----
        h = (jnp.dot(x_ref[...], w1x_ref[...], preferred_element_type=jnp.float32)
             + jnp.dot(z_ref[...], w1z_ref[...], preferred_element_type=jnp.float32)
             + b1_ref[...])
        h = jnp.maximum(h, 0.0)

        # ---- layer 2 ----
        h = jnp.dot(h.astype(jnp.bfloat16), w2_ref[...],
                    preferred_element_type=jnp.float32) + b2_ref[...]
        h = jnp.maximum(h, 0.0)

        # ---- fused layer 3: one (DH,384) weight -> [gs | left | right] segments ----
        out = jnp.dot(h.astype(jnp.bfloat16), wcat_ref[...],
                      preferred_element_type=jnp.float32) + bcat_ref[...]
        gs_ref[...] = out[:, 0:16].astype(gs_ref.dtype)

        left = out[:, DH:2 * DH]          # cols >= 64 are zero (exact padding)
        right = out[:, 2 * DH:3 * DH]
        # S is zero-padded to (128,16); padded rows multiply the zero lanes -> exact.
        score = jnp.dot(left * right, s_ref[...],
                        preferred_element_type=jnp.float32)        # (TB, 16)

        # ---- masked per-tile, per-column L1 partial sums ----
        diff = jnp.abs(score - valid_ref[...])                     # (TB, 16)
        rows = i * tile_rows + lax.broadcasted_iota(jnp.int32, (tile_rows, 1), 0)
        diff = jnp.where(rows < nb_ref[0], diff, 0.0)
        colsum = jnp.sum(diff, axis=0, keepdims=True)               # (1, 16)
        part_ref[...] = jnp.broadcast_to(colsum, (8, 16)).astype(part_ref.dtype)
    return kernel


def init_params(key, dz=1, ch=96):
    """Deterministic PyTorch-Linear-style init for the synthetic generator."""
    d_in, d_out = dz + 16, 16
    dims = [(d_in, ch), (ch, ch), (ch, d_out)]
    params = []
    for idx, (fi, fo) in enumerate(dims):
        kw, kb, key = jax.random.split(jax.random.fold_in(key, idx), 3)
        bound = 1.0 / np.sqrt(fi)
        W = jax.random.uniform(kw, (fi, fo), jnp.float32, -bound, bound)
        b = jax.random.uniform(kb, (1, fo), jnp.float32, -bound, bound)
        params += [W, b]
    return tuple(params)


def _zero_pad(a, shape, dtype=jnp.float32):
    out = jnp.zeros(shape, dtype)
    return out.at[:a.shape[0], :a.shape[1]].set(a.astype(dtype))


def lorentz_interface_forward(x, params, noise_key, dz=1, noise_scale=0.1,
                              block_rows=1024):
    B = x.shape[0]
    w1, b1, w2, b2, w3, b3 = params
    ch = w1.shape[1]
    assert ch <= DH and w1.shape[0] == dz + 16

    # ---- tiling ----
    TB = _choose_tile(B, block_rows)
    B_pad = _round_up(B, TB)
    G = B_pad // TB
    DZP = _round_up(max(dz, 1), 8)

    # ---- narrow bf16 input streams (batch padded with zeros, masked in-kernel) ----
    x_p = jnp.zeros((B_pad, 16), jnp.bfloat16).at[:B].set(x.astype(jnp.bfloat16))
    Z = noise_scale * jax.random.uniform(noise_key, (B, dz), jnp.float32, -1.0, 1.0)
    z_p = jnp.zeros((B_pad, DZP), jnp.bfloat16).at[:B, :dz].set(Z.astype(jnp.bfloat16))
    nb = jnp.array([B], jnp.int32)

    # ---- VMEM-resident weights (bf16 matmul operands, f32 biases) ----
    w1z = _zero_pad(w1[:dz], (DZP, DH)).astype(jnp.bfloat16)
    w1x = _zero_pad(w1[dz:], (16, DH)).astype(jnp.bfloat16)
    b1p = _zero_pad(b1, (1, DH))
    w2p = _zero_pad(w2, (DH, DH)).astype(jnp.bfloat16)
    b2p = _zero_pad(b2, (1, DH))

    L, R, S, valid = _invariant_poly_constants()
    w3p = _zero_pad(w3, (DH, 16))                                   # f32 (128,16)
    b3f = b3.astype(jnp.float32)                                    # (1,16)
    # fused [gs | left | right] weight: each logical output in its own 128-lane segment
    wcat = jnp.zeros((DH, 3 * DH), jnp.float32)
    wcat = wcat.at[:, 0:16].set(w3p)
    wcat = wcat.at[:, DH:DH + 64].set(w3p @ jnp.asarray(L))
    wcat = wcat.at[:, 2 * DH:2 * DH + 64].set(w3p @ jnp.asarray(R))
    wcat_b = wcat.astype(jnp.bfloat16)
    bcat = jnp.zeros((1, 3 * DH), jnp.float32)
    bcat = bcat.at[:, 0:16].set(b3f)
    bcat = bcat.at[:, DH:DH + 64].set(b3f @ jnp.asarray(L))
    bcat = bcat.at[:, 2 * DH:2 * DH + 64].set(b3f @ jnp.asarray(R))
    s128 = jnp.zeros((DH, 16), jnp.float32).at[:64].set(jnp.asarray(S))
    valid_j = jnp.asarray(valid)                                    # (1,16)

    resident = [w1x, w1z, b1p, w2p, b2p, wcat_b, bcat, s128, valid_j]

    grid_spec = pltpu.PrefetchScalarGridSpec(
        num_scalar_prefetch=1,
        grid=(G,),
        in_specs=[pl.BlockSpec((TB, 16), lambda i, nb: (i, 0)),
                  pl.BlockSpec((TB, DZP), lambda i, nb: (i, 0))]
                 + [pl.BlockSpec(a.shape, lambda i, nb: (0, 0)) for a in resident],
        out_specs=(pl.BlockSpec((TB, 16), lambda i, nb: (i, 0)),
                   pl.BlockSpec((8, 16), lambda i, nb: (i, 0))),
    )

    out_shape = (jax.ShapeDtypeStruct((B_pad, 16), jnp.float32),
                 jax.ShapeDtypeStruct((G * 8, 16), jnp.float32))

    gs_flat, part = pl.pallas_call(
        _make_kernel(TB),
        out_shape=out_shape,
        grid_spec=grid_spec,
        compiler_params=pltpu.CompilerParams(
            dimension_semantics=("parallel",)),
    )(nb, x_p, z_p, *resident)

    gs = gs_flat[:B].reshape(B, 4, 4)
    # each (8,16) partial block holds the per-column tile sums replicated on 8 sublanes
    orbit_distance = jnp.sum(part) / (8.0 * B * 16.0)
    return gs, orbit_distance


def _reference(x, params, noise_key, dz=1, noise_scale=0.1):
    """Pure-JAX reference mirroring the kernel's bf16-MXU / f32-accumulate precision."""
    B = x.shape[0]
    bf = jnp.bfloat16
    Z = noise_scale * jax.random.uniform(noise_key, (B, dz), jnp.float32, -1.0, 1.0)
    w1, b1, w2, b2, w3, b3 = params
    h = (jnp.dot(Z.astype(bf), w1[:dz].astype(bf), preferred_element_type=jnp.float32)
         + jnp.dot(x.astype(bf), w1[dz:].astype(bf), preferred_element_type=jnp.float32)
         + b1)
    h = jax.nn.relu(h)
    h = jax.nn.relu(jnp.dot(h.astype(bf), w2.astype(bf),
                            preferred_element_type=jnp.float32) + b2)
    gs = jnp.dot(h.astype(bf), w3.astype(bf),
                 preferred_element_type=jnp.float32) + b3
    gs = gs.reshape(B, 4, 4)
    Q = -jnp.eye(4, dtype=jnp.float32)
    Q = Q.at[0, 0].set(1.0)
    C = jnp.einsum('bki,kl,blj->bij', gs, Q, gs).reshape(B, 16)
    valid = Q.reshape(1, 16)
    return gs, jnp.mean(jnp.abs(C - valid))


if __name__ == "__main__":
    key = jax.random.PRNGKey(0)
    kx, kz, kp = jax.random.split(key, 3)

    # B deliberately not a multiple of the tile so padding/masking + the multi-tile
    # (G=2, both-TensorCore) path is exercised; feature shapes match the module.
    B, dz, ch = 1000, 1, 96
    x = jax.random.normal(kx, (B, 16), jnp.float32)       # flattened 4x4 per event
    params = init_params(kp, dz=dz, ch=ch)

    gs, orbit_distance = lorentz_interface_forward(
        x, params, kz, dz=dz, noise_scale=0.1)
    jax.block_until_ready((gs, orbit_distance))

    gs_ref, dist_ref = _reference(x, params, kz, dz=dz, noise_scale=0.1)
    assert gs.shape == (B, 4, 4)
    assert np.allclose(np.asarray(gs), np.asarray(gs_ref), rtol=1e-3, atol=1e-3)
    assert np.allclose(float(orbit_distance), float(dist_ref), rtol=1e-3, atol=1e-3)

    print("KERNEL_OK")
</pallas_src>

<mosaic_0001>
module attributes {stable_mosaic.version = 11 : i64} {
  func.func @kernel(%arg0: i32, %arg1: memref<1xi32, #tpu.memory_space<smem>>, %arg2: memref<768x16xbf16, #tpu.memory_space<vmem>>, %arg3: memref<768x8xbf16, #tpu.memory_space<vmem>>, %arg4: memref<16x128xbf16, #tpu.memory_space<vmem>>, %arg5: memref<8x128xbf16, #tpu.memory_space<vmem>>, %arg6: memref<1x128xf32, #tpu.memory_space<vmem>>, %arg7: memref<128x128xbf16, #tpu.memory_space<vmem>>, %arg8: memref<1x128xf32, #tpu.memory_space<vmem>>, %arg9: memref<128x384xbf16, #tpu.memory_space<vmem>>, %arg10: memref<1x384xf32, #tpu.memory_space<vmem>>, %arg11: memref<128x16xf32, #tpu.memory_space<vmem>>, %arg12: memref<1x16xf32, #tpu.memory_space<vmem>>, %arg13: memref<768x16xf32, #tpu.memory_space<vmem>>, %arg14: memref<8x16xf32, #tpu.memory_space<vmem>>) attributes {dimension_semantics = [#tpu.dimension_semantics<parallel>], iteration_bounds = array<i64: 2>, scalar_prefetch = 1 : i64, scratch_operands = 0 : i64, tpu.core_type = #tpu.core_type<tc>, window_params = [{transform_indices = @transform_0, window_bounds = array<i64: 768, 16>}, {transform_indices = @transform_1, window_bounds = array<i64: 768, 8>}, {pipeline_mode = #tpu.pipeline_mode<synchronous>, transform_indices = @transform_2, window_bounds = array<i64: 16, 128>}, {pipeline_mode = #tpu.pipeline_mode<synchronous>, transform_indices = @transform_3, window_bounds = array<i64: 8, 128>}, {pipeline_mode = #tpu.pipeline_mode<synchronous>, transform_indices = @transform_4, window_bounds = array<i64: 1, 128>}, {pipeline_mode = #tpu.pipeline_mode<synchronous>, transform_indices = @transform_5, window_bounds = array<i64: 128, 128>}, {pipeline_mode = #tpu.pipeline_mode<synchronous>, transform_indices = @transform_6, window_bounds = array<i64: 1, 128>}, {pipeline_mode = #tpu.pipeline_mode<synchronous>, transform_indices = @transform_7, window_bounds = array<i64: 128, 384>}, {pipeline_mode = #tpu.pipeline_mode<synchronous>, transform_indices = @transform_8, window_bounds = array<i64: 1, 384>}, {pipeline_mode = #tpu.pipeline_mode<synchronous>, transform_indices = @transform_9, window_bounds = array<i64: 128, 16>}, {pipeline_mode = #tpu.pipeline_mode<synchronous>, transform_indices = @transform_10, window_bounds = array<i64: 1, 16>}, {transform_indices = @transform_11, window_bounds = array<i64: 768, 16>}, {transform_indices = @transform_12, window_bounds = array<i64: 8, 16>}]} {
    %c0 = arith.constant 0 : index
    %c0_0 = arith.constant 0 : index
    %0 = vector.load %arg2[%c0, %c0_0] : memref<768x16xbf16, #tpu.memory_space<vmem>>, vector<768x16xbf16>
    %c0_1 = arith.constant 0 : index
    %c0_2 = arith.constant 0 : index
    %1 = vector.load %arg4[%c0_1, %c0_2] : memref<16x128xbf16, #tpu.memory_space<vmem>>, vector<16x128xbf16>
    %cst = arith.constant dense<0.000000e+00> : vector<768x128xf32>
    %2 = tpu.matmul %0, %1, %cst {dimension_numbers = #tpu.dot_dimension_numbers<[1], [0], [0], [1], [0, 0, 1, 1], [], []>} : vector<768x16xbf16>, vector<16x128xbf16>, vector<768x128xf32> -> vector<768x128xf32>
    %c0_3 = arith.constant 0 : index
    %c0_4 = arith.constant 0 : index
    %3 = vector.load %arg3[%c0_3, %c0_4] : memref<768x8xbf16, #tpu.memory_space<vmem>>, vector<768x8xbf16>
    %c0_5 = arith.constant 0 : index
    %c0_6 = arith.constant 0 : index
    %4 = vector.load %arg5[%c0_5, %c0_6] : memref<8x128xbf16, #tpu.memory_space<vmem>>, vector<8x128xbf16>
    %cst_7 = arith.constant dense<0.000000e+00> : vector<768x128xf32>
    %5 = tpu.matmul %3, %4, %cst_7 {dimension_numbers = #tpu.dot_dimension_numbers<[1], [0], [0], [1], [0, 0, 1, 1], [], []>} : vector<768x8xbf16>, vector<8x128xbf16>, vector<768x128xf32> -> vector<768x128xf32>
    %6 = arith.addf %2, %5 : vector<768x128xf32>
    %c0_8 = arith.constant 0 : index
    %c0_9 = arith.constant 0 : index
    %7 = vector.load %arg6[%c0_8, %c0_9] : memref<1x128xf32, #tpu.memory_space<vmem>>, vector<1x128xf32>
    %8 = vector.broadcast %7 : vector<1x128xf32> to vector<768x128xf32>
    %9 = arith.addf %6, %8 : vector<768x128xf32>
    %cst_10 = arith.constant 0.000000e+00 : f32
    %10 = vector.broadcast %cst_10 : f32 to vector<768x128xf32>
    %11 = arith.maximumf %9, %10 : vector<768x128xf32>
    %12 = arith.truncf %11 : vector<768x128xf32> to vector<768x128xbf16>
    %c0_11 = arith.constant 0 : index
    %c0_12 = arith.constant 0 : index
    %13 = vector.load %arg7[%c0_11, %c0_12] : memref<128x128xbf16, #tpu.memory_space<vmem>>, vector<128x128xbf16>
    %cst_13 = arith.constant dense<0.000000e+00> : vector<768x128xf32>
    %14 = tpu.matmul %12, %13, %cst_13 {dimension_numbers = #tpu.dot_dimension_numbers<[1], [0], [0], [1], [0, 0, 1, 1], [], []>} : vector<768x128xbf16>, vector<128x128xbf16>, vector<768x128xf32> -> vector<768x128xf32>
    %c0_14 = arith.constant 0 : index
    %c0_15 = arith.constant 0 : index
    %15 = vector.load %arg8[%c0_14, %c0_15] : memref<1x128xf32, #tpu.memory_space<vmem>>, vector<1x128xf32>
    %16 = vector.broadcast %15 : vector<1x128xf32> to vector<768x128xf32>
    %17 = arith.addf %14, %16 : vector<768x128xf32>
    %cst_16 = arith.constant 0.000000e+00 : f32
    %18 = vector.broadcast %cst_16 : f32 to vector<768x128xf32>
    %19 = arith.maximumf %17, %18 : vector<768x128xf32>
    %20 = arith.truncf %19 : vector<768x128xf32> to vector<768x128xbf16>
    %c0_17 = arith.constant 0 : index
    %c0_18 = arith.constant 0 : index
    %21 = vector.load %arg9[%c0_17, %c0_18] : memref<128x384xbf16, #tpu.memory_space<vmem>>, vector<128x384xbf16>
    %cst_19 = arith.constant dense<0.000000e+00> : vector<768x384xf32>
    %22 = tpu.matmul %20, %21, %cst_19 {dimension_numbers = #tpu.dot_dimension_numbers<[1], [0], [0], [1], [0, 0, 1, 1], [], []>} : vector<768x128xbf16>, vector<128x384xbf16>, vector<768x384xf32> -> vector<768x384xf32>
    %c0_20 = arith.constant 0 : index
    %c0_21 = arith.constant 0 : index
    %23 = vector.load %arg10[%c0_20, %c0_21] : memref<1x384xf32, #tpu.memory_space<vmem>>, vector<1x384xf32>
    %24 = vector.broadcast %23 : vector<1x384xf32> to vector<768x384xf32>
    %25 = arith.addf %22, %24 : vector<768x384xf32>
    %26 = vector.extract_strided_slice %25 {offsets = [0, 0], sizes = [768, 16], strides = [1, 1]} : vector<768x384xf32> to vector<768x16xf32>
    %c0_22 = arith.constant 0 : index
    %c0_23 = arith.constant 0 : index
    %27 = vector.load %arg13[%c0_22, %c0_23] : memref<768x16xf32, #tpu.memory_space<vmem>>, vector<768x16xf32>
    tpu.vector_store %arg13[%c0_22, %c0_23], %26 {strides = array<i32>} : memref<768x16xf32, #tpu.memory_space<vmem>>, vector<768x16xf32>,
    %28 = vector.extract_strided_slice %25 {offsets = [0, 128], sizes = [768, 128], strides = [1, 1]} : vector<768x384xf32> to vector<768x128xf32>
    %29 = vector.extract_strided_slice %25 {offsets = [0, 256], sizes = [768, 128], strides = [1, 1]} : vector<768x384xf32> to vector<768x128xf32>
    %30 = arith.mulf %28, %29 : vector<768x128xf32>
    %c0_24 = arith.constant 0 : index
    %c0_25 = arith.constant 0 : index
    %31 = vector.load %arg11[%c0_24, %c0_25] : memref<128x16xf32, #tpu.memory_space<vmem>>, vector<128x16xf32>
    %cst_26 = arith.constant dense<0.000000e+00> : vector<768x16xf32>
    %32 = tpu.matmul %30, %31, %cst_26 {dimension_numbers = #tpu.dot_dimension_numbers<[1], [0], [0], [1], [0, 0, 1, 1], [], []>} : vector<768x128xf32>, vector<128x16xf32>, vector<768x16xf32> -> vector<768x16xf32>
    %c0_27 = arith.constant 0 : index
    %c0_28 = arith.constant 0 : index
    %33 = vector.load %arg12[%c0_27, %c0_28] : memref<1x16xf32, #tpu.memory_space<vmem>>, vector<1x16xf32>
    %34 = vector.broadcast %33 : vector<1x16xf32> to vector<768x16xf32>
    %35 = arith.subf %32, %34 : vector<768x16xf32>
    %36 = math.absf %35 : vector<768x16xf32>
    %c768_i32 = arith.constant 768 : i32
    %37 = arith.muli %arg0, %c768_i32 : i32
    %38 = tpu.iota {dimensions = array<i32: 0>} : vector<768x1xi32>
    %39 = vector.broadcast %37 : i32 to vector<768x1xi32>
    %40 = arith.addi %39, %38 : vector<768x1xi32>
    %c0_29 = arith.constant 0 : index
    %41 = memref.load %arg1[%c0_29] : memref<1xi32, #tpu.memory_space<smem>>
    %42 = vector.broadcast %41 : i32 to vector<768x1xi32>
    %43 = arith.cmpi slt, %40, %42 : vector<768x1xi32>
    %cst_30 = arith.constant 0.000000e+00 : f32
    %44 = vector.shape_cast %43 : vector<768x1xi1> to vector<768x1xi1>
    %45 = vector.broadcast %44 : vector<768x1xi1> to vector<768x16xi1>
    %46 = vector.broadcast %cst_30 : f32 to vector<768x16xf32>
    %47 = arith.select %45, %36, %46 : vector<768x16xi1>, vector<768x16xf32>
    %cst_31 = arith.constant dense<0.000000e+00> : vector<16xf32>
    %48 = vector.multi_reduction <add>, %47, %cst_31 [0] : vector<768x16xf32> to vector<16xf32>
    %49 = vector.shape_cast %48 : vector<16xf32> to vector<1x16xf32>
    %50 = vector.shape_cast %49 : vector<1x16xf32> to vector<1x16xf32>
    %51 = vector.broadcast %50 : vector<1x16xf32> to vector<8x16xf32>
    %c0_32 = arith.constant 0 : index
    %c0_33 = arith.constant 0 : index
    %52 = vector.load %arg14[%c0_32, %c0_33] : memref<8x16xf32, #tpu.memory_space<vmem>>, vector<8x16xf32>
    tpu.vector_store %arg14[%c0_32, %c0_33], %51 {strides = array<i32>} : memref<8x16xf32, #tpu.memory_space<vmem>>, vector<8x16xf32>,
    return
  }
  func.func @transform_0(%arg0: i32, %arg1: memref<1xi32, #tpu.memory_space<smem>>) -> (i32, i32) {
    %c0_i32 = arith.constant 0 : i32
    %c0_i32_0 = arith.constant 0 : i32
    return %arg0, %c0_i32 : i32, i32
  }
  func.func @transform_1(%arg0: i32, %arg1: memref<1xi32, #tpu.memory_space<smem>>) -> (i32, i32) {
    %c0_i32 = arith.constant 0 : i32
    %c0_i32_0 = arith.constant 0 : i32
    return %arg0, %c0_i32 : i32, i32
  }
  func.func @transform_2(%arg0: i32, %arg1: memref<1xi32, #tpu.memory_space<smem>>) -> (i32, i32) {
    %c0_i32 = arith.constant 0 : i32
    %c0_i32_0 = arith.constant 0 : i32
    %c0_i32_1 = arith.constant 0 : i32
    return %c0_i32, %c0_i32_0 : i32, i32
  }
  func.func @transform_3(%arg0: i32, %arg1: memref<1xi32, #tpu.memory_space<smem>>) -> (i32, i32) {
    %c0_i32 = arith.constant 0 : i32
    %c0_i32_0 = arith.constant 0 : i32
    %c0_i32_1 = arith.constant 0 : i32
    return %c0_i32, %c0_i32_0 : i32, i32
  }
  func.func @transform_4(%arg0: i32, %arg1: memref<1xi32, #tpu.memory_space<smem>>) -> (i32, i32) {
    %c0_i32 = arith.constant 0 : i32
    %c0_i32_0 = arith.constant 0 : i32
    %c0_i32_1 = arith.constant 0 : i32
    return %c0_i32, %c0_i32_0 : i32, i32
  }
  func.func @transform_5(%arg0: i32, %arg1: memref<1xi32, #tpu.memory_space<smem>>) -> (i32, i32) {
    %c0_i32 = arith.constant 0 : i32
    %c0_i32_0 = arith.constant 0 : i32
    %c0_i32_1 = arith.constant 0 : i32
    return %c0_i32, %c0_i32_0 : i32, i32
  }
  func.func @transform_6(%arg0: i32, %arg1: memref<1xi32, #tpu.memory_space<smem>>) -> (i32, i32) {
    %c0_i32 = arith.constant 0 : i32
    %c0_i32_0 = arith.constant 0 : i32
    %c0_i32_1 = arith.constant 0 : i32
    return %c0_i32, %c0_i32_0 : i32, i32
  }
  func.func @transform_7(%arg0: i32, %arg1: memref<1xi32, #tpu.memory_space<smem>>) -> (i32, i32) {
    %c0_i32 = arith.constant 0 : i32
    %c0_i32_0 = arith.constant 0 : i32
    %c0_i32_1 = arith.constant 0 : i32
    return %c0_i32, %c0_i32_0 : i32, i32
  }
  func.func @transform_8(%arg0: i32, %arg1: memref<1xi32, #tpu.memory_space<smem>>) -> (i32, i32) {
    %c0_i32 = arith.constant 0 : i32
    %c0_i32_0 = arith.constant 0 : i32
    %c0_i32_1 = arith.constant 0 : i32
    return %c0_i32, %c0_i32_0 : i32, i32
  }
  func.func @transform_9(%arg0: i32, %arg1: memref<1xi32, #tpu.memory_space<smem>>) -> (i32, i32) {
    %c0_i32 = arith.constant 0 : i32
    %c0_i32_0 = arith.constant 0 : i32
    %c0_i32_1 = arith.constant 0 : i32
    return %c0_i32, %c0_i32_0 : i32, i32
  }
  func.func @transform_10(%arg0: i32, %arg1: memref<1xi32, #tpu.memory_space<smem>>) -> (i32, i32) {
    %c0_i32 = arith.constant 0 : i32
    %c0_i32_0 = arith.constant 0 : i32
    %c0_i32_1 = arith.constant 0 : i32
    return %c0_i32, %c0_i32_0 : i32, i32
  }
  func.func @transform_11(%arg0: i32, %arg1: memref<1xi32, #tpu.memory_space<smem>>) -> (i32, i32) {
    %c0_i32 = arith.constant 0 : i32
    %c0_i32_0 = arith.constant 0 : i32
    return %arg0, %c0_i32 : i32, i32
  }
  func.func @transform_12(%arg0: i32, %arg1: memref<1xi32, #tpu.memory_space<smem>>) -> (i32, i32) {
    %c0_i32 = arith.constant 0 : i32
    %c0_i32_0 = arith.constant 0 : i32
    return %arg0, %c0_i32 : i32, i32
  }
}

</mosaic_0001>

<llo_original>
// kernel: tpu_custom_call.1
$region0: #{tpu_custom_call.1}
  #allocation0 [shape = 'u32[]', space=smem, size = 0x4, offset = 0x4, fixed_abs, tag = 'smem constant byte address 0x4 - core index']
  #allocation1 [shape = 'u32[144,128]{1,0:T(1,128)}', space=vmem, size = 0x12000, scoped, tag = 'internal scratch']
  #allocation2 [shape = 's32[1]{0}', space=sflag, size = 0x4, scoped, tag = 'scoped memory for tpu_custom_call.1']
  #allocation3 [shape = 's32[1]{0:T(128)S(6)}', space=smem, size = 0x200, scoped, tag = 'prefetched SMEM operand 0']
  %s0 = inlined_call_operand.<no memory space> [shape: s32[1], index: 0, kind: input, shape index: {}]
  %s1 = inlined_call_operand.vmem [shape: bf16[1536,16], index: 1, kind: input, shape index: {}]
  %s2 = inlined_call_operand.vmem [shape: bf16[1536,8], index: 2, kind: input, shape index: {}]
  %s3 = inlined_call_operand.vmem [shape: bf16[16,128], index: 3, kind: input, shape index: {}]
  %s4 = inlined_call_operand.vmem [shape: bf16[8,128], index: 4, kind: input, shape index: {}]
  %s5 = inlined_call_operand.vmem [shape: f32[1,128], index: 5, kind: input, shape index: {}]
  %s6 = inlined_call_operand.vmem [shape: bf16[128,128], index: 6, kind: input, shape index: {}]
  %s7 = inlined_call_operand.vmem [shape: f32[1,128], index: 7, kind: input, shape index: {}]
  %s8 = inlined_call_operand.vmem [shape: bf16[128,384], index: 8, kind: input, shape index: {}]
  %s9 = inlined_call_operand.vmem [shape: f32[1,384], index: 9, kind: input, shape index: {}]
  %s10 = inlined_call_operand.vmem [shape: f32[128,16], index: 10, kind: input, shape index: {}]
  %s11 = inlined_call_operand.vmem [shape: f32[1,16], index: 11, kind: input, shape index: {}]
  %s12 = inlined_call_operand.vmem [shape: f32[1536,16], index: 12, kind: output, shape index: {0}]
  %s13 = inlined_call_operand.hbm [shape: f32[16,16], index: 13, kind: output, shape index: {1}]
  %14 = xla_tuple %s12, %s13
  %s15 = sld [smem:[#allocation0]]
  $region85: #{tpu_custom_call.1} parent=0
    _
  %s17 = ssub.s32 1, %s15
  %s18 = scalar_select 0, %s17, %s15
  %19 = sst [smem:[#allocation3]] %s0
  $region1: #{tpu_custom_call.1} parent=0
    #allocation4 [shape = 'u8[8192]{0}', space=vmem, size = 0x2000, scoped, tag = 'output window, operand 1']
    #allocation5 [shape = 's32[2]{0}', space=sflag, size = 0x8, scoped, tag = 'scoped memory for tpu_custom_call.1']
    %20 = vsyncpa [#allocation5], 0
    %s21 = scalar_lea.sflag [#allocation5], 1
    %22 = vsyncpa %s21, 0
    loop: start=0, step=1, limit=4
    $region2: #{tpu_custom_call.1} parent=1 // loop_pre_header
      _
    $region3: #{tpu_custom_call.1} parent=1 // loop_header
      %s24 = sphi 0, %s28
      %p25 = scmp.ge.s32.totalorder %s24, 4
      %s34 = sphi 0, %s36
      %s37 = sphi 0, %s34
      %s38 = sphi 0, %s37
      %s54 = sphi 0, %s38
      %s60 = sphi 0, %s62
      %s63 = sphi 0, %s60
      %s64 = sphi 0, %s63
      %s80 = sphi 0, %s64
      %s84 = sphi 0, %s84
      %s86 = sphi 0, %s84
      %s87 = sphi 0, %s86
      %s101 = sphi 0, %s87
      %s105 = sphi 0, %s105
      %s107 = sphi 0, %s105
      %s108 = sphi 0, %s107
      %s122 = sphi 0, %s108
      %s126 = sphi 0, %s126
      %s128 = sphi 0, %s126
      %s129 = sphi 0, %s128
      %s143 = sphi 0, %s129
      %s147 = sphi 0, %s147
      %s149 = sphi 0, %s147
      %s150 = sphi 0, %s149
      %s164 = sphi 0, %s150
      %s168 = sphi 0, %s168
      %s170 = sphi 0, %s168
      %s171 = sphi 0, %s170
      %s185 = sphi 0, %s171
      %s189 = sphi 0, %s189
      %s191 = sphi 0, %s189
      %s192 = sphi 0, %s191
      %s206 = sphi 0, %s192
      %s210 = sphi 0, %s210
      %s212 = sphi 0, %s210
      %s213 = sphi 0, %s212
      %s227 = sphi 0, %s213
      %s231 = sphi 0, %s231
      %s233 = sphi 0, %s231
      %s234 = sphi 0, %s233
      %s248 = sphi 0, %s234
      %s252 = sphi 0, %s252
      %s254 = sphi 0, %s252
      %s255 = sphi 0, %s254
      %s269 = sphi 0, %s255
      %s275 = sphi 0, %s277
      %s278 = sphi 0, %s275
      %s279 = sphi 0, %s278
      %s295 = sphi 0, %s279
      %s301 = sphi 0, %s303
      %s304 = sphi 0, %s301
      %s305 = sphi 0, %s304
      %s321 = sphi 0, %s305
    $region4: #{tpu_custom_call.1} parent=1 // loop_header_branch
      %27 = sbr.rel (%p25) target = $region8
    $region5: #{tpu_custom_call.1} parent=1 // loop_body
      %s29 = ssub.s32 %s24, 1
      %s30 = ssub.s32 %s24, 2
      %s31 = sadd.s32 %s24, 1
      %s32 = ssub.s32 %s24, %s31
      %p33 = scmp.eq.s32.totalorder %s32, 0
      %s35 = sadd.s32 %s34, 1
      %s36 = scalar_select %p33, %s34, %s35
      %p39 = pneg %p33
      %p40 = scmp.eq.s32.totalorder %s24, 1
      %p41 = por %p39, %p40
      %p42 = scmp.ne.s32.totalorder %s34, %s37
      %p43 = scmp.eq.s32.totalorder %s24, 0
      %p44 = por %p42, %p43
      %p45 = scmp.ne.s32.totalorder %s34, %s37
      %p46 = scmp.eq.s32.totalorder %s29, 1
      %p47 = por %p45, %p46
      %p48 = scmp.ne.s32.totalorder %s37, %s38
      %p49 = scmp.eq.s32.totalorder %s29, 0
      %p50 = por %p48, %p49
      %p51 = scmp.ne.s32.totalorder %s37, %s38
      %p52 = scmp.eq.s32.totalorder %s30, 1
      %p53 = por %p51, %p52
      %p55 = scmp.ne.s32.totalorder %s38, %s54
      %p56 = scmp.eq.s32.totalorder %s30, 0
      %p57 = por %p55, %p56
      %s58 = ssub.s32 %s24, %s31
      %p59 = scmp.eq.s32.totalorder %s58, 0
      %s61 = sadd.s32 %s60, 1
      %s62 = scalar_select %p59, %s60, %s61
      %p65 = pneg %p59
      %p66 = scmp.eq.s32.totalorder %s24, 1
      %p67 = por %p65, %p66
      %p68 = scmp.ne.s32.totalorder %s60, %s63
      %p69 = scmp.eq.s32.totalorder %s24, 0
      %p70 = por %p68, %p69
      %p71 = scmp.ne.s32.totalorder %s60, %s63
      %p72 = scmp.eq.s32.totalorder %s29, 1
      %p73 = por %p71, %p72
      %p74 = scmp.ne.s32.totalorder %s63, %s64
      %p75 = scmp.eq.s32.totalorder %s29, 0
      %p76 = por %p74, %p75
      %p77 = scmp.ne.s32.totalorder %s63, %s64
      %p78 = scmp.eq.s32.totalorder %s30, 1
      %p79 = por %p77, %p78
      %p81 = scmp.ne.s32.totalorder %s64, %s80
      %p82 = scmp.eq.s32.totalorder %s30, 0
      %p83 = por %p81, %p82
      %s85 = sadd.s32 %s84, 1
      %p88 = scmp.eq.s32.totalorder %s24, 1
      %p89 = scmp.ne.s32.totalorder %s84, %s86
      %p90 = scmp.eq.s32.totalorder %s24, 0
      %p91 = por %p89, %p90
      %p92 = scmp.ne.s32.totalorder %s84, %s86
      %p93 = scmp.eq.s32.totalorder %s29, 1
      %p94 = por %p92, %p93
      %p95 = scmp.ne.s32.totalorder %s86, %s87
      %p96 = scmp.eq.s32.totalorder %s29, 0
      %p97 = por %p95, %p96
      %p98 = scmp.ne.s32.totalorder %s86, %s87
      %p99 = scmp.eq.s32.totalorder %s30, 1
      %p100 = por %p98, %p99
      %p102 = scmp.ne.s32.totalorder %s87, %s101
      %p103 = scmp.eq.s32.totalorder %s30, 0
      %p104 = por %p102, %p103
      %s106 = sadd.s32 %s105, 1
      %p109 = scmp.eq.s32.totalorder %s24, 1
      %p110 = scmp.ne.s32.totalorder %s105, %s107
      %p111 = scmp.eq.s32.totalorder %s24, 0
      %p112 = por %p110, %p111
      %p113 = scmp.ne.s32.totalorder %s105, %s107
      %p114 = scmp.eq.s32.totalorder %s29, 1
      %p115 = por %p113, %p114
      %p116 = scmp.ne.s32.totalorder %s107, %s108
      %p117 = scmp.eq.s32.totalorder %s29, 0
      %p118 = por %p116, %p117
      %p119 = scmp.ne.s32.totalorder %s107, %s108
      %p120 = scmp.eq.s32.totalorder %s30, 1
      %p121 = por %p119, %p120
      %p123 = scmp.ne.s32.totalorder %s108, %s122
      %p124 = scmp.eq.s32.totalorder %s30, 0
      %p125 = por %p123, %p124
      %s127 = sadd.s32 %s126, 1
      %p130 = scmp.eq.s32.totalorder %s24, 1
      %p131 = scmp.ne.s32.totalorder %s126, %s128
      %p132 = scmp.eq.s32.totalorder %s24, 0
      %p133 = por %p131, %p132
      %p134 = scmp.ne.s32.totalorder %s126, %s128
      %p135 = scmp.eq.s32.totalorder %s29, 1
      %p136 = por %p134, %p135
      %p137 = scmp.ne.s32.totalorder %s128, %s129
      %p138 = scmp.eq.s32.totalorder %s29, 0
      %p139 = por %p137, %p138
      %p140 = scmp.ne.s32.totalorder %s128, %s129
      %p141 = scmp.eq.s32.totalorder %s30, 1
      %p142 = por %p140, %p141
      %p144 = scmp.ne.s32.totalorder %s129, %s143
      %p145 = scmp.eq.s32.totalorder %s30, 0
      %p146 = por %p144, %p145
      %s148 = sadd.s32 %s147, 1
      %p151 = scmp.eq.s32.totalorder %s24, 1
      %p152 = scmp.ne.s32.totalorder %s147, %s149
      %p153 = scmp.eq.s32.totalorder %s24, 0
      %p154 = por %p152, %p153
      %p155 = scmp.ne.s32.totalorder %s147, %s149
      %p156 = scmp.eq.s32.totalorder %s29, 1
      %p157 = por %p155, %p156
      %p158 = scmp.ne.s32.totalorder %s149, %s150
      %p159 = scmp.eq.s32.totalorder %s29, 0
      %p160 = por %p158, %p159
      %p161 = scmp.ne.s32.totalorder %s149, %s150
      %p162 = scmp.eq.s32.totalorder %s30, 1
      %p163 = por %p161, %p162
      %p165 = scmp.ne.s32.totalorder %s150, %s164
      %p166 = scmp.eq.s32.totalorder %s30, 0
      %p167 = por %p165, %p166
      %s169 = sadd.s32 %s168, 1
      %p172 = scmp.eq.s32.totalorder %s24, 1
      %p173 = scmp.ne.s32.totalorder %s168, %s170
      %p174 = scmp.eq.s32.totalorder %s24, 0
      %p175 = por %p173, %p174
      %p176 = scmp.ne.s32.totalorder %s168, %s170
      %p177 = scmp.eq.s32.totalorder %s29, 1
      %p178 = por %p176, %p177
      %p179 = scmp.ne.s32.totalorder %s170, %s171
      %p180 = scmp.eq.s32.totalorder %s29, 0
      %p181 = por %p179, %p180
      %p182 = scmp.ne.s32.totalorder %s170, %s171
      %p183 = scmp.eq.s32.totalorder %s30, 1
      %p184 = por %p182, %p183
      %p186 = scmp.ne.s32.totalorder %s171, %s185
      %p187 = scmp.eq.s32.totalorder %s30, 0
      %p188 = por %p186, %p187
      %s190 = sadd.s32 %s189, 1
      %p193 = scmp.eq.s32.totalorder %s24, 1
      %p194 = scmp.ne.s32.totalorder %s189, %s191
      %p195 = scmp.eq.s32.totalorder %s24, 0
      %p196 = por %p194, %p195
      %p197 = scmp.ne.s32.totalorder %s189, %s191
      %p198 = scmp.eq.s32.totalorder %s29, 1
      %p199 = por %p197, %p198
      %p200 = scmp.ne.s32.totalorder %s191, %s192
      %p201 = scmp.eq.s32.totalorder %s29, 0
      %p202 = por %p200, %p201
      %p203 = scmp.ne.s32.totalorder %s191, %s192
      %p204 = scmp.eq.s32.totalorder %s30, 1
      %p205 = por %p203, %p204
      %p207 = scmp.ne.s32.totalorder %s192, %s206
      %p208 = scmp.eq.s32.totalorder %s30, 0
      %p209 = por %p207, %p208
      %s211 = sadd.s32 %s210, 1
      %p214 = scmp.eq.s32.totalorder %s24, 1
      %p215 = scmp.ne.s32.totalorder %s210, %s212
      %p216 = scmp.eq.s32.totalorder %s24, 0
      %p217 = por %p215, %p216
      %p218 = scmp.ne.s32.totalorder %s210, %s212
      %p219 = scmp.eq.s32.totalorder %s29, 1
      %p220 = por %p218, %p219
      %p221 = scmp.ne.s32.totalorder %s212, %s213
      %p222 = scmp.eq.s32.totalorder %s29, 0
      %p223 = por %p221, %p222
      %p224 = scmp.ne.s32.totalorder %s212, %s213
      %p225 = scmp.eq.s32.totalorder %s30, 1
      %p226 = por %p224, %p225
      %p228 = scmp.ne.s32.totalorder %s213, %s227
      %p229 = scmp.eq.s32.totalorder %s30, 0
      %p230 = por %p228, %p229
      %s232 = sadd.s32 %s231, 1
      %p235 = scmp.eq.s32.totalorder %s24, 1
      %p236 = scmp.ne.s32.totalorder %s231, %s233
      %p237 = scmp.eq.s32.totalorder %s24, 0
      %p238 = por %p236, %p237
      %p239 = scmp.ne.s32.totalorder %s231, %s233
      %p240 = scmp.eq.s32.totalorder %s29, 1
      %p241 = por %p239, %p240
      %p242 = scmp.ne.s32.totalorder %s233, %s234
      %p243 = scmp.eq.s32.totalorder %s29, 0
      %p244 = por %p242, %p243
      %p245 = scmp.ne.s32.totalorder %s233, %s234
      %p246 = scmp.eq.s32.totalorder %s30, 1
      %p247 = por %p245, %p246
      %p249 = scmp.ne.s32.totalorder %s234, %s248
      %p250 = scmp.eq.s32.totalorder %s30, 0
      %p251 = por %p249, %p250
      %s253 = sadd.s32 %s252, 1
      %p256 = scmp.eq.s32.totalorder %s24, 1
      %p257 = scmp.ne.s32.totalorder %s252, %s254
      %p258 = scmp.eq.s32.totalorder %s24, 0
      %p259 = por %p257, %p258
      %p260 = scmp.ne.s32.totalorder %s252, %s254
      %p261 = scmp.eq.s32.totalorder %s29, 1
      %p262 = por %p260, %p261
      %p263 = scmp.ne.s32.totalorder %s254, %s255
      %p264 = scmp.eq.s32.totalorder %s29, 0
      %p265 = por %p263, %p264
      %p266 = scmp.ne.s32.totalorder %s254, %s255
      %p267 = scmp.eq.s32.totalorder %s30, 1
      %p268 = por %p266, %p267
      %p270 = scmp.ne.s32.totalorder %s255, %s269
      %p271 = scmp.eq.s32.totalorder %s30, 0
      %p272 = por %p270, %p271
      %s273 = ssub.s32 %s24, %s31
      %p274 = scmp.eq.s32.totalorder %s273, 0
      %s276 = sadd.s32 %s275, 1
      %s277 = scalar_select %p274, %s275, %s276
      %p280 = pneg %p274
      %p281 = scmp.eq.s32.totalorder %s24, 1
      %p282 = por %p280, %p281
      %p283 = scmp.ne.s32.totalorder %s275, %s278
      %p284 = scmp.eq.s32.totalorder %s24, 0
      %p285 = por %p283, %p284
      %p286 = scmp.ne.s32.totalorder %s275, %s278
      %p287 = scmp.eq.s32.totalorder %s29, 1
      %p288 = por %p286, %p287
      %p289 = scmp.ne.s32.totalorder %s278, %s279
      %p290 = scmp.eq.s32.totalorder %s29, 0
      %p291 = por %p289, %p290
      %p292 = scmp.ne.s32.totalorder %s278, %s279
      %p293 = scmp.eq.s32.totalorder %s30, 1
      %p294 = por %p292, %p293
      %p296 = scmp.ne.s32.totalorder %s279, %s295
      %p297 = scmp.eq.s32.totalorder %s30, 0
      %p298 = por %p296, %p297
      %s299 = ssub.s32 %s24, %s31
      %p300 = scmp.eq.s32.totalorder %s299, 0
      %s302 = sadd.s32 %s301, 1
      %s303 = scalar_select %p300, %s301, %s302
      %p306 = pneg %p300
      %p307 = scmp.eq.s32.totalorder %s24, 1
      %p308 = por %p306, %p307
      %p309 = scmp.ne.s32.totalorder %s301, %s304
      %p310 = scmp.eq.s32.totalorder %s24, 0
      %p311 = por %p309, %p310
      %p312 = scmp.ne.s32.totalorder %s301, %s304
      %p313 = scmp.eq.s32.totalorder %s29, 1
      %p314 = por %p312, %p313
      %p315 = scmp.ne.s32.totalorder %s304, %s305
      %p316 = scmp.eq.s32.totalorder %s29, 0
      %p317 = por %p315, %p316
      %p318 = scmp.ne.s32.totalorder %s304, %s305
      %p319 = scmp.eq.s32.totalorder %s30, 1
      %p320 = por %p318, %p319
      %p322 = scmp.ne.s32.totalorder %s305, %s321
      %p323 = scmp.eq.s32.totalorder %s30, 0
      %p324 = por %p322, %p323
      %p325 = scmp.le.s32.totalorder 1, %s24
      %p326 = scmp.lt.s32.totalorder %s24, 3
      %p327 = pnand %p325, %p326
      %p328 = pneg %p327
      // Predicated region
      $region9: #{tpu_custom_call.1} parent=5 // pred_check
        _
      $region10: #{tpu_custom_call.1} parent=5 // pred_check_branch
        %330 = sbr.rel (%p327) target = $region12
      $region11: #{tpu_custom_call.1} parent=5 // pred_region
        %s331 = ssub.s32 %s24, 1
        // Predicated region
        $region13: #{tpu_custom_call.1} parent=11 // pred_check
          %p332 = pneg %p97
        $region14: #{tpu_custom_call.1} parent=11 // pred_check_branch
          %334 = sbr.rel (%p332) target = $region16
        $region15: #{tpu_custom_call.1} parent=11 // pred_region
          _
        $region16: #{tpu_custom_call.1} parent=11 // pred_fallthru
          _
        // Predicated region
        $region17: #{tpu_custom_call.1} parent=11 // pred_check
          %p335 = pneg %p118
        $region18: #{tpu_custom_call.1} parent=11 // pred_check_branch
          %337 = sbr.rel (%p335) target = $region20
        $region19: #{tpu_custom_call.1} parent=11 // pred_region
          _
        $region20: #{tpu_custom_call.1} parent=11 // pred_fallthru
          _
        // Predicated region
        $region21: #{tpu_custom_call.1} parent=11 // pred_check
          %p338 = pneg %p139
        $region22: #{tpu_custom_call.1} parent=11 // pred_check_branch
          %340 = sbr.rel (%p338) target = $region24
        $region23: #{tpu_custom_call.1} parent=11 // pred_region
          _
        $region24: #{tpu_custom_call.1} parent=11 // pred_fallthru
          _
        // Predicated region
        $region25: #{tpu_custom_call.1} parent=11 // pred_check
          %p341 = pneg %p160
        $region26: #{tpu_custom_call.1} parent=11 // pred_check_branch
          %343 = sbr.rel (%p341) target = $region28
        $region27: #{tpu_custom_call.1} parent=11 // pred_region
          _
        $region28: #{tpu_custom_call.1} parent=11 // pred_fallthru
          _
        // Predicated region
        $region29: #{tpu_custom_call.1} parent=11 // pred_check
          %p344 = pneg %p181
        $region30: #{tpu_custom_call.1} parent=11 // pred_check_branch
          %346 = sbr.rel (%p344) target = $region32
        $region31: #{tpu_custom_call.1} parent=11 // pred_region
          _
        $region32: #{tpu_custom_call.1} parent=11 // pred_fallthru
          _
        // Predicated region
        $region33: #{tpu_custom_call.1} parent=11 // pred_check
          %p347 = pneg %p202
        $region34: #{tpu_custom_call.1} parent=11 // pred_check_branch
          %349 = sbr.rel (%p347) target = $region36
        $region35: #{tpu_custom_call.1} parent=11 // pred_region
          _
        $region36: #{tpu_custom_call.1} parent=11 // pred_fallthru
          _
        // Predicated region
        $region37: #{tpu_custom_call.1} parent=11 // pred_check
          %p350 = pneg %p223
        $region38: #{tpu_custom_call.1} parent=11 // pred_check_branch
          %352 = sbr.rel (%p350) target = $region40
        $region39: #{tpu_custom_call.1} parent=11 // pred_region
          _
        $region40: #{tpu_custom_call.1} parent=11 // pred_fallthru
          _
        // Predicated region
        $region41: #{tpu_custom_call.1} parent=11 // pred_check
          %p353 = pneg %p244
        $region42: #{tpu_custom_call.1} parent=11 // pred_check_branch
          %355 = sbr.rel (%p353) target = $region44
        $region43: #{tpu_custom_call.1} parent=11 // pred_region
          _
        $region44: #{tpu_custom_call.1} parent=11 // pred_fallthru
          _
        // Predicated region
        $region45: #{tpu_custom_call.1} parent=11 // pred_check
          %p356 = pneg %p265
        $region46: #{tpu_custom_call.1} parent=11 // pred_check_branch
          %358 = sbr.rel (%p356) target = $region48
        $region47: #{tpu_custom_call.1} parent=11 // pred_region
          _
        $region48: #{tpu_custom_call.1} parent=11 // pred_fallthru
          _
      $region12: #{tpu_custom_call.1} parent=5 // pred_fallthru
        _
      %p359 = scmp.lt.s32.totalorder %s24, 2
      // Predicated region
      $region49: #{tpu_custom_call.1} parent=5 // pred_check
        %p360 = pneg %p359
      $region50: #{tpu_custom_call.1} parent=5 // pred_check_branch
        %362 = sbr.rel (%p360) target = $region52
      $region51: #{tpu_custom_call.1} parent=5 // pred_region
        // Predicated region
        $region53: #{tpu_custom_call.1} parent=51 // pred_check
          %p363 = pneg %p44
        $region54: #{tpu_custom_call.1} parent=51 // pred_check_branch
          %365 = sbr.rel (%p363) target = $region56
        $region55: #{tpu_custom_call.1} parent=51 // pred_region
          %s366 = smul.u32 96, %s24
          %p367 = scmp.lt.s32.totalorder %s366, 191
          %s368 = scalar_select %p367, %s366, 191
          %s369 = smul.addr %s368, 4
          %s370 = scalar_lea.vmem %s1, %s369
          %s371 = smul.u32 96, %s24
        $region56: #{tpu_custom_call.1} parent=51 // pred_fallthru
          _
        // Predicated region
        $region57: #{tpu_custom_call.1} parent=51 // pred_check
          %p372 = pneg %p70
        $region58: #{tpu_custom_call.1} parent=51 // pred_check_branch
          %374 = sbr.rel (%p372) target = $region60
        $region59: #{tpu_custom_call.1} parent=51 // pred_region
          %s375 = smul.u32 96, %s24
          %p376 = scmp.lt.s32.totalorder %s375, 191
          %s377 = scalar_select %p376, %s375, 191
          %s378 = smul.addr %s377, 4
          %s379 = scalar_lea.vmem %s2, %s378
          %s380 = smul.u32 96, %s24
        $region60: #{tpu_custom_call.1} parent=51 // pred_fallthru
          _
      $region52: #{tpu_custom_call.1} parent=5 // pred_fallthru
        _
      %p381 = scmp.le.s32.totalorder 1, %s24
      %p382 = scmp.lt.s32.totalorder %s24, 3
      %p383 = pnand %p381, %p382
      %p384 = pneg %p383
      // Predicated region
      $region61: #{tpu_custom_call.1} parent=5 // pred_check
        _
      $region62: #{tpu_custom_call.1} parent=5 // pred_check_branch
        %386 = sbr.rel (%p383) target = $region64
      $region63: #{tpu_custom_call.1} parent=5 // pred_region
        %s387 = ssub.s32 %s24, 1
        %s388 = smul.u32 96, %s29
        %p389 = scmp.lt.s32.totalorder %s388, 191
        %s390 = scalar_select %p389, %s388, 191
        %s391 = smul.addr %s390, 4
        %s392 = scalar_lea.vmem %s1, %s391
        %p393 = pneg %p50
        %p394 = pneg %p47
        %s395 = smul.u32 96, %s29
        %p396 = scmp.lt.s32.totalorder %s395, 191
        %s397 = scalar_select %p396, %s395, 191
        %s398 = smul.addr %s397, 4
        %s399 = scalar_lea.vmem %s2, %s398
        %p400 = pneg %p76
        %p401 = pneg %p73
        %p402 = pneg %p97
        %p403 = pneg %p94
        %p404 = pneg %p118
        %p405 = pneg %p115
        %p406 = pneg %p139
        %p407 = pneg %p136
        %p408 = pneg %p160
        %p409 = pneg %p157
        %p410 = pneg %p181
        %p411 = pneg %p178
        %p412 = pneg %p202
        %p413 = pneg %p199
        %p414 = pneg %p223
        %p415 = pneg %p220
        %p416 = pneg %p244
        %p417 = pneg %p241
        %p418 = pneg %p265
        %p419 = pneg %p262
        %p420 = pneg %p291
        %p421 = pneg %p288
        %s422 = smul.u32 96, %s29
        %p423 = scmp.lt.s32.totalorder %s422, 191
        %s424 = scalar_select %p423, %s422, 191
        %s425 = smul.addr %s424, 8
        %s426 = scalar_lea.vmem %s12, %s425
        %p427 = pneg %p317
        %p428 = pneg %p314
        %s429 = sand.u32 %s304, 1
        %s430 = scalar_lea.sflag [#allocation5], %s429
        %s431 = sand.u32 %s304, 1
        %s432 = smul.addr %s431, 8
        %s433 = scalar_lea.vmem [#allocation4], %s432
        %s434 = smul.u32 96, %s29
        %p435 = scmp.lt.s32.totalorder %s434, 191
        %s436 = scalar_select %p435, %s434, 191
        %s437 = smul.addr %s436, 4
        %s438 = scalar_lea.vmem %s1, %s437
        %s439 = smul.u32 96, %s29
        %s440 = smul.u32 96, %s29
        %p441 = scmp.lt.s32.totalorder %s440, 191
        %s442 = scalar_select %p441, %s440, 191
        %s443 = smul.addr %s442, 4
        %s444 = scalar_lea.vmem %s2, %s443
        %s445 = smul.u32 96, %s29
        %s446 = smul.u32 96, %s29
        %p447 = scmp.lt.s32.totalorder %s446, 191
        %s448 = scalar_select %p447, %s446, 191
        %s449 = smul.addr %s448, 8
        %s450 = scalar_lea.vmem %s12, %s449
        %s451 = smul.u32 96, %s29
        %v453 = vld [vmem:[%s438] sm:$0xf]
        %v454 = vld [vmem:[%s438 + $0x4] sm:$0xf]
        %v455 = vld [vmem:[%s438 + $0x8] sm:$0xf]
        %v456 = vld [vmem:[%s438 + $0xc] sm:$0xf]
        %v457 = vld [vmem:[%s438 + $0x10] sm:$0xf]
        %v458 = vld [vmem:[%s438 + $0x14] sm:$0xf]
        %v459 = vld [vmem:[%s438 + $0x18] sm:$0xf]
        %v460 = vld [vmem:[%s438 + $0x1c] sm:$0xf]
        %v461 = vld [vmem:[%s438 + $0x20] sm:$0xf]
        %v462 = vld [vmem:[%s438 + $0x24] sm:$0xf]
        %v463 = vld [vmem:[%s438 + $0x28] sm:$0xf]
        %v464 = vld [vmem:[%s438 + $0x2c] sm:$0xf]
        %v465 = vld [vmem:[%s438 + $0x30] sm:$0xf]
        %v466 = vld [vmem:[%s438 + $0x34] sm:$0xf]
        %v467 = vld [vmem:[%s438 + $0x38] sm:$0xf]
        %v468 = vld [vmem:[%s438 + $0x3c] sm:$0xf]
        %v469 = vld [vmem:[%s438 + $0x40] sm:$0xf]
        %v470 = vld [vmem:[%s438 + $0x44] sm:$0xf]
        %v471 = vld [vmem:[%s438 + $0x48] sm:$0xf]
        %v472 = vld [vmem:[%s438 + $0x4c] sm:$0xf]
        %v473 = vld [vmem:[%s438 + $0x50] sm:$0xf]
        %v474 = vld [vmem:[%s438 + $0x54] sm:$0xf]
        %v475 = vld [vmem:[%s438 + $0x58] sm:$0xf]
        %v476 = vld [vmem:[%s438 + $0x5c] sm:$0xf]
        %v477 = vld [vmem:[%s438 + $0x60] sm:$0xf]
        %v478 = vld [vmem:[%s438 + $0x64] sm:$0xf]
        %v479 = vld [vmem:[%s438 + $0x68] sm:$0xf]
        %v480 = vld [vmem:[%s438 + $0x6c] sm:$0xf]
        %v481 = vld [vmem:[%s438 + $0x70] sm:$0xf]
        %v482 = vld [vmem:[%s438 + $0x74] sm:$0xf]
        %v483 = vld [vmem:[%s438 + $0x78] sm:$0xf]
        %v484 = vld [vmem:[%s438 + $0x7c] sm:$0xf]
        %v485 = vld [vmem:[%s438 + $0x80] sm:$0xf]
        %v486 = vld [vmem:[%s438 + $0x84] sm:$0xf]
        %v487 = vld [vmem:[%s438 + $0x88] sm:$0xf]
        %v488 = vld [vmem:[%s438 + $0x8c] sm:$0xf]
        %v489 = vld [vmem:[%s438 + $0x90] sm:$0xf]
        %v490 = vld [vmem:[%s438 + $0x94] sm:$0xf]
        %v491 = vld [vmem:[%s438 + $0x98] sm:$0xf]
        %v492 = vld [vmem:[%s438 + $0x9c] sm:$0xf]
        %v493 = vld [vmem:[%s438 + $0xa0] sm:$0xf]
        %v494 = vld [vmem:[%s438 + $0xa4] sm:$0xf]
        %v495 = vld [vmem:[%s438 + $0xa8] sm:$0xf]
        %v496 = vld [vmem:[%s438 + $0xac] sm:$0xf]
        %v497 = vld [vmem:[%s438 + $0xb0] sm:$0xf]
        %v498 = vld [vmem:[%s438 + $0xb4] sm:$0xf]
        %v499 = vld [vmem:[%s438 + $0xb8] sm:$0xf]
        %v500 = vld [vmem:[%s438 + $0xbc] sm:$0xf]
        %v501 = vld [vmem:[%s438 + $0xc0] sm:$0xf]
        %v502 = vld [vmem:[%s438 + $0xc4] sm:$0xf]
        %v503 = vld [vmem:[%s438 + $0xc8] sm:$0xf]
        %v504 = vld [vmem:[%s438 + $0xcc] sm:$0xf]
        %v505 = vld [vmem:[%s438 + $0xd0] sm:$0xf]
        %v506 = vld [vmem:[%s438 + $0xd4] sm:$0xf]
        %v507 = vld [vmem:[%s438 + $0xd8] sm:$0xf]
        %v508 = vld [vmem:[%s438 + $0xdc] sm:$0xf]
        %v509 = vld [vmem:[%s438 + $0xe0] sm:$0xf]
        %v510 = vld [vmem:[%s438 + $0xe4] sm:$0xf]
        %v511 = vld [vmem:[%s438 + $0xe8] sm:$0xf]
        %v512 = vld [vmem:[%s438 + $0xec] sm:$0xf]
        %v513 = vld [vmem:[%s438 + $0xf0] sm:$0xf]
        %v514 = vld [vmem:[%s438 + $0xf4] sm:$0xf]
        %v515 = vld [vmem:[%s438 + $0xf8] sm:$0xf]
        %v516 = vld [vmem:[%s438 + $0xfc] sm:$0xf]
        %v517 = vld [vmem:[%s438 + $0x100] sm:$0xf]
        %v518 = vld [vmem:[%s438 + $0x104] sm:$0xf]
        %v519 = vld [vmem:[%s438 + $0x108] sm:$0xf]
        %v520 = vld [vmem:[%s438 + $0x10c] sm:$0xf]
        %v521 = vld [vmem:[%s438 + $0x110] sm:$0xf]
        %v522 = vld [vmem:[%s438 + $0x114] sm:$0xf]
        %v523 = vld [vmem:[%s438 + $0x118] sm:$0xf]
        %v524 = vld [vmem:[%s438 + $0x11c] sm:$0xf]
        %v525 = vld [vmem:[%s438 + $0x120] sm:$0xf]
        %v526 = vld [vmem:[%s438 + $0x124] sm:$0xf]
        %v527 = vld [vmem:[%s438 + $0x128] sm:$0xf]
        %v528 = vld [vmem:[%s438 + $0x12c] sm:$0xf]
        %v529 = vld [vmem:[%s438 + $0x130] sm:$0xf]
        %v530 = vld [vmem:[%s438 + $0x134] sm:$0xf]
        %v531 = vld [vmem:[%s438 + $0x138] sm:$0xf]
        %v532 = vld [vmem:[%s438 + $0x13c] sm:$0xf]
        %v533 = vld [vmem:[%s438 + $0x140] sm:$0xf]
        %v534 = vld [vmem:[%s438 + $0x144] sm:$0xf]
        %v535 = vld [vmem:[%s438 + $0x148] sm:$0xf]
        %v536 = vld [vmem:[%s438 + $0x14c] sm:$0xf]
        %v537 = vld [vmem:[%s438 + $0x150] sm:$0xf]
        %v538 = vld [vmem:[%s438 + $0x154] sm:$0xf]
        %v539 = vld [vmem:[%s438 + $0x158] sm:$0xf]
        %v540 = vld [vmem:[%s438 + $0x15c] sm:$0xf]
        %v541 = vld [vmem:[%s438 + $0x160] sm:$0xf]
        %v542 = vld [vmem:[%s438 + $0x164] sm:$0xf]
        %v543 = vld [vmem:[%s438 + $0x168] sm:$0xf]
        %v544 = vld [vmem:[%s438 + $0x16c] sm:$0xf]
        %v545 = vld [vmem:[%s438 + $0x170] sm:$0xf]
        %v546 = vld [vmem:[%s438 + $0x174] sm:$0xf]
        %v547 = vld [vmem:[%s438 + $0x178] sm:$0xf]
        %v548 = vld [vmem:[%s438 + $0x17c] sm:$0xf]
        %v549 = vld [vmem:[%s3] sm:$0xf]
        %v550 = vld [vmem:[%s3 + $0x4] sm:$0xf]
        %v551 = vld [vmem:[%s444] sm:$0xf]
        %v552 = vld [vmem:[%s444 + $0x4] sm:$0xf]
        %v553 = vld [vmem:[%s444 + $0x8] sm:$0xf]
        %v554 = vld [vmem:[%s444 + $0xc] sm:$0xf]
        %v555 = vld [vmem:[%s444 + $0x10] sm:$0xf]
        %v556 = vld [vmem:[%s444 + $0x14] sm:$0xf]
        %v557 = vld [vmem:[%s444 + $0x18] sm:$0xf]
        %v558 = vld [vmem:[%s444 + $0x1c] sm:$0xf]
        %v559 = vld [vmem:[%s444 + $0x20] sm:$0xf]
        %v560 = vld [vmem:[%s444 + $0x24] sm:$0xf]
        %v561 = vld [vmem:[%s444 + $0x28] sm:$0xf]
        %v562 = vld [vmem:[%s444 + $0x2c] sm:$0xf]
        %v563 = vld [vmem:[%s444 + $0x30] sm:$0xf]
        %v564 = vld [vmem:[%s444 + $0x34] sm:$0xf]
        %v565 = vld [vmem:[%s444 + $0x38] sm:$0xf]
        %v566 = vld [vmem:[%s444 + $0x3c] sm:$0xf]
        %v567 = vld [vmem:[%s444 + $0x40] sm:$0xf]
        %v568 = vld [vmem:[%s444 + $0x44] sm:$0xf]
        %v569 = vld [vmem:[%s444 + $0x48] sm:$0xf]
        %v570 = vld [vmem:[%s444 + $0x4c] sm:$0xf]
        %v571 = vld [vmem:[%s444 + $0x50] sm:$0xf]
        %v572 = vld [vmem:[%s444 + $0x54] sm:$0xf]
        %v573 = vld [vmem:[%s444 + $0x58] sm:$0xf]
        %v574 = vld [vmem:[%s444 + $0x5c] sm:$0xf]
        %v575 = vld [vmem:[%s444 + $0x60] sm:$0xf]
        %v576 = vld [vmem:[%s444 + $0x64] sm:$0xf]
        %v577 = vld [vmem:[%s444 + $0x68] sm:$0xf]
        %v578 = vld [vmem:[%s444 + $0x6c] sm:$0xf]
        %v579 = vld [vmem:[%s444 + $0x70] sm:$0xf]
        %v580 = vld [vmem:[%s444 + $0x74] sm:$0xf]
        %v581 = vld [vmem:[%s444 + $0x78] sm:$0xf]
        %v582 = vld [vmem:[%s444 + $0x7c] sm:$0xf]
        %v583 = vld [vmem:[%s444 + $0x80] sm:$0xf]
        %v584 = vld [vmem:[%s444 + $0x84] sm:$0xf]
        %v585 = vld [vmem:[%s444 + $0x88] sm:$0xf]
        %v586 = vld [vmem:[%s444 + $0x8c] sm:$0xf]
        %v587 = vld [vmem:[%s444 + $0x90] sm:$0xf]
        %v588 = vld [vmem:[%s444 + $0x94] sm:$0xf]
        %v589 = vld [vmem:[%s444 + $0x98] sm:$0xf]
        %v590 = vld [vmem:[%s444 + $0x9c] sm:$0xf]
        %v591 = vld [vmem:[%s444 + $0xa0] sm:$0xf]
        %v592 = vld [vmem:[%s444 + $0xa4] sm:$0xf]
        %v593 = vld [vmem:[%s444 + $0xa8] sm:$0xf]
        %v594 = vld [vmem:[%s444 + $0xac] sm:$0xf]
        %v595 = vld [vmem:[%s444 + $0xb0] sm:$0xf]
        %v596 = vld [vmem:[%s444 + $0xb4] sm:$0xf]
        %v597 = vld [vmem:[%s444 + $0xb8] sm:$0xf]
        %v598 = vld [vmem:[%s444 + $0xbc] sm:$0xf]
        %v599 = vld [vmem:[%s444 + $0xc0] sm:$0xf]
        %v600 = vld [vmem:[%s444 + $0xc4] sm:$0xf]
        %v601 = vld [vmem:[%s444 + $0xc8] sm:$0xf]
        %v602 = vld [vmem:[%s444 + $0xcc] sm:$0xf]
        %v603 = vld [vmem:[%s444 + $0xd0] sm:$0xf]
        %v604 = vld [vmem:[%s444 + $0xd4] sm:$0xf]
        %v605 = vld [vmem:[%s444 + $0xd8] sm:$0xf]
        %v606 = vld [vmem:[%s444 + $0xdc] sm:$0xf]
        %v607 = vld [vmem:[%s444 + $0xe0] sm:$0xf]
        %v608 = vld [vmem:[%s444 + $0xe4] sm:$0xf]
        %v609 = vld [vmem:[%s444 + $0xe8] sm:$0xf]
        %v610 = vld [vmem:[%s444 + $0xec] sm:$0xf]
        %v611 = vld [vmem:[%s444 + $0xf0] sm:$0xf]
        %v612 = vld [vmem:[%s444 + $0xf4] sm:$0xf]
        %v613 = vld [vmem:[%s444 + $0xf8] sm:$0xf]
        %v614 = vld [vmem:[%s444 + $0xfc] sm:$0xf]
        %v615 = vld [vmem:[%s444 + $0x100] sm:$0xf]
        %v616 = vld [vmem:[%s444 + $0x104] sm:$0xf]
        %v617 = vld [vmem:[%s444 + $0x108] sm:$0xf]
        %v618 = vld [vmem:[%s444 + $0x10c] sm:$0xf]
        %v619 = vld [vmem:[%s444 + $0x110] sm:$0xf]
        %v620 = vld [vmem:[%s444 + $0x114] sm:$0xf]
        %v621 = vld [vmem:[%s444 + $0x118] sm:$0xf]
        %v622 = vld [vmem:[%s444 + $0x11c] sm:$0xf]
        %v623 = vld [vmem:[%s444 + $0x120] sm:$0xf]
        %v624 = vld [vmem:[%s444 + $0x124] sm:$0xf]
        %v625 = vld [vmem:[%s444 + $0x128] sm:$0xf]
        %v626 = vld [vmem:[%s444 + $0x12c] sm:$0xf]
        %v627 = vld [vmem:[%s444 + $0x130] sm:$0xf]
        %v628 = vld [vmem:[%s444 + $0x134] sm:$0xf]
        %v629 = vld [vmem:[%s444 + $0x138] sm:$0xf]
        %v630 = vld [vmem:[%s444 + $0x13c] sm:$0xf]
        %v631 = vld [vmem:[%s444 + $0x140] sm:$0xf]
        %v632 = vld [vmem:[%s444 + $0x144] sm:$0xf]
        %v633 = vld [vmem:[%s444 + $0x148] sm:$0xf]
        %v634 = vld [vmem:[%s444 + $0x14c] sm:$0xf]
        %v635 = vld [vmem:[%s444 + $0x150] sm:$0xf]
        %v636 = vld [vmem:[%s444 + $0x154] sm:$0xf]
        %v637 = vld [vmem:[%s444 + $0x158] sm:$0xf]
        %v638 = vld [vmem:[%s444 + $0x15c] sm:$0xf]
        %v639 = vld [vmem:[%s444 + $0x160] sm:$0xf]
        %v640 = vld [vmem:[%s444 + $0x164] sm:$0xf]
        %v641 = vld [vmem:[%s444 + $0x168] sm:$0xf]
        %v642 = vld [vmem:[%s444 + $0x16c] sm:$0xf]
        %v643 = vld [vmem:[%s444 + $0x170] sm:$0xf]
        %v644 = vld [vmem:[%s444 + $0x174] sm:$0xf]
        %v645 = vld [vmem:[%s444 + $0x178] sm:$0xf]
        %v646 = vld [vmem:[%s444 + $0x17c] sm:$0xf]
        %v647 = vld [vmem:[%s4] sm:$0xf]
        %v744 = vunpack.c.l.b16 %v551
        %v745 = vunpack.c.l.b16 %v552
        %v746 = vunpack.c.l.b16 %v553
        %v747 = vunpack.c.l.b16 %v554
        %v748 = vunpack.c.l.b16 %v555
        %v749 = vunpack.c.l.b16 %v556
        %v750 = vunpack.c.l.b16 %v557
        %v751 = vunpack.c.l.b16 %v558
        %v752 = vunpack.c.l.b16 %v559
        %v753 = vunpack.c.l.b16 %v560
        %v754 = vunpack.c.l.b16 %v561
        %v755 = vunpack.c.l.b16 %v562
        %v756 = vunpack.c.l.b16 %v563
        %v757 = vunpack.c.l.b16 %v564
        %v758 = vunpack.c.l.b16 %v565
        %v759 = vunpack.c.l.b16 %v566
        %v760 = vunpack.c.l.b16 %v567
        %v761 = vunpack.c.l.b16 %v568
        %v762 = vunpack.c.l.b16 %v569
        %v763 = vunpack.c.l.b16 %v570
        %v764 = vunpack.c.l.b16 %v571
        %v765 = vunpack.c.l.b16 %v572
        %v766 = vunpack.c.l.b16 %v573
        %v767 = vunpack.c.l.b16 %v574
        %v768 = vunpack.c.l.b16 %v575
        %v769 = vunpack.c.l.b16 %v576
        %v770 = vunpack.c.l.b16 %v577
        %v771 = vunpack.c.l.b16 %v578
        %v772 = vunpack.c.l.b16 %v579
        %v773 = vunpack.c.l.b16 %v580
        %v774 = vunpack.c.l.b16 %v581
        %v775 = vunpack.c.l.b16 %v582
        %v776 = vunpack.c.l.b16 %v583
        %v777 = vunpack.c.l.b16 %v584
        %v778 = vunpack.c.l.b16 %v585
        %v779 = vunpack.c.l.b16 %v586
        %v780 = vunpack.c.l.b16 %v587
        %v781 = vunpack.c.l.b16 %v588
        %v782 = vunpack.c.l.b16 %v589
        %v783 = vunpack.c.l.b16 %v590
        %v784 = vunpack.c.l.b16 %v591
        %v785 = vunpack.c.l.b16 %v592
        %v786 = vunpack.c.l.b16 %v593
        %v787 = vunpack.c.l.b16 %v594
        %v788 = vunpack.c.l.b16 %v595
        %v789 = vunpack.c.l.b16 %v596
        %v790 = vunpack.c.l.b16 %v597
        %v791 = vunpack.c.l.b16 %v598
        %v792 = vunpack.c.l.b16 %v599
        %v793 = vunpack.c.l.b16 %v600
        %v794 = vunpack.c.l.b16 %v601
        %v795 = vunpack.c.l.b16 %v602
        %v796 = vunpack.c.l.b16 %v603
        %v797 = vunpack.c.l.b16 %v604
        %v798 = vunpack.c.l.b16 %v605
        %v799 = vunpack.c.l.b16 %v606
        %v800 = vunpack.c.l.b16 %v607
        %v801 = vunpack.c.l.b16 %v608
        %v802 = vunpack.c.l.b16 %v609
        %v803 = vunpack.c.l.b16 %v610
        %v804 = vunpack.c.l.b16 %v611
        %v805 = vunpack.c.l.b16 %v612
        %v806 = vunpack.c.l.b16 %v613
        %v807 = vunpack.c.l.b16 %v614
        %v808 = vunpack.c.l.b16 %v615
        %v809 = vunpack.c.l.b16 %v616
        %v810 = vunpack.c.l.b16 %v617
        %v811 = vunpack.c.l.b16 %v618
        %v812 = vunpack.c.l.b16 %v619
        %v813 = vunpack.c.l.b16 %v620
        %v814 = vunpack.c.l.b16 %v621
        %v815 = vunpack.c.l.b16 %v622
        %v816 = vunpack.c.l.b16 %v623
        %v817 = vunpack.c.l.b16 %v624
        %v818 = vunpack.c.l.b16 %v625
        %v819 = vunpack.c.l.b16 %v626
        %v820 = vunpack.c.l.b16 %v627
        %v821 = vunpack.c.l.b16 %v628
        %v822 = vunpack.c.l.b16 %v629
        %v823 = vunpack.c.l.b16 %v630
        %v824 = vunpack.c.l.b16 %v631
        %v825 = vunpack.c.l.b16 %v632
        %v826 = vunpack.c.l.b16 %v633
        %v827 = vunpack.c.l.b16 %v634
        %v828 = vunpack.c.l.b16 %v635
        %v829 = vunpack.c.l.b16 %v636
        %v830 = vunpack.c.l.b16 %v637
        %v831 = vunpack.c.l.b16 %v638
        %v832 = vunpack.c.l.b16 %v639
        %v833 = vunpack.c.l.b16 %v640
        %v834 = vunpack.c.l.b16 %v641
        %v835 = vunpack.c.l.b16 %v642
        %v836 = vunpack.c.l.b16 %v643
        %v837 = vunpack.c.l.b16 %v644
        %v838 = vunpack.c.l.b16 %v645
        %v839 = vunpack.c.l.b16 %v646
        %v840 = vpack.c.b16 %v745, %v744
        %v841 = vpack.c.b16 %v747, %v746
        %v842 = vpack.c.b16 %v749, %v748
        %v843 = vpack.c.b16 %v751, %v750
        %v844 = vpack.c.b16 %v753, %v752
        %v845 = vpack.c.b16 %v755, %v754
        %v846 = vpack.c.b16 %v757, %v756
        %v847 = vpack.c.b16 %v759, %v758
        %v848 = vpack.c.b16 %v761, %v760
        %v849 = vpack.c.b16 %v763, %v762
        %v850 = vpack.c.b16 %v765, %v764
        %v851 = vpack.c.b16 %v767, %v766
        %v852 = vpack.c.b16 %v769, %v768
        %v853 = vpack.c.b16 %v771, %v770
        %v854 = vpack.c.b16 %v773, %v772
        %v855 = vpack.c.b16 %v775, %v774
        %v856 = vpack.c.b16 %v777, %v776
        %v857 = vpack.c.b16 %v779, %v778
        %v858 = vpack.c.b16 %v781, %v780
        %v859 = vpack.c.b16 %v783, %v782
        %v860 = vpack.c.b16 %v785, %v784
        %v861 = vpack.c.b16 %v787, %v786
        %v862 = vpack.c.b16 %v789, %v788
        %v863 = vpack.c.b16 %v791, %v790
        %v864 = vpack.c.b16 %v793, %v792
        %v865 = vpack.c.b16 %v795, %v794
        %v866 = vpack.c.b16 %v797, %v796
        %v867 = vpack.c.b16 %v799, %v798
        %v868 = vpack.c.b16 %v801, %v800
        %v869 = vpack.c.b16 %v803, %v802
        %v870 = vpack.c.b16 %v805, %v804
        %v871 = vpack.c.b16 %v807, %v806
        %v872 = vpack.c.b16 %v809, %v808
        %v873 = vpack.c.b16 %v811, %v810
        %v874 = vpack.c.b16 %v813, %v812
        %v875 = vpack.c.b16 %v815, %v814
        %v876 = vpack.c.b16 %v817, %v816
        %v877 = vpack.c.b16 %v819, %v818
        %v878 = vpack.c.b16 %v821, %v820
        %v879 = vpack.c.b16 %v823, %v822
        %v880 = vpack.c.b16 %v825, %v824
        %v881 = vpack.c.b16 %v827, %v826
        %v882 = vpack.c.b16 %v829, %v828
        %v883 = vpack.c.b16 %v831, %v830
        %v884 = vpack.c.b16 %v833, %v832
        %v885 = vpack.c.b16 %v835, %v834
        %v886 = vpack.c.b16 %v837, %v836
        %v887 = vpack.c.b16 %v839, %v838
        %vm888 = vcmask 64512
        %v890 = vsel %vm888, %v840, 0
        %v893 = vsel %vm888, %v841, 0
        %v896 = vsel %vm888, %v842, 0
        %v899 = vsel %vm888, %v843, 0
        %v902 = vsel %vm888, %v844, 0
        %v905 = vsel %vm888, %v845, 0
        %v908 = vsel %vm888, %v846, 0
        %v911 = vsel %vm888, %v847, 0
        %v914 = vsel %vm888, %v848, 0
        %v917 = vsel %vm888, %v849, 0
        %v920 = vsel %vm888, %v850, 0
        %v923 = vsel %vm888, %v851, 0
        %v926 = vsel %vm888, %v852, 0
        %v929 = vsel %vm888, %v853, 0
        %v932 = vsel %vm888, %v854, 0
        %v935 = vsel %vm888, %v855, 0
        %v938 = vsel %vm888, %v856, 0
        %v941 = vsel %vm888, %v857, 0
        %v944 = vsel %vm888, %v858, 0
        %v947 = vsel %vm888, %v859, 0
        %v950 = vsel %vm888, %v860, 0
        %v953 = vsel %vm888, %v861, 0
        %v956 = vsel %vm888, %v862, 0
        %v959 = vsel %vm888, %v863, 0
        %v962 = vsel %vm888, %v864, 0
        %v965 = vsel %vm888, %v865, 0
        %v968 = vsel %vm888, %v866, 0
        %v971 = vsel %vm888, %v867, 0
        %v974 = vsel %vm888, %v868, 0
        %v977 = vsel %vm888, %v869, 0
        %v980 = vsel %vm888, %v870, 0
        %v983 = vsel %vm888, %v871, 0
        %v986 = vsel %vm888, %v872, 0
        %v989 = vsel %vm888, %v873, 0
        %v992 = vsel %vm888, %v874, 0
        %v995 = vsel %vm888, %v875, 0
        %v998 = vsel %vm888, %v876, 0
        %v1001 = vsel %vm888, %v877, 0
        %v1004 = vsel %vm888, %v878, 0
        %v1007 = vsel %vm888, %v879, 0
        %v1010 = vsel %vm888, %v880, 0
        %v1013 = vsel %vm888, %v881, 0
        %v1016 = vsel %vm888, %v882, 0
        %v1019 = vsel %vm888, %v883, 0
        %v1022 = vsel %vm888, %v884, 0
        %v1025 = vsel %vm888, %v885, 0
        %v1028 = vsel %vm888, %v886, 0
        %v1031 = vsel %vm888, %v887, 0
        %vm1033 = vcmask 1043456
        %v1035 = vsel %vm1033, %v647, 0
        %1037 = vmatprep.subr.bf16.mxu0 0
        %1038 = vmatpush1.bf16.msra.mxu0 0
        %1039 = vmatprep.subr.bf16.mxu0 0
        %1040 = vmatpush1.bf16.msra.mxu0 0
        %1041 = vmatprep.subr.bf16.mxu0 0
        %1042 = vmatpush1.bf16.msra.mxu0 0
        %1043 = vmatprep.subr.bf16.mxu0 0
        %1044 = vmatpush1.bf16.msra.mxu0 0
        %1045 = vmatprep.subr.bf16.mxu0 0
        %1046 = vmatpush1.bf16.msra.mxu0 0
        %1047 = vmatprep.subr.bf16.mxu0 0
        %1048 = vmatpush1.bf16.msra.mxu0 0
        %1049 = vmatprep.subr.bf16.mxu0 0
        %1050 = vmatpush1.bf16.msra.mxu0 0
        %1051 = vmatprep.subr.bf16.mxu0 0
        %1052 = vmatpush1.bf16.msra.mxu0 %v1035
        %1053 = vmatprep.subr.bf16.mxu0 0
        %1054 = vmatpush2.bf16.msra.mxu0 0
        %1055 = vmatprep.subr.bf16.mxu0 0
        %1056 = vmatpush2.bf16.msra.mxu0 0
        %1057 = vmatprep.subr.bf16.mxu0 0
        %1058 = vmatpush2.bf16.msra.mxu0 0
        %1059 = vmatprep.subr.bf16.mxu0 0
        %1060 = vmatpush2.bf16.msra.mxu0 0
        %1061 = vmatprep.subr.bf16.mxu0 0
        %1062 = vmatpush2.bf16.msra.mxu0 0
        %1063 = vmatprep.subr.bf16.mxu0 0
        %1064 = vmatpush2.bf16.msra.mxu0 0
        %1065 = vmatprep.subr.bf16.mxu0 0
        %1066 = vmatpush2.bf16.msra.mxu0 0
        %1067 = vmatprep.subr.bf16.mxu0 0
        %1068 = vmatpush2.bf16.msra.mxu0 0
        %1069 = vmatprep.mubr.bf16.mxu0 0
        %1070 = vmatmul.mubr.bf16.gmra.mxu0 %v890
        %v1071 = vpop.f32.mrf.mxu0
        %v1072 = vadd.f32 0.0, %v1071
        %v1073 = vpop.f32.mrf.mxu0
        %v1074 = vpop.f32.mrf.mxu0
        %v1075 = vadd.f32 0.0, %v1074
        %v1076 = vpop.f32.mrf.mxu0
        %1077 = vmatprep.mubr.bf16.mxu0 0
        %1078 = vmatmul.mubr.bf16.gmra.mxu0 %v893
        %v1079 = vpop.f32.mrf.mxu0
        %v1080 = vadd.f32 0.0, %v1079
        %v1081 = vpop.f32.mrf.mxu0
        %v1082 = vpop.f32.mrf.mxu0
        %v1083 = vadd.f32 0.0, %v1082
        %v1084 = vpop.f32.mrf.mxu0
        %1085 = vmatprep.mubr.bf16.mxu0 0
        %1086 = vmatmul.mubr.bf16.gmra.mxu0 %v896
        %v1087 = vpop.f32.mrf.mxu0
        %v1088 = vadd.f32 0.0, %v1087
        %v1089 = vpop.f32.mrf.mxu0
        %v1090 = vpop.f32.mrf.mxu0
        %v1091 = vadd.f32 0.0, %v1090
        %v1092 = vpop.f32.mrf.mxu0
        %1093 = vmatprep.mubr.bf16.mxu0 0
        %1094 = vmatmul.mubr.bf16.gmra.mxu0 %v899
        %v1095 = vpop.f32.mrf.mxu0
        %v1096 = vadd.f32 0.0, %v1095
        %v1097 = vpop.f32.mrf.mxu0
        %v1098 = vpop.f32.mrf.mxu0
        %v1099 = vadd.f32 0.0, %v1098
        %v1100 = vpop.f32.mrf.mxu0
        %1101 = vmatprep.mubr.bf16.mxu0 0
        %1102 = vmatmul.mubr.bf16.gmra.mxu0 %v902
        %v1103 = vpop.f32.mrf.mxu0
        %v1104 = vadd.f32 0.0, %v1103
        %v1105 = vpop.f32.mrf.mxu0
        %v1106 = vpop.f32.mrf.mxu0
        %v1107 = vadd.f32 0.0, %v1106
        %v1108 = vpop.f32.mrf.mxu0
        %1109 = vmatprep.mubr.bf16.mxu0 0
        %1110 = vmatmul.mubr.bf16.gmra.mxu0 %v905
        %v1111 = vpop.f32.mrf.mxu0
        %v1112 = vadd.f32 0.0, %v1111
        %v1113 = vpop.f32.mrf.mxu0
        %v1114 = vpop.f32.mrf.mxu0
        %v1115 = vadd.f32 0.0, %v1114
        %v1116 = vpop.f32.mrf.mxu0
        %1117 = vmatprep.mubr.bf16.mxu0 0
        %1118 = vmatmul.mubr.bf16.gmra.mxu0 %v908
        %v1119 = vpop.f32.mrf.mxu0
        %v1120 = vadd.f32 0.0, %v1119
        %v1121 = vpop.f32.mrf.mxu0
        %v1122 = vpop.f32.mrf.mxu0
        %v1123 = vadd.f32 0.0, %v1122
        %v1124 = vpop.f32.mrf.mxu0
        %1125 = vmatprep.mubr.bf16.mxu0 0
        %1126 = vmatmul.mubr.bf16.gmra.mxu0 %v911
        %v1127 = vpop.f32.mrf.mxu0
        %v1128 = vadd.f32 0.0, %v1127
        %v1129 = vpop.f32.mrf.mxu0
        %v1130 = vpop.f32.mrf.mxu0
        %v1131 = vadd.f32 0.0, %v1130
        %v1132 = vpop.f32.mrf.mxu0
        %1133 = vmatprep.mubr.bf16.mxu0 0
        %1134 = vmatmul.mubr.bf16.gmra.mxu0 %v914
        %v1135 = vpop.f32.mrf.mxu0
        %v1136 = vadd.f32 0.0, %v1135
        %v1137 = vpop.f32.mrf.mxu0
        %v1138 = vpop.f32.mrf.mxu0
        %v1139 = vadd.f32 0.0, %v1138
        %v1140 = vpop.f32.mrf.mxu0
        %1141 = vmatprep.mubr.bf16.mxu0 0
        %1142 = vmatmul.mubr.bf16.gmra.mxu0 %v917
        %v1143 = vpop.f32.mrf.mxu0
        %v1144 = vadd.f32 0.0, %v1143
        %v1145 = vpop.f32.mrf.mxu0
        %v1146 = vpop.f32.mrf.mxu0
        %v1147 = vadd.f32 0.0, %v1146
        %v1148 = vpop.f32.mrf.mxu0
        %1149 = vmatprep.mubr.bf16.mxu0 0
        %1150 = vmatmul.mubr.bf16.gmra.mxu0 %v920
        %v1151 = vpop.f32.mrf.mxu0
        %v1152 = vadd.f32 0.0, %v1151
        %v1153 = vpop.f32.mrf.mxu0
        %v1154 = vpop.f32.mrf.mxu0
        %v1155 = vadd.f32 0.0, %v1154
        %v1156 = vpop.f32.mrf.mxu0
        %1157 = vmatprep.mubr.bf16.mxu0 0
        %1158 = vmatmul.mubr.bf16.gmra.mxu0 %v923
        %v1159 = vpop.f32.mrf.mxu0
        %v1160 = vadd.f32 0.0, %v1159
        %v1161 = vpop.f32.mrf.mxu0
        %v1162 = vpop.f32.mrf.mxu0
        %v1163 = vadd.f32 0.0, %v1162
        %v1164 = vpop.f32.mrf.mxu0
        %1165 = vmatprep.mubr.bf16.mxu0 0
        %1166 = vmatmul.mubr.bf16.gmra.mxu0 %v926
        %v1167 = vpop.f32.mrf.mxu0
        %v1168 = vadd.f32 0.0, %v1167
        %v1169 = vpop.f32.mrf.mxu0
        %v1170 = vpop.f32.mrf.mxu0
        %v1171 = vadd.f32 0.0, %v1170
        %v1172 = vpop.f32.mrf.mxu0
        %1173 = vmatprep.mubr.bf16.mxu0 0
        %1174 = vmatmul.mubr.bf16.gmra.mxu0 %v929
        %v1175 = vpop.f32.mrf.mxu0
        %v1176 = vadd.f32 0.0, %v1175
        %v1177 = vpop.f32.mrf.mxu0
        %v1178 = vpop.f32.mrf.mxu0
        %v1179 = vadd.f32 0.0, %v1178
        %v1180 = vpop.f32.mrf.mxu0
        %1181 = vmatprep.mubr.bf16.mxu0 0
        %1182 = vmatmul.mubr.bf16.gmra.mxu0 %v932
        %v1183 = vpop.f32.mrf.mxu0
        %v1184 = vadd.f32 0.0, %v1183
        %v1185 = vpop.f32.mrf.mxu0
        %v1186 = vpop.f32.mrf.mxu0
        %v1187 = vadd.f32 0.0, %v1186
        %v1188 = vpop.f32.mrf.mxu0
        %1189 = vmatprep.mubr.bf16.mxu0 0
        %1190 = vmatmul.mubr.bf16.gmra.mxu0 %v935
        %v1191 = vpop.f32.mrf.mxu0
        %v1192 = vadd.f32 0.0, %v1191
        %v1193 = vpop.f32.mrf.mxu0
        %v1194 = vpop.f32.mrf.mxu0
        %v1195 = vadd.f32 0.0, %v1194
        %v1196 = vpop.f32.mrf.mxu0
        %1197 = vmatprep.mubr.bf16.mxu0 0
        %1198 = vmatmul.mubr.bf16.gmra.mxu0 %v938
        %v1199 = vpop.f32.mrf.mxu0
        %v1200 = vadd.f32 0.0, %v1199
        %v1201 = vpop.f32.mrf.mxu0
        %v1202 = vpop.f32.mrf.mxu0
        %v1203 = vadd.f32 0.0, %v1202
        %v1204 = vpop.f32.mrf.mxu0
        %1205 = vmatprep.mubr.bf16.mxu0 0
        %1206 = vmatmul.mubr.bf16.gmra.mxu0 %v941
        %v1207 = vpop.f32.mrf.mxu0
        %v1208 = vadd.f32 0.0, %v1207
        %v1209 = vpop.f32.mrf.mxu0
        %v1210 = vpop.f32.mrf.mxu0
        %v1211 = vadd.f32 0.0, %v1210
        %v1212 = vpop.f32.mrf.mxu0
        %1213 = vmatprep.mubr.bf16.mxu0 0
        %1214 = vmatmul.mubr.bf16.gmra.mxu0 %v944
        %v1215 = vpop.f32.mrf.mxu0
        %v1216 = vadd.f32 0.0, %v1215
        %v1217 = vpop.f32.mrf.mxu0
        %v1218 = vpop.f32.mrf.mxu0
        %v1219 = vadd.f32 0.0, %v1218
        %v1220 = vpop.f32.mrf.mxu0
        %1221 = vmatprep.mubr.bf16.mxu0 0
        %1222 = vmatmul.mubr.bf16.gmra.mxu0 %v947
        %v1223 = vpop.f32.mrf.mxu0
        %v1224 = vadd.f32 0.0, %v1223
        %v1225 = vpop.f32.mrf.mxu0
        %v1226 = vpop.f32.mrf.mxu0
        %v1227 = vadd.f32 0.0, %v1226
        %v1228 = vpop.f32.mrf.mxu0
        %1229 = vmatprep.mubr.bf16.mxu0 0
        %1230 = vmatmul.mubr.bf16.gmra.mxu0 %v950
        %v1231 = vpop.f32.mrf.mxu0
        %v1232 = vadd.f32 0.0, %v1231
        %v1233 = vpop.f32.mrf.mxu0
        %v1234 = vpop.f32.mrf.mxu0
        %v1235 = vadd.f32 0.0, %v1234
        %v1236 = vpop.f32.mrf.mxu0
        %1237 = vmatprep.mubr.bf16.mxu0 0
        %1238 = vmatmul.mubr.bf16.gmra.mxu0 %v953
        %v1239 = vpop.f32.mrf.mxu0
        %v1240 = vadd.f32 0.0, %v1239
        %v1241 = vpop.f32.mrf.mxu0
        %v1242 = vpop.f32.mrf.mxu0
        %v1243 = vadd.f32 0.0, %v1242
        %v1244 = vpop.f32.mrf.mxu0
        %1245 = vmatprep.mubr.bf16.mxu0 0
        %1246 = vmatmul.mubr.bf16.gmra.mxu0 %v956
        %v1247 = vpop.f32.mrf.mxu0
        %v1248 = vadd.f32 0.0, %v1247
        %v1249 = vpop.f32.mrf.mxu0
        %v1250 = vpop.f32.mrf.mxu0
        %v1251 = vadd.f32 0.0, %v1250
        %v1252 = vpop.f32.mrf.mxu0
        %1253 = vmatprep.mubr.bf16.mxu0 0
        %1254 = vmatmul.mubr.bf16.gmra.mxu0 %v959
        %v1255 = vpop.f32.mrf.mxu0
        %v1256 = vadd.f32 0.0, %v1255
        %v1257 = vpop.f32.mrf.mxu0
        %v1258 = vpop.f32.mrf.mxu0
        %v1259 = vadd.f32 0.0, %v1258
        %v1260 = vpop.f32.mrf.mxu0
        %1261 = vmatprep.mubr.bf16.mxu0 0
        %1262 = vmatmul.mubr.bf16.gmra.mxu0 %v962
        %v1263 = vpop.f32.mrf.mxu0
        %v1264 = vadd.f32 0.0, %v1263
        %v1265 = vpop.f32.mrf.mxu0
        %v1266 = vpop.f32.mrf.mxu0
        %v1267 = vadd.f32 0.0, %v1266
        %v1268 = vpop.f32.mrf.mxu0
        %1269 = vmatprep.mubr.bf16.mxu0 0
        %1270 = vmatmul.mubr.bf16.gmra.mxu0 %v965
        %v1271 = vpop.f32.mrf.mxu0
        %v1272 = vadd.f32 0.0, %v1271
        %v1273 = vpop.f32.mrf.mxu0
        %v1274 = vpop.f32.mrf.mxu0
        %v1275 = vadd.f32 0.0, %v1274
        %v1276 = vpop.f32.mrf.mxu0
        %1277 = vmatprep.mubr.bf16.mxu0 0
        %1278 = vmatmul.mubr.bf16.gmra.mxu0 %v968
        %v1279 = vpop.f32.mrf.mxu0
        %v1280 = vadd.f32 0.0, %v1279
        %v1281 = vpop.f32.mrf.mxu0
        %v1282 = vpop.f32.mrf.mxu0
        %v1283 = vadd.f32 0.0, %v1282
        %v1284 = vpop.f32.mrf.mxu0
        %1285 = vmatprep.mubr.bf16.mxu0 0
        %1286 = vmatmul.mubr.bf16.gmra.mxu0 %v971
        %v1287 = vpop.f32.mrf.mxu0
        %v1288 = vadd.f32 0.0, %v1287
        %v1289 = vpop.f32.mrf.mxu0
        %v1290 = vpop.f32.mrf.mxu0
        %v1291 = vadd.f32 0.0, %v1290
        %v1292 = vpop.f32.mrf.mxu0
        %1293 = vmatprep.mubr.bf16.mxu0 0
        %1294 = vmatmul.mubr.bf16.gmra.mxu0 %v974
        %v1295 = vpop.f32.mrf.mxu0
        %v1296 = vadd.f32 0.0, %v1295
        %v1297 = vpop.f32.mrf.mxu0
        %v1298 = vpop.f32.mrf.mxu0
        %v1299 = vadd.f32 0.0, %v1298
        %v1300 = vpop.f32.mrf.mxu0
        %1301 = vmatprep.mubr.bf16.mxu0 0
        %1302 = vmatmul.mubr.bf16.gmra.mxu0 %v977
        %v1303 = vpop.f32.mrf.mxu0
        %v1304 = vadd.f32 0.0, %v1303
        %v1305 = vpop.f32.mrf.mxu0
        %v1306 = vpop.f32.mrf.mxu0
        %v1307 = vadd.f32 0.0, %v1306
        %v1308 = vpop.f32.mrf.mxu0
        %1309 = vmatprep.mubr.bf16.mxu0 0
        %1310 = vmatmul.mubr.bf16.gmra.mxu0 %v980
        %v1311 = vpop.f32.mrf.mxu0
        %v1312 = vadd.f32 0.0, %v1311
        %v1313 = vpop.f32.mrf.mxu0
        %v1314 = vpop.f32.mrf.mxu0
        %v1315 = vadd.f32 0.0, %v1314
        %v1316 = vpop.f32.mrf.mxu0
        %1317 = vmatprep.mubr.bf16.mxu0 0
        %1318 = vmatmul.mubr.bf16.gmra.mxu0 %v983
        %v1319 = vpop.f32.mrf.mxu0
        %v1320 = vadd.f32 0.0, %v1319
        %v1321 = vpop.f32.mrf.mxu0
        %v1322 = vpop.f32.mrf.mxu0
        %v1323 = vadd.f32 0.0, %v1322
        %v1324 = vpop.f32.mrf.mxu0
        %1325 = vmatprep.mubr.bf16.mxu0 0
        %1326 = vmatmul.mubr.bf16.gmra.mxu0 %v986
        %v1327 = vpop.f32.mrf.mxu0
        %v1328 = vadd.f32 0.0, %v1327
        %v1329 = vpop.f32.mrf.mxu0
        %v1330 = vpop.f32.mrf.mxu0
        %v1331 = vadd.f32 0.0, %v1330
        %v1332 = vpop.f32.mrf.mxu0
        %1333 = vmatprep.mubr.bf16.mxu0 0
        %1334 = vmatmul.mubr.bf16.gmra.mxu0 %v989
        %v1335 = vpop.f32.mrf.mxu0
        %v1336 = vadd.f32 0.0, %v1335
        %v1337 = vpop.f32.mrf.mxu0
        %v1338 = vpop.f32.mrf.mxu0
        %v1339 = vadd.f32 0.0, %v1338
        %v1340 = vpop.f32.mrf.mxu0
        %1341 = vmatprep.mubr.bf16.mxu0 0
        %1342 = vmatmul.mubr.bf16.gmra.mxu0 %v992
        %v1343 = vpop.f32.mrf.mxu0
        %v1344 = vadd.f32 0.0, %v1343
        %v1345 = vpop.f32.mrf.mxu0
        %v1346 = vpop.f32.mrf.mxu0
        %v1347 = vadd.f32 0.0, %v1346
        %v1348 = vpop.f32.mrf.mxu0
        %1349 = vmatprep.mubr.bf16.mxu0 0
        %1350 = vmatmul.mubr.bf16.gmra.mxu0 %v995
        %v1351 = vpop.f32.mrf.mxu0
        %v1352 = vadd.f32 0.0, %v1351
        %v1353 = vpop.f32.mrf.mxu0
        %v1354 = vpop.f32.mrf.mxu0
        %v1355 = vadd.f32 0.0, %v1354
        %v1356 = vpop.f32.mrf.mxu0
        %1357 = vmatprep.mubr.bf16.mxu0 0
        %1358 = vmatmul.mubr.bf16.gmra.mxu0 %v998
        %v1359 = vpop.f32.mrf.mxu0
        %v1360 = vadd.f32 0.0, %v1359
        %v1361 = vpop.f32.mrf.mxu0
        %v1362 = vpop.f32.mrf.mxu0
        %v1363 = vadd.f32 0.0, %v1362
        %v1364 = vpop.f32.mrf.mxu0
        %1365 = vmatprep.mubr.bf16.mxu0 0
        %1366 = vmatmul.mubr.bf16.gmra.mxu0 %v1001
        %v1367 = vpop.f32.mrf.mxu0
        %v1368 = vadd.f32 0.0, %v1367
        %v1369 = vpop.f32.mrf.mxu0
        %v1370 = vpop.f32.mrf.mxu0
        %v1371 = vadd.f32 0.0, %v1370
        %v1372 = vpop.f32.mrf.mxu0
        %1373 = vmatprep.mubr.bf16.mxu0 0
        %1374 = vmatmul.mubr.bf16.gmra.mxu0 %v1004
        %v1375 = vpop.f32.mrf.mxu0
        %v1376 = vadd.f32 0.0, %v1375
        %v1377 = vpop.f32.mrf.mxu0
        %v1378 = vpop.f32.mrf.mxu0
        %v1379 = vadd.f32 0.0, %v1378
        %v1380 = vpop.f32.mrf.mxu0
        %1381 = vmatprep.mubr.bf16.mxu0 0
        %1382 = vmatmul.mubr.bf16.gmra.mxu0 %v1007
        %v1383 = vpop.f32.mrf.mxu0
        %v1384 = vadd.f32 0.0, %v1383
        %v1385 = vpop.f32.mrf.mxu0
        %v1386 = vpop.f32.mrf.mxu0
        %v1387 = vadd.f32 0.0, %v1386
        %v1388 = vpop.f32.mrf.mxu0
        %1389 = vmatprep.mubr.bf16.mxu0 0
        %1390 = vmatmul.mubr.bf16.gmra.mxu0 %v1010
        %v1391 = vpop.f32.mrf.mxu0
        %v1392 = vadd.f32 0.0, %v1391
        %v1393 = vpop.f32.mrf.mxu0
        %v1394 = vpop.f32.mrf.mxu0
        %v1395 = vadd.f32 0.0, %v1394
        %v1396 = vpop.f32.mrf.mxu0
        %1397 = vmatprep.mubr.bf16.mxu0 0
        %1398 = vmatmul.mubr.bf16.gmra.mxu0 %v1013
        %v1399 = vpop.f32.mrf.mxu0
        %v1400 = vadd.f32 0.0, %v1399
        %v1401 = vpop.f32.mrf.mxu0
        %v1402 = vpop.f32.mrf.mxu0
        %v1403 = vadd.f32 0.0, %v1402
        %v1404 = vpop.f32.mrf.mxu0
        %1405 = vmatprep.mubr.bf16.mxu0 0
        %1406 = vmatmul.mubr.bf16.gmra.mxu0 %v1016
        %v1407 = vpop.f32.mrf.mxu0
        %v1408 = vadd.f32 0.0, %v1407
        %v1409 = vpop.f32.mrf.mxu0
        %v1410 = vpop.f32.mrf.mxu0
        %v1411 = vadd.f32 0.0, %v1410
        %v1412 = vpop.f32.mrf.mxu0
        %1413 = vmatprep.mubr.bf16.mxu0 0
        %1414 = vmatmul.mubr.bf16.gmra.mxu0 %v1019
        %v1415 = vpop.f32.mrf.mxu0
        %v1416 = vadd.f32 0.0, %v1415
        %v1417 = vpop.f32.mrf.mxu0
        %v1418 = vpop.f32.mrf.mxu0
        %v1419 = vadd.f32 0.0, %v1418
        %v1420 = vpop.f32.mrf.mxu0
        %1421 = vmatprep.mubr.bf16.mxu0 0
        %1422 = vmatmul.mubr.bf16.gmra.mxu0 %v1022
        %v1423 = vpop.f32.mrf.mxu0
        %v1424 = vadd.f32 0.0, %v1423
        %v1425 = vpop.f32.mrf.mxu0
        %v1426 = vpop.f32.mrf.mxu0
        %v1427 = vadd.f32 0.0, %v1426
        %v1428 = vpop.f32.mrf.mxu0
        %1429 = vmatprep.mubr.bf16.mxu0 0
        %1430 = vmatmul.mubr.bf16.gmra.mxu0 %v1025
        %v1431 = vpop.f32.mrf.mxu0
        %v1432 = vadd.f32 0.0, %v1431
        %v1433 = vpop.f32.mrf.mxu0
        %v1434 = vpop.f32.mrf.mxu0
        %v1435 = vadd.f32 0.0, %v1434
        %v1436 = vpop.f32.mrf.mxu0
        %1437 = vmatprep.mubr.bf16.mxu0 0
        %1438 = vmatmul.mubr.bf16.gmra.mxu0 %v1028
        %v1439 = vpop.f32.mrf.mxu0
        %v1440 = vadd.f32 0.0, %v1439
        %v1441 = vpop.f32.mrf.mxu0
        %v1442 = vpop.f32.mrf.mxu0
        %v1443 = vadd.f32 0.0, %v1442
        %v1444 = vpop.f32.mrf.mxu0
        %1445 = vmatprep.mubr.bf16.mxu0 0
        %1446 = vmatmul.mubr.bf16.gmra.mxu0 %v1031
        %v1447 = vpop.f32.mrf.mxu0
        %v1448 = vadd.f32 0.0, %v1447
        %v1449 = vpop.f32.mrf.mxu0
        %v1450 = vpop.f32.mrf.mxu0
        %v1451 = vadd.f32 0.0, %v1450
        %v1452 = vpop.f32.mrf.mxu0
        %1453 = vdwg.mxu0
        %v1550 = vunpack.c.l.b16 %v453
        %v1551 = vunpack.c.l.b16 %v454
        %v1552 = vunpack.c.l.b16 %v455
        %v1553 = vunpack.c.l.b16 %v456
        %v1554 = vunpack.c.l.b16 %v457
        %v1555 = vunpack.c.l.b16 %v458
        %v1556 = vunpack.c.l.b16 %v459
        %v1557 = vunpack.c.l.b16 %v460
        %v1558 = vunpack.c.l.b16 %v461
        %v1559 = vunpack.c.l.b16 %v462
        %v1560 = vunpack.c.l.b16 %v463
        %v1561 = vunpack.c.l.b16 %v464
        %v1562 = vunpack.c.l.b16 %v465
        %v1563 = vunpack.c.l.b16 %v466
        %v1564 = vunpack.c.l.b16 %v467
        %v1565 = vunpack.c.l.b16 %v468
        %v1566 = vunpack.c.l.b16 %v469
        %v1567 = vunpack.c.l.b16 %v470
        %v1568 = vunpack.c.l.b16 %v471
        %v1569 = vunpack.c.l.b16 %v472
        %v1570 = vunpack.c.l.b16 %v473
        %v1571 = vunpack.c.l.b16 %v474
        %v1572 = vunpack.c.l.b16 %v475
        %v1573 = vunpack.c.l.b16 %v476
        %v1574 = vunpack.c.l.b16 %v477
        %v1575 = vunpack.c.l.b16 %v478
        %v1576 = vunpack.c.l.b16 %v479
        %v1577 = vunpack.c.l.b16 %v480
        %v1578 = vunpack.c.l.b16 %v481
        %v1579 = vunpack.c.l.b16 %v482
        %v1580 = vunpack.c.l.b16 %v483
        %v1581 = vunpack.c.l.b16 %v484
        %v1582 = vunpack.c.l.b16 %v485
        %v1583 = vunpack.c.l.b16 %v486
        %v1584 = vunpack.c.l.b16 %v487
        %v1585 = vunpack.c.l.b16 %v488
        %v1586 = vunpack.c.l.b16 %v489
        %v1587 = vunpack.c.l.b16 %v490
        %v1588 = vunpack.c.l.b16 %v491
        %v1589 = vunpack.c.l.b16 %v492
        %v1590 = vunpack.c.l.b16 %v493
        %v1591 = vunpack.c.l.b16 %v494
        %v1592 = vunpack.c.l.b16 %v495
        %v1593 = vunpack.c.l.b16 %v496
        %v1594 = vunpack.c.l.b16 %v497
        %v1595 = vunpack.c.l.b16 %v498
        %v1596 = vunpack.c.l.b16 %v499
        %v1597 = vunpack.c.l.b16 %v500
        %v1598 = vunpack.c.l.b16 %v501
        %v1599 = vunpack.c.l.b16 %v502
        %v1600 = vunpack.c.l.b16 %v503
        %v1601 = vunpack.c.l.b16 %v504
        %v1602 = vunpack.c.l.b16 %v505
        %v1603 = vunpack.c.l.b16 %v506
        %v1604 = vunpack.c.l.b16 %v507
        %v1605 = vunpack.c.l.b16 %v508
        %v1606 = vunpack.c.l.b16 %v509
        %v1607 = vunpack.c.l.b16 %v510
        %v1608 = vunpack.c.l.b16 %v511
        %v1609 = vunpack.c.l.b16 %v512
        %v1610 = vunpack.c.l.b16 %v513
        %v1611 = vunpack.c.l.b16 %v514
        %v1612 = vunpack.c.l.b16 %v515
        %v1613 = vunpack.c.l.b16 %v516
        %v1614 = vunpack.c.l.b16 %v517
        %v1615 = vunpack.c.l.b16 %v518
        %v1616 = vunpack.c.l.b16 %v519
        %v1617 = vunpack.c.l.b16 %v520
        %v1618 = vunpack.c.l.b16 %v521
        %v1619 = vunpack.c.l.b16 %v522
        %v1620 = vunpack.c.l.b16 %v523
        %v1621 = vunpack.c.l.b16 %v524
        %v1622 = vunpack.c.l.b16 %v525
        %v1623 = vunpack.c.l.b16 %v526
        %v1624 = vunpack.c.l.b16 %v527
        %v1625 = vunpack.c.l.b16 %v528
        %v1626 = vunpack.c.l.b16 %v529
        %v1627 = vunpack.c.l.b16 %v530
        %v1628 = vunpack.c.l.b16 %v531
        %v1629 = vunpack.c.l.b16 %v532
        %v1630 = vunpack.c.l.b16 %v533
        %v1631 = vunpack.c.l.b16 %v534
        %v1632 = vunpack.c.l.b16 %v535
        %v1633 = vunpack.c.l.b16 %v536
        %v1634 = vunpack.c.l.b16 %v537
        %v1635 = vunpack.c.l.b16 %v538
        %v1636 = vunpack.c.l.b16 %v539
        %v1637 = vunpack.c.l.b16 %v540
        %v1638 = vunpack.c.l.b16 %v541
        %v1639 = vunpack.c.l.b16 %v542
        %v1640 = vunpack.c.l.b16 %v543
        %v1641 = vunpack.c.l.b16 %v544
        %v1642 = vunpack.c.l.b16 %v545
        %v1643 = vunpack.c.l.b16 %v546
        %v1644 = vunpack.c.l.b16 %v547
        %v1645 = vunpack.c.l.b16 %v548
        %v1646 = vpack.c.b16 %v1551, %v1550
        %v1647 = vpack.c.b16 %v1553, %v1552
        %v1648 = vpack.c.b16 %v1555, %v1554
        %v1649 = vpack.c.b16 %v1557, %v1556
        %v1650 = vpack.c.b16 %v1559, %v1558
        %v1651 = vpack.c.b16 %v1561, %v1560
        %v1652 = vpack.c.b16 %v1563, %v1562
        %v1653 = vpack.c.b16 %v1565, %v1564
        %v1654 = vpack.c.b16 %v1567, %v1566
        %v1655 = vpack.c.b16 %v1569, %v1568
        %v1656 = vpack.c.b16 %v1571, %v1570
        %v1657 = vpack.c.b16 %v1573, %v1572
        %v1658 = vpack.c.b16 %v1575, %v1574
        %v1659 = vpack.c.b16 %v1577, %v1576
        %v1660 = vpack.c.b16 %v1579, %v1578
        %v1661 = vpack.c.b16 %v1581, %v1580
        %v1662 = vpack.c.b16 %v1583, %v1582
        %v1663 = vpack.c.b16 %v1585, %v1584
        %v1664 = vpack.c.b16 %v1587, %v1586
        %v1665 = vpack.c.b16 %v1589, %v1588
        %v1666 = vpack.c.b16 %v1591, %v1590
        %v1667 = vpack.c.b16 %v1593, %v1592
        %v1668 = vpack.c.b16 %v1595, %v1594
        %v1669 = vpack.c.b16 %v1597, %v1596
        %v1670 = vpack.c.b16 %v1599, %v1598
        %v1671 = vpack.c.b16 %v1601, %v1600
        %v1672 = vpack.c.b16 %v1603, %v1602
        %v1673 = vpack.c.b16 %v1605, %v1604
        %v1674 = vpack.c.b16 %v1607, %v1606
        %v1675 = vpack.c.b16 %v1609, %v1608
        %v1676 = vpack.c.b16 %v1611, %v1610
        %v1677 = vpack.c.b16 %v1613, %v1612
        %v1678 = vpack.c.b16 %v1615, %v1614
        %v1679 = vpack.c.b16 %v1617, %v1616
        %v1680 = vpack.c.b16 %v1619, %v1618
        %v1681 = vpack.c.b16 %v1621, %v1620
        %v1682 = vpack.c.b16 %v1623, %v1622
        %v1683 = vpack.c.b16 %v1625, %v1624
        %v1684 = vpack.c.b16 %v1627, %v1626
        %v1685 = vpack.c.b16 %v1629, %v1628
        %v1686 = vpack.c.b16 %v1631, %v1630
        %v1687 = vpack.c.b16 %v1633, %v1632
        %v1688 = vpack.c.b16 %v1635, %v1634
        %v1689 = vpack.c.b16 %v1637, %v1636
        %v1690 = vpack.c.b16 %v1639, %v1638
        %v1691 = vpack.c.b16 %v1641, %v1640
        %v1692 = vpack.c.b16 %v1643, %v1642
        %v1693 = vpack.c.b16 %v1645, %v1644
        %v1696 = vunpack.c.l.b16 %v549
        %v1697 = vunpack.c.l.b16 %v550
        %v1698 = vpack.c.b16 %v1697, %v1696
        %vm1700 = vcmask 130048
        %v1702 = vsel %vm1700, %v1646, 0
        %v1705 = vsel %vm1700, %v1647, 0
        %v1708 = vsel %vm1700, %v1648, 0
        %v1711 = vsel %vm1700, %v1649, 0
        %v1714 = vsel %vm1700, %v1650, 0
        %v1717 = vsel %vm1700, %v1651, 0
        %v1720 = vsel %vm1700, %v1652, 0
        %v1723 = vsel %vm1700, %v1653, 0
        %v1726 = vsel %vm1700, %v1654, 0
        %v1729 = vsel %vm1700, %v1655, 0
        %v1732 = vsel %vm1700, %v1656, 0
        %v1735 = vsel %vm1700, %v1657, 0
        %v1738 = vsel %vm1700, %v1658, 0
        %v1741 = vsel %vm1700, %v1659, 0
        %v1744 = vsel %vm1700, %v1660, 0
        %v1747 = vsel %vm1700, %v1661, 0
        %v1750 = vsel %vm1700, %v1662, 0
        %v1753 = vsel %vm1700, %v1663, 0
        %v1756 = vsel %vm1700, %v1664, 0
        %v1759 = vsel %vm1700, %v1665, 0
        %v1762 = vsel %vm1700, %v1666, 0
        %v1765 = vsel %vm1700, %v1667, 0
        %v1768 = vsel %vm1700, %v1668, 0
        %v1771 = vsel %vm1700, %v1669, 0
        %v1774 = vsel %vm1700, %v1670, 0
        %v1777 = vsel %vm1700, %v1671, 0
        %v1780 = vsel %vm1700, %v1672, 0
        %v1783 = vsel %vm1700, %v1673, 0
        %v1786 = vsel %vm1700, %v1674, 0
        %v1789 = vsel %vm1700, %v1675, 0
        %v1792 = vsel %vm1700, %v1676, 0
        %v1795 = vsel %vm1700, %v1677, 0
        %v1798 = vsel %vm1700, %v1678, 0
        %v1801 = vsel %vm1700, %v1679, 0
        %v1804 = vsel %vm1700, %v1680, 0
        %v1807 = vsel %vm1700, %v1681, 0
        %v1810 = vsel %vm1700, %v1682, 0
        %v1813 = vsel %vm1700, %v1683, 0
        %v1816 = vsel %vm1700, %v1684, 0
        %v1819 = vsel %vm1700, %v1685, 0
        %v1822 = vsel %vm1700, %v1686, 0
        %v1825 = vsel %vm1700, %v1687, 0
        %v1828 = vsel %vm1700, %v1688, 0
        %v1831 = vsel %vm1700, %v1689, 0
        %v1834 = vsel %vm1700, %v1690, 0
        %v1837 = vsel %vm1700, %v1691, 0
        %v1840 = vsel %vm1700, %v1692, 0
        %v1843 = vsel %vm1700, %v1693, 0
        %1845 = vmatprep.subr.bf16.mxu0 0
        %1846 = vmatpush1.bf16.msra.mxu0 0
        %1847 = vmatprep.subr.bf16.mxu0 0
        %1848 = vmatpush1.bf16.msra.mxu0 0
        %1849 = vmatprep.subr.bf16.mxu0 0
        %1850 = vmatpush1.bf16.msra.mxu0 0
        %1851 = vmatprep.subr.bf16.mxu0 0
        %1852 = vmatpush1.bf16.msra.mxu0 0
        %1853 = vmatprep.subr.bf16.mxu0 0
        %1854 = vmatpush1.bf16.msra.mxu0 0
        %1855 = vmatprep.subr.bf16.mxu0 0
        %1856 = vmatpush1.bf16.msra.mxu0 0
        %1857 = vmatprep.subr.bf16.mxu0 0
        %1858 = vmatpush1.bf16.msra.mxu0 0
        %1859 = vmatprep.subr.bf16.mxu0 0
        %1860 = vmatpush1.bf16.msra.mxu0 %v1698
        %1861 = vmatprep.subr.bf16.mxu0 0
        %1862 = vmatpush2.bf16.msra.mxu0 0
        %1863 = vmatprep.subr.bf16.mxu0 0
        %1864 = vmatpush2.bf16.msra.mxu0 0
        %1865 = vmatprep.subr.bf16.mxu0 0
        %1866 = vmatpush2.bf16.msra.mxu0 0
        %1867 = vmatprep.subr.bf16.mxu0 0
        %1868 = vmatpush2.bf16.msra.mxu0 0
        %1869 = vmatprep.subr.bf16.mxu0 0
        %1870 = vmatpush2.bf16.msra.mxu0 0
        %1871 = vmatprep.subr.bf16.mxu0 0
        %1872 = vmatpush2.bf16.msra.mxu0 0
        %1873 = vmatprep.subr.bf16.mxu0 0
        %1874 = vmatpush2.bf16.msra.mxu0 0
        %1875 = vmatprep.subr.bf16.mxu0 0
        %1876 = vmatpush2.bf16.msra.mxu0 0
        %1877 = vmatprep.mubr.bf16.mxu0 0
        %1878 = vmatmul.mubr.bf16.gmra.mxu0 %v1702
        %v1879 = vpop.f32.mrf.mxu0
        %v1880 = vadd.f32 %v1072, %v1879
        %v1881 = vpop.f32.mrf.mxu0
        %v1882 = vpop.f32.mrf.mxu0
        %v1883 = vadd.f32 %v1075, %v1882
        %v1884 = vpop.f32.mrf.mxu0
        %1885 = vmatprep.mubr.bf16.mxu0 0
        %1886 = vmatmul.mubr.bf16.gmra.mxu0 %v1705
        %v1887 = vpop.f32.mrf.mxu0
        %v1888 = vadd.f32 %v1080, %v1887
        %v1889 = vpop.f32.mrf.mxu0
        %v1890 = vpop.f32.mrf.mxu0
        %v1891 = vadd.f32 %v1083, %v1890
        %v1892 = vpop.f32.mrf.mxu0
        %1893 = vmatprep.mubr.bf16.mxu0 0
        %1894 = vmatmul.mubr.bf16.gmra.mxu0 %v1708
        %v1895 = vpop.f32.mrf.mxu0
        %v1896 = vadd.f32 %v1088, %v1895
        %v1897 = vpop.f32.mrf.mxu0
        %v1898 = vpop.f32.mrf.mxu0
        %v1899 = vadd.f32 %v1091, %v1898
        %v1900 = vpop.f32.mrf.mxu0
        %1901 = vmatprep.mubr.bf16.mxu0 0
        %1902 = vmatmul.mubr.bf16.gmra.mxu0 %v1711
        %v1903 = vpop.f32.mrf.mxu0
        %v1904 = vadd.f32 %v1096, %v1903
        %v1905 = vpop.f32.mrf.mxu0
        %v1906 = vpop.f32.mrf.mxu0
        %v1907 = vadd.f32 %v1099, %v1906
        %v1908 = vpop.f32.mrf.mxu0
        %1909 = vmatprep.mubr.bf16.mxu0 0
        %1910 = vmatmul.mubr.bf16.gmra.mxu0 %v1714
        %v1911 = vpop.f32.mrf.mxu0
        %v1912 = vadd.f32 %v1104, %v1911
        %v1913 = vpop.f32.mrf.mxu0
        %v1914 = vpop.f32.mrf.mxu0
        %v1915 = vadd.f32 %v1107, %v1914
        %v1916 = vpop.f32.mrf.mxu0
        %1917 = vmatprep.mubr.bf16.mxu0 0
        %1918 = vmatmul.mubr.bf16.gmra.mxu0 %v1717
        %v1919 = vpop.f32.mrf.mxu0
        %v1920 = vadd.f32 %v1112, %v1919
        %v1921 = vpop.f32.mrf.mxu0
        %v1922 = vpop.f32.mrf.mxu0
        %v1923 = vadd.f32 %v1115, %v1922
        %v1924 = vpop.f32.mrf.mxu0
        %1925 = vmatprep.mubr.bf16.mxu0 0
        %1926 = vmatmul.mubr.bf16.gmra.mxu0 %v1720
        %v1927 = vpop.f32.mrf.mxu0
        %v1928 = vadd.f32 %v1120, %v1927
        %v1929 = vpop.f32.mrf.mxu0
        %v1930 = vpop.f32.mrf.mxu0
        %v1931 = vadd.f32 %v1123, %v1930
        %v1932 = vpop.f32.mrf.mxu0
        %1933 = vmatprep.mubr.bf16.mxu0 0
        %1934 = vmatmul.mubr.bf16.gmra.mxu0 %v1723
        %v1935 = vpop.f32.mrf.mxu0
        %v1936 = vadd.f32 %v1128, %v1935
        %v1937 = vpop.f32.mrf.mxu0
        %v1938 = vpop.f32.mrf.mxu0
        %v1939 = vadd.f32 %v1131, %v1938
        %v1940 = vpop.f32.mrf.mxu0
        %1941 = vmatprep.mubr.bf16.mxu0 0
        %1942 = vmatmul.mubr.bf16.gmra.mxu0 %v1726
        %v1943 = vpop.f32.mrf.mxu0
        %v1944 = vadd.f32 %v1136, %v1943
        %v1945 = vpop.f32.mrf.mxu0
        %v1946 = vpop.f32.mrf.mxu0
        %v1947 = vadd.f32 %v1139, %v1946
        %v1948 = vpop.f32.mrf.mxu0
        %1949 = vmatprep.mubr.bf16.mxu0 0
        %1950 = vmatmul.mubr.bf16.gmra.mxu0 %v1729
        %v1951 = vpop.f32.mrf.mxu0
        %v1952 = vadd.f32 %v1144, %v1951
        %v1953 = vpop.f32.mrf.mxu0
        %v1954 = vpop.f32.mrf.mxu0
        %v1955 = vadd.f32 %v1147, %v1954
        %v1956 = vpop.f32.mrf.mxu0
        %1957 = vmatprep.mubr.bf16.mxu0 0
        %1958 = vmatmul.mubr.bf16.gmra.mxu0 %v1732
        %v1959 = vpop.f32.mrf.mxu0
        %v1960 = vadd.f32 %v1152, %v1959
        %v1961 = vpop.f32.mrf.mxu0
        %v1962 = vpop.f32.mrf.mxu0
        %v1963 = vadd.f32 %v1155, %v1962
        %v1964 = vpop.f32.mrf.mxu0
        %1965 = vmatprep.mubr.bf16.mxu0 0
        %1966 = vmatmul.mubr.bf16.gmra.mxu0 %v1735
        %v1967 = vpop.f32.mrf.mxu0
        %v1968 = vadd.f32 %v1160, %v1967
        %v1969 = vpop.f32.mrf.mxu0
        %v1970 = vpop.f32.mrf.mxu0
        %v1971 = vadd.f32 %v1163, %v1970
        %v1972 = vpop.f32.mrf.mxu0
        %1973 = vmatprep.mubr.bf16.mxu0 0
        %1974 = vmatmul.mubr.bf16.gmra.mxu0 %v1738
        %v1975 = vpop.f32.mrf.mxu0
        %v1976 = vadd.f32 %v1168, %v1975
        %v1977 = vpop.f32.mrf.mxu0
        %v1978 = vpop.f32.mrf.mxu0
        %v1979 = vadd.f32 %v1171, %v1978
        %v1980 = vpop.f32.mrf.mxu0
        %1981 = vmatprep.mubr.bf16.mxu0 0
        %1982 = vmatmul.mubr.bf16.gmra.mxu0 %v1741
        %v1983 = vpop.f32.mrf.mxu0
        %v1984 = vadd.f32 %v1176, %v1983
        %v1985 = vpop.f32.mrf.mxu0
        %v1986 = vpop.f32.mrf.mxu0
        %v1987 = vadd.f32 %v1179, %v1986
        %v1988 = vpop.f32.mrf.mxu0
        %1989 = vmatprep.mubr.bf16.mxu0 0
        %1990 = vmatmul.mubr.bf16.gmra.mxu0 %v1744
        %v1991 = vpop.f32.mrf.mxu0
        %v1992 = vadd.f32 %v1184, %v1991
        %v1993 = vpop.f32.mrf.mxu0
        %v1994 = vpop.f32.mrf.mxu0
        %v1995 = vadd.f32 %v1187, %v1994
        %v1996 = vpop.f32.mrf.mxu0
        %1997 = vmatprep.mubr.bf16.mxu0 0
        %1998 = vmatmul.mubr.bf16.gmra.mxu0 %v1747
        %v1999 = vpop.f32.mrf.mxu0
        %v2000 = vadd.f32 %v1192, %v1999
        %v2001 = vpop.f32.mrf.mxu0
        %v2002 = vpop.f32.mrf.mxu0
        %v2003 = vadd.f32 %v1195, %v2002
        %v2004 = vpop.f32.mrf.mxu0
        %2005 = vmatprep.mubr.bf16.mxu0 0
        %2006 = vmatmul.mubr.bf16.gmra.mxu0 %v1750
        %v2007 = vpop.f32.mrf.mxu0
        %v2008 = vadd.f32 %v1200, %v2007
        %v2009 = vpop.f32.mrf.mxu0
        %v2010 = vpop.f32.mrf.mxu0
        %v2011 = vadd.f32 %v1203, %v2010
        %v2012 = vpop.f32.mrf.mxu0
        %2013 = vmatprep.mubr.bf16.mxu0 0
        %2014 = vmatmul.mubr.bf16.gmra.mxu0 %v1753
        %v2015 = vpop.f32.mrf.mxu0
        %v2016 = vadd.f32 %v1208, %v2015
        %v2017 = vpop.f32.mrf.mxu0
        %v2018 = vpop.f32.mrf.mxu0
        %v2019 = vadd.f32 %v1211, %v2018
        %v2020 = vpop.f32.mrf.mxu0
        %2021 = vmatprep.mubr.bf16.mxu0 0
        %2022 = vmatmul.mubr.bf16.gmra.mxu0 %v1756
        %v2023 = vpop.f32.mrf.mxu0
        %v2024 = vadd.f32 %v1216, %v2023
        %v2025 = vpop.f32.mrf.mxu0
        %v2026 = vpop.f32.mrf.mxu0
        %v2027 = vadd.f32 %v1219, %v2026
        %v2028 = vpop.f32.mrf.mxu0
        %2029 = vmatprep.mubr.bf16.mxu0 0
        %2030 = vmatmul.mubr.bf16.gmra.mxu0 %v1759
        %v2031 = vpop.f32.mrf.mxu0
        %v2032 = vadd.f32 %v1224, %v2031
        %v2033 = vpop.f32.mrf.mxu0
        %v2034 = vpop.f32.mrf.mxu0
        %v2035 = vadd.f32 %v1227, %v2034
        %v2036 = vpop.f32.mrf.mxu0
        %2037 = vmatprep.mubr.bf16.mxu0 0
        %2038 = vmatmul.mubr.bf16.gmra.mxu0 %v1762
        %v2039 = vpop.f32.mrf.mxu0
        %v2040 = vadd.f32 %v1232, %v2039
        %v2041 = vpop.f32.mrf.mxu0
        %v2042 = vpop.f32.mrf.mxu0
        %v2043 = vadd.f32 %v1235, %v2042
        %v2044 = vpop.f32.mrf.mxu0
        %2045 = vmatprep.mubr.bf16.mxu0 0
        %2046 = vmatmul.mubr.bf16.gmra.mxu0 %v1765
        %v2047 = vpop.f32.mrf.mxu0
        %v2048 = vadd.f32 %v1240, %v2047
        %v2049 = vpop.f32.mrf.mxu0
        %v2050 = vpop.f32.mrf.mxu0
        %v2051 = vadd.f32 %v1243, %v2050
        %v2052 = vpop.f32.mrf.mxu0
        %2053 = vmatprep.mubr.bf16.mxu0 0
        %2054 = vmatmul.mubr.bf16.gmra.mxu0 %v1768
        %v2055 = vpop.f32.mrf.mxu0
        %v2056 = vadd.f32 %v1248, %v2055
        %v2057 = vpop.f32.mrf.mxu0
        %v2058 = vpop.f32.mrf.mxu0
        %v2059 = vadd.f32 %v1251, %v2058
        %v2060 = vpop.f32.mrf.mxu0
        %2061 = vmatprep.mubr.bf16.mxu0 0
        %2062 = vmatmul.mubr.bf16.gmra.mxu0 %v1771
        %v2063 = vpop.f32.mrf.mxu0
        %v2064 = vadd.f32 %v1256, %v2063
        %v2065 = vpop.f32.mrf.mxu0
        %v2066 = vpop.f32.mrf.mxu0
        %v2067 = vadd.f32 %v1259, %v2066
        %v2068 = vpop.f32.mrf.mxu0
        %2069 = vmatprep.mubr.bf16.mxu0 0
        %2070 = vmatmul.mubr.bf16.gmra.mxu0 %v1774
        %v2071 = vpop.f32.mrf.mxu0
        %v2072 = vadd.f32 %v1264, %v2071
        %v2073 = vpop.f32.mrf.mxu0
        %v2074 = vpop.f32.mrf.mxu0
        %v2075 = vadd.f32 %v1267, %v2074
        %v2076 = vpop.f32.mrf.mxu0
        %2077 = vmatprep.mubr.bf16.mxu0 0
        %2078 = vmatmul.mubr.bf16.gmra.mxu0 %v1777
        %v2079 = vpop.f32.mrf.mxu0
        %v2080 = vadd.f32 %v1272, %v2079
        %v2081 = vpop.f32.mrf.mxu0
        %v2082 = vpop.f32.mrf.mxu0
        %v2083 = vadd.f32 %v1275, %v2082
        %v2084 = vpop.f32.mrf.mxu0
        %2085 = vmatprep.mubr.bf16.mxu0 0
        %2086 = vmatmul.mubr.bf16.gmra.mxu0 %v1780
        %v2087 = vpop.f32.mrf.mxu0
        %v2088 = vadd.f32 %v1280, %v2087
        %v2089 = vpop.f32.mrf.mxu0
        %v2090 = vpop.f32.mrf.mxu0
        %v2091 = vadd.f32 %v1283, %v2090
        %v2092 = vpop.f32.mrf.mxu0
        %2093 = vmatprep.mubr.bf16.mxu0 0
        %2094 = vmatmul.mubr.bf16.gmra.mxu0 %v1783
        %v2095 = vpop.f32.mrf.mxu0
        %v2096 = vadd.f32 %v1288, %v2095
        %v2097 = vpop.f32.mrf.mxu0
        %v2098 = vpop.f32.mrf.mxu0
        %v2099 = vadd.f32 %v1291, %v2098
        %v2100 = vpop.f32.mrf.mxu0
        %2101 = vmatprep.mubr.bf16.mxu0 0
        %2102 = vmatmul.mubr.bf16.gmra.mxu0 %v1786
        %v2103 = vpop.f32.mrf.mxu0
        %v2104 = vadd.f32 %v1296, %v2103
        %v2105 = vpop.f32.mrf.mxu0
        %v2106 = vpop.f32.mrf.mxu0
        %v2107 = vadd.f32 %v1299, %v2106
        %v2108 = vpop.f32.mrf.mxu0
        %2109 = vmatprep.mubr.bf16.mxu0 0
        %2110 = vmatmul.mubr.bf16.gmra.mxu0 %v1789
        %v2111 = vpop.f32.mrf.mxu0
        %v2112 = vadd.f32 %v1304, %v2111
        %v2113 = vpop.f32.mrf.mxu0
        %v2114 = vpop.f32.mrf.mxu0
        %v2115 = vadd.f32 %v1307, %v2114
        %v2116 = vpop.f32.mrf.mxu0
        %2117 = vmatprep.mubr.bf16.mxu0 0
        %2118 = vmatmul.mubr.bf16.gmra.mxu0 %v1792
        %v2119 = vpop.f32.mrf.mxu0
        %v2120 = vadd.f32 %v1312, %v2119
        %v2121 = vpop.f32.mrf.mxu0
        %v2122 = vpop.f32.mrf.mxu0
        %v2123 = vadd.f32 %v1315, %v2122
        %v2124 = vpop.f32.mrf.mxu0
        %2125 = vmatprep.mubr.bf16.mxu0 0
        %2126 = vmatmul.mubr.bf16.gmra.mxu0 %v1795
        %v2127 = vpop.f32.mrf.mxu0
        %v2128 = vadd.f32 %v1320, %v2127
        %v2129 = vpop.f32.mrf.mxu0
        %v2130 = vpop.f32.mrf.mxu0
        %v2131 = vadd.f32 %v1323, %v2130
        %v2132 = vpop.f32.mrf.mxu0
        %2133 = vmatprep.mubr.bf16.mxu0 0
        %2134 = vmatmul.mubr.bf16.gmra.mxu0 %v1798
        %v2135 = vpop.f32.mrf.mxu0
        %v2136 = vadd.f32 %v1328, %v2135
        %v2137 = vpop.f32.mrf.mxu0
        %v2138 = vpop.f32.mrf.mxu0
        %v2139 = vadd.f32 %v1331, %v2138
        %v2140 = vpop.f32.mrf.mxu0
        %2141 = vmatprep.mubr.bf16.mxu0 0
        %2142 = vmatmul.mubr.bf16.gmra.mxu0 %v1801
        %v2143 = vpop.f32.mrf.mxu0
        %v2144 = vadd.f32 %v1336, %v2143
        %v2145 = vpop.f32.mrf.mxu0
        %v2146 = vpop.f32.mrf.mxu0
        %v2147 = vadd.f32 %v1339, %v2146
        %v2148 = vpop.f32.mrf.mxu0
        %2149 = vmatprep.mubr.bf16.mxu0 0
        %2150 = vmatmul.mubr.bf16.gmra.mxu0 %v1804
        %v2151 = vpop.f32.mrf.mxu0
        %v2152 = vadd.f32 %v1344, %v2151
        %v2153 = vpop.f32.mrf.mxu0
        %v2154 = vpop.f32.mrf.mxu0
        %v2155 = vadd.f32 %v1347, %v2154
        %v2156 = vpop.f32.mrf.mxu0
        %2157 = vmatprep.mubr.bf16.mxu0 0
        %2158 = vmatmul.mubr.bf16.gmra.mxu0 %v1807
        %v2159 = vpop.f32.mrf.mxu0
        %v2160 = vadd.f32 %v1352, %v2159
        %v2161 = vpop.f32.mrf.mxu0
        %v2162 = vpop.f32.mrf.mxu0
        %v2163 = vadd.f32 %v1355, %v2162
        %v2164 = vpop.f32.mrf.mxu0
        %2165 = vmatprep.mubr.bf16.mxu0 0
        %2166 = vmatmul.mubr.bf16.gmra.mxu0 %v1810
        %v2167 = vpop.f32.mrf.mxu0
        %v2168 = vadd.f32 %v1360, %v2167
        %v2169 = vpop.f32.mrf.mxu0
        %v2170 = vpop.f32.mrf.mxu0
        %v2171 = vadd.f32 %v1363, %v2170
        %v2172 = vpop.f32.mrf.mxu0
        %2173 = vmatprep.mubr.bf16.mxu0 0
        %2174 = vmatmul.mubr.bf16.gmra.mxu0 %v1813
        %v2175 = vpop.f32.mrf.mxu0
        %v2176 = vadd.f32 %v1368, %v2175
        %v2177 = vpop.f32.mrf.mxu0
        %v2178 = vpop.f32.mrf.mxu0
        %v2179 = vadd.f32 %v1371, %v2178
        %v2180 = vpop.f32.mrf.mxu0
        %2181 = vmatprep.mubr.bf16.mxu0 0
        %2182 = vmatmul.mubr.bf16.gmra.mxu0 %v1816
        %v2183 = vpop.f32.mrf.mxu0
        %v2184 = vadd.f32 %v1376, %v2183
        %v2185 = vpop.f32.mrf.mxu0
        %v2186 = vpop.f32.mrf.mxu0
        %v2187 = vadd.f32 %v1379, %v2186
        %v2188 = vpop.f32.mrf.mxu0
        %2189 = vmatprep.mubr.bf16.mxu0 0
        %2190 = vmatmul.mubr.bf16.gmra.mxu0 %v1819
        %v2191 = vpop.f32.mrf.mxu0
        %v2192 = vadd.f32 %v1384, %v2191
        %v2193 = vpop.f32.mrf.mxu0
        %v2194 = vpop.f32.mrf.mxu0
        %v2195 = vadd.f32 %v1387, %v2194
        %v2196 = vpop.f32.mrf.mxu0
        %2197 = vmatprep.mubr.bf16.mxu0 0
        %2198 = vmatmul.mubr.bf16.gmra.mxu0 %v1822
        %v2199 = vpop.f32.mrf.mxu0
        %v2200 = vadd.f32 %v1392, %v2199
        %v2201 = vpop.f32.mrf.mxu0
        %v2202 = vpop.f32.mrf.mxu0
        %v2203 = vadd.f32 %v1395, %v2202
        %v2204 = vpop.f32.mrf.mxu0
        %2205 = vmatprep.mubr.bf16.mxu0 0
        %2206 = vmatmul.mubr.bf16.gmra.mxu0 %v1825
        %v2207 = vpop.f32.mrf.mxu0
        %v2208 = vadd.f32 %v1400, %v2207
        %v2209 = vpop.f32.mrf.mxu0
        %v2210 = vpop.f32.mrf.mxu0
        %v2211 = vadd.f32 %v1403, %v2210
        %v2212 = vpop.f32.mrf.mxu0
        %2213 = vmatprep.mubr.bf16.mxu0 0
        %2214 = vmatmul.mubr.bf16.gmra.mxu0 %v1828
        %v2215 = vpop.f32.mrf.mxu0
        %v2216 = vadd.f32 %v1408, %v2215
        %v2217 = vpop.f32.mrf.mxu0
        %v2218 = vpop.f32.mrf.mxu0
        %v2219 = vadd.f32 %v1411, %v2218
        %v2220 = vpop.f32.mrf.mxu0
        %2221 = vmatprep.mubr.bf16.mxu0 0
        %2222 = vmatmul.mubr.bf16.gmra.mxu0 %v1831
        %v2223 = vpop.f32.mrf.mxu0
        %v2224 = vadd.f32 %v1416, %v2223
        %v2225 = vpop.f32.mrf.mxu0
        %v2226 = vpop.f32.mrf.mxu0
        %v2227 = vadd.f32 %v1419, %v2226
        %v2228 = vpop.f32.mrf.mxu0
        %2229 = vmatprep.mubr.bf16.mxu0 0
        %2230 = vmatmul.mubr.bf16.gmra.mxu0 %v1834
        %v2231 = vpop.f32.mrf.mxu0
        %v2232 = vadd.f32 %v1424, %v2231
        %v2233 = vpop.f32.mrf.mxu0
        %v2234 = vpop.f32.mrf.mxu0
        %v2235 = vadd.f32 %v1427, %v2234
        %v2236 = vpop.f32.mrf.mxu0
        %2237 = vmatprep.mubr.bf16.mxu0 0
        %2238 = vmatmul.mubr.bf16.gmra.mxu0 %v1837
        %v2239 = vpop.f32.mrf.mxu0
        %v2240 = vadd.f32 %v1432, %v2239
        %v2241 = vpop.f32.mrf.mxu0
        %v2242 = vpop.f32.mrf.mxu0
        %v2243 = vadd.f32 %v1435, %v2242
        %v2244 = vpop.f32.mrf.mxu0
        %2245 = vmatprep.mubr.bf16.mxu0 0
        %2246 = vmatmul.mubr.bf16.gmra.mxu0 %v1840
        %v2247 = vpop.f32.mrf.mxu0
        %v2248 = vadd.f32 %v1440, %v2247
        %v2249 = vpop.f32.mrf.mxu0
        %v2250 = vpop.f32.mrf.mxu0
        %v2251 = vadd.f32 %v1443, %v2250
        %v2252 = vpop.f32.mrf.mxu0
        %2253 = vmatprep.mubr.bf16.mxu0 0
        %2254 = vmatmul.mubr.bf16.gmra.mxu0 %v1843
        %v2255 = vpop.f32.mrf.mxu0
        %v2256 = vadd.f32 %v1448, %v2255
        %v2257 = vpop.f32.mrf.mxu0
        %v2258 = vpop.f32.mrf.mxu0
        %v2259 = vadd.f32 %v1451, %v2258
        %v2260 = vpop.f32.mrf.mxu0
        %2261 = vdwg.mxu0
        %v2262 = vld [vmem:[%s5] sm:$0x1]
        %v2264 = vlaneseq
        %v2265 = vshrl.u32 %v2264, 7
        %v2266 = vsub.s32 0, %v2265
        %v2267 = vrot.slane %v2262, %v2266
        %v2269 = vadd.f32 %v1880, %v2267
        %v2270 = vadd.f32 %v1883, %v2267
        %v2271 = vadd.f32 %v1888, %v2267
        %v2272 = vadd.f32 %v1891, %v2267
        %v2273 = vadd.f32 %v1896, %v2267
        %v2274 = vadd.f32 %v1899, %v2267
        %v2275 = vadd.f32 %v1904, %v2267
        %v2276 = vadd.f32 %v1907, %v2267
        %v2277 = vadd.f32 %v1912, %v2267
        %v2278 = vadd.f32 %v1915, %v2267
        %v2279 = vadd.f32 %v1920, %v2267
        %v2280 = vadd.f32 %v1923, %v2267
        %v2281 = vadd.f32 %v1928, %v2267
        %v2282 = vadd.f32 %v1931, %v2267
        %v2283 = vadd.f32 %v1936, %v2267
        %v2284 = vadd.f32 %v1939, %v2267
        %v2285 = vadd.f32 %v1944, %v2267
        %v2286 = vadd.f32 %v1947, %v2267
        %v2287 = vadd.f32 %v1952, %v2267
        %v2288 = vadd.f32 %v1955, %v2267
        %v2289 = vadd.f32 %v1960, %v2267
        %v2290 = vadd.f32 %v1963, %v2267
        %v2291 = vadd.f32 %v1968, %v2267
        %v2292 = vadd.f32 %v1971, %v2267
        %v2293 = vadd.f32 %v1976, %v2267
        %v2294 = vadd.f32 %v1979, %v2267
        %v2295 = vadd.f32 %v1984, %v2267
        %v2296 = vadd.f32 %v1987, %v2267
        %v2297 = vadd.f32 %v1992, %v2267
        %v2298 = vadd.f32 %v1995, %v2267
        %v2299 = vadd.f32 %v2000, %v2267
        %v2300 = vadd.f32 %v2003, %v2267
        %v2301 = vadd.f32 %v2008, %v2267
        %v2302 = vadd.f32 %v2011, %v2267
        %v2303 = vadd.f32 %v2016, %v2267
        %v2304 = vadd.f32 %v2019, %v2267
        %v2305 = vadd.f32 %v2024, %v2267
        %v2306 = vadd.f32 %v2027, %v2267
        %v2307 = vadd.f32 %v2032, %v2267
        %v2308 = vadd.f32 %v2035, %v2267
        %v2309 = vadd.f32 %v2040, %v2267
        %v2310 = vadd.f32 %v2043, %v2267
        %v2311 = vadd.f32 %v2048, %v2267
        %v2312 = vadd.f32 %v2051, %v2267
        %v2313 = vadd.f32 %v2056, %v2267
        %v2314 = vadd.f32 %v2059, %v2267
        %v2315 = vadd.f32 %v2064, %v2267
        %v2316 = vadd.f32 %v2067, %v2267
        %v2317 = vadd.f32 %v2072, %v2267
        %v2318 = vadd.f32 %v2075, %v2267
        %v2319 = vadd.f32 %v2080, %v2267
        %v2320 = vadd.f32 %v2083, %v2267
        %v2321 = vadd.f32 %v2088, %v2267
        %v2322 = vadd.f32 %v2091, %v2267
        %v2323 = vadd.f32 %v2096, %v2267
        %v2324 = vadd.f32 %v2099, %v2267
        %v2325 = vadd.f32 %v2104, %v2267
        %v2326 = vadd.f32 %v2107, %v2267
        %v2327 = vadd.f32 %v2112, %v2267
        %v2328 = vadd.f32 %v2115, %v2267
        %v2329 = vadd.f32 %v2120, %v2267
        %v2330 = vadd.f32 %v2123, %v2267
        %v2331 = vadd.f32 %v2128, %v2267
        %v2332 = vadd.f32 %v2131, %v2267
        %v2333 = vadd.f32 %v2136, %v2267
        %v2334 = vadd.f32 %v2139, %v2267
        %v2335 = vadd.f32 %v2144, %v2267
        %v2336 = vadd.f32 %v2147, %v2267
        %v2337 = vadd.f32 %v2152, %v2267
        %v2338 = vadd.f32 %v2155, %v2267
        %v2339 = vadd.f32 %v2160, %v2267
        %v2340 = vadd.f32 %v2163, %v2267
        %v2341 = vadd.f32 %v2168, %v2267
        %v2342 = vadd.f32 %v2171, %v2267
        %v2343 = vadd.f32 %v2176, %v2267
        %v2344 = vadd.f32 %v2179, %v2267
        %v2345 = vadd.f32 %v2184, %v2267
        %v2346 = vadd.f32 %v2187, %v2267
        %v2347 = vadd.f32 %v2192, %v2267
        %v2348 = vadd.f32 %v2195, %v2267
        %v2349 = vadd.f32 %v2200, %v2267
        %v2350 = vadd.f32 %v2203, %v2267
        %v2351 = vadd.f32 %v2208, %v2267
        %v2352 = vadd.f32 %v2211, %v2267
        %v2353 = vadd.f32 %v2216, %v2267
        %v2354 = vadd.f32 %v2219, %v2267
        %v2355 = vadd.f32 %v2224, %v2267
        %v2356 = vadd.f32 %v2227, %v2267
        %v2357 = vadd.f32 %v2232, %v2267
        %v2358 = vadd.f32 %v2235, %v2267
        %v2359 = vadd.f32 %v2240, %v2267
        %v2360 = vadd.f32 %v2243, %v2267
        %v2361 = vadd.f32 %v2248, %v2267
        %v2362 = vadd.f32 %v2251, %v2267
        %v2363 = vadd.f32 %v2256, %v2267
        %v2364 = vadd.f32 %v2259, %v2267
        %v2365 = vmax.f32 %v2269, 0.0
        %v2366 = vmax.f32 %v2270, 0.0
        %v2367 = vmax.f32 %v2271, 0.0
        %v2368 = vmax.f32 %v2272, 0.0
        %v2369 = vmax.f32 %v2273, 0.0
        %v2370 = vmax.f32 %v2274, 0.0
        %v2371 = vmax.f32 %v2275, 0.0
        %v2372 = vmax.f32 %v2276, 0.0
        %v2373 = vmax.f32 %v2277, 0.0
        %v2374 = vmax.f32 %v2278, 0.0
        %v2375 = vmax.f32 %v2279, 0.0
        %v2376 = vmax.f32 %v2280, 0.0
        %v2377 = vmax.f32 %v2281, 0.0
        %v2378 = vmax.f32 %v2282, 0.0
        %v2379 = vmax.f32 %v2283, 0.0
        %v2380 = vmax.f32 %v2284, 0.0
        %v2381 = vmax.f32 %v2285, 0.0
        %v2382 = vmax.f32 %v2286, 0.0
        %v2383 = vmax.f32 %v2287, 0.0
        %v2384 = vmax.f32 %v2288, 0.0
        %v2385 = vmax.f32 %v2289, 0.0
        %v2386 = vmax.f32 %v2290, 0.0
        %v2387 = vmax.f32 %v2291, 0.0
        %v2388 = vmax.f32 %v2292, 0.0
        %v2389 = vmax.f32 %v2293, 0.0
        %v2390 = vmax.f32 %v2294, 0.0
        %v2391 = vmax.f32 %v2295, 0.0
        %v2392 = vmax.f32 %v2296, 0.0
        %v2393 = vmax.f32 %v2297, 0.0
        %v2394 = vmax.f32 %v2298, 0.0
        %v2395 = vmax.f32 %v2299, 0.0
        %v2396 = vmax.f32 %v2300, 0.0
        %v2397 = vmax.f32 %v2301, 0.0
        %v2398 = vmax.f32 %v2302, 0.0
        %v2399 = vmax.f32 %v2303, 0.0
        %v2400 = vmax.f32 %v2304, 0.0
        %v2401 = vmax.f32 %v2305, 0.0
        %v2402 = vmax.f32 %v2306, 0.0
        %v2403 = vmax.f32 %v2307, 0.0
        %v2404 = vmax.f32 %v2308, 0.0
        %v2405 = vmax.f32 %v2309, 0.0
        %v2406 = vmax.f32 %v2310, 0.0
        %v2407 = vmax.f32 %v2311, 0.0
        %v2408 = vmax.f32 %v2312, 0.0
        %v2409 = vmax.f32 %v2313, 0.0
        %v2410 = vmax.f32 %v2314, 0.0
        %v2411 = vmax.f32 %v2315, 0.0
        %v2412 = vmax.f32 %v2316, 0.0
        %v2413 = vmax.f32 %v2317, 0.0
        %v2414 = vmax.f32 %v2318, 0.0
        %v2415 = vmax.f32 %v2319, 0.0
        %v2416 = vmax.f32 %v2320, 0.0
        %v2417 = vmax.f32 %v2321, 0.0
        %v2418 = vmax.f32 %v2322, 0.0
        %v2419 = vmax.f32 %v2323, 0.0
        %v2420 = vmax.f32 %v2324, 0.0
        %v2421 = vmax.f32 %v2325, 0.0
        %v2422 = vmax.f32 %v2326, 0.0
        %v2423 = vmax.f32 %v2327, 0.0
        %v2424 = vmax.f32 %v2328, 0.0
        %v2425 = vmax.f32 %v2329, 0.0
        %v2426 = vmax.f32 %v2330, 0.0
        %v2427 = vmax.f32 %v2331, 0.0
        %v2428 = vmax.f32 %v2332, 0.0
        %v2429 = vmax.f32 %v2333, 0.0
        %v2430 = vmax.f32 %v2334, 0.0
        %v2431 = vmax.f32 %v2335, 0.0
        %v2432 = vmax.f32 %v2336, 0.0
        %v2433 = vmax.f32 %v2337, 0.0
        %v2434 = vmax.f32 %v2338, 0.0
        %v2435 = vmax.f32 %v2339, 0.0
        %v2436 = vmax.f32 %v2340, 0.0
        %v2437 = vmax.f32 %v2341, 0.0
        %v2438 = vmax.f32 %v2342, 0.0
        %v2439 = vmax.f32 %v2343, 0.0
        %v2440 = vmax.f32 %v2344, 0.0
        %v2441 = vmax.f32 %v2345, 0.0
        %v2442 = vmax.f32 %v2346, 0.0
        %v2443 = vmax.f32 %v2347, 0.0
        %v2444 = vmax.f32 %v2348, 0.0
        %v2445 = vmax.f32 %v2349, 0.0
        %v2446 = vmax.f32 %v2350, 0.0
        %v2447 = vmax.f32 %v2351, 0.0
        %v2448 = vmax.f32 %v2352, 0.0
        %v2449 = vmax.f32 %v2353, 0.0
        %v2450 = vmax.f32 %v2354, 0.0
        %v2451 = vmax.f32 %v2355, 0.0
        %v2452 = vmax.f32 %v2356, 0.0
        %v2453 = vmax.f32 %v2357, 0.0
        %v2454 = vmax.f32 %v2358, 0.0
        %v2455 = vmax.f32 %v2359, 0.0
        %v2456 = vmax.f32 %v2360, 0.0
        %v2457 = vmax.f32 %v2361, 0.0
        %v2458 = vmax.f32 %v2362, 0.0
        %v2459 = vmax.f32 %v2363, 0.0
        %v2460 = vmax.f32 %v2364, 0.0
        %v2461 = vpack.c.bf16 %v2366, %v2365
        %v2462 = vpack.c.bf16 %v2368, %v2367
        %v2463 = vpack.c.bf16 %v2370, %v2369
        %v2464 = vpack.c.bf16 %v2372, %v2371
        %v2465 = vpack.c.bf16 %v2374, %v2373
        %v2466 = vpack.c.bf16 %v2376, %v2375
        %v2467 = vpack.c.bf16 %v2378, %v2377
        %v2468 = vpack.c.bf16 %v2380, %v2379
        %v2469 = vpack.c.bf16 %v2382, %v2381
        %v2470 = vpack.c.bf16 %v2384, %v2383
        %v2471 = vpack.c.bf16 %v2386, %v2385
        %v2472 = vpack.c.bf16 %v2388, %v2387
        %v2473 = vpack.c.bf16 %v2390, %v2389
        %v2474 = vpack.c.bf16 %v2392, %v2391
        %v2475 = vpack.c.bf16 %v2394, %v2393
        %v2476 = vpack.c.bf16 %v2396, %v2395
        %v2477 = vpack.c.bf16 %v2398, %v2397
        %v2478 = vpack.c.bf16 %v2400, %v2399
        %v2479 = vpack.c.bf16 %v2402, %v2401
        %v2480 = vpack.c.bf16 %v2404, %v2403
        %v2481 = vpack.c.bf16 %v2406, %v2405
        %v2482 = vpack.c.bf16 %v2408, %v2407
        %v2483 = vpack.c.bf16 %v2410, %v2409
        %v2484 = vpack.c.bf16 %v2412, %v2411
        %v2485 = vpack.c.bf16 %v2414, %v2413
        %v2486 = vpack.c.bf16 %v2416, %v2415
        %v2487 = vpack.c.bf16 %v2418, %v2417
        %v2488 = vpack.c.bf16 %v2420, %v2419
        %v2489 = vpack.c.bf16 %v2422, %v2421
        %v2490 = vpack.c.bf16 %v2424, %v2423
        %v2491 = vpack.c.bf16 %v2426, %v2425
        %v2492 = vpack.c.bf16 %v2428, %v2427
        %v2493 = vpack.c.bf16 %v2430, %v2429
        %v2494 = vpack.c.bf16 %v2432, %v2431
        %v2495 = vpack.c.bf16 %v2434, %v2433
        %v2496 = vpack.c.bf16 %v2436, %v2435
        %v2497 = vpack.c.bf16 %v2438, %v2437
        %v2498 = vpack.c.bf16 %v2440, %v2439
        %v2499 = vpack.c.bf16 %v2442, %v2441
        %v2500 = vpack.c.bf16 %v2444, %v2443
        %v2501 = vpack.c.bf16 %v2446, %v2445
        %v2502 = vpack.c.bf16 %v2448, %v2447
        %v2503 = vpack.c.bf16 %v2450, %v2449
        %v2504 = vpack.c.bf16 %v2452, %v2451
        %v2505 = vpack.c.bf16 %v2454, %v2453
        %v2506 = vpack.c.bf16 %v2456, %v2455
        %v2507 = vpack.c.bf16 %v2458, %v2457
        %v2508 = vpack.c.bf16 %v2460, %v2459
        %v2509 = vld [vmem:[%s6] sm:$0xf]
        %v2510 = vld [vmem:[%s6 + $0x4] sm:$0xf]
        %v2511 = vld [vmem:[%s6 + $0x8] sm:$0xf]
        %v2512 = vld [vmem:[%s6 + $0xc] sm:$0xf]
        %v2513 = vld [vmem:[%s6 + $0x10] sm:$0xf]
        %v2514 = vld [vmem:[%s6 + $0x14] sm:$0xf]
        %v2515 = vld [vmem:[%s6 + $0x18] sm:$0xf]
        %v2516 = vld [vmem:[%s6 + $0x1c] sm:$0xf]
        %v2517 = vld [vmem:[%s6 + $0x20] sm:$0xf]
        %v2518 = vld [vmem:[%s6 + $0x24] sm:$0xf]
        %v2519 = vld [vmem:[%s6 + $0x28] sm:$0xf]
        %v2520 = vld [vmem:[%s6 + $0x2c] sm:$0xf]
        %v2521 = vld [vmem:[%s6 + $0x30] sm:$0xf]
        %v2522 = vld [vmem:[%s6 + $0x34] sm:$0xf]
        %v2523 = vld [vmem:[%s6 + $0x38] sm:$0xf]
        %v2524 = vld [vmem:[%s6 + $0x3c] sm:$0xf]
        %v2525 = vld [vmem:[%s7] sm:$0x1]
        %v2527 = vlaneseq
        %v2528 = vshrl.u32 %v2527, 7
        %v2529 = vsub.s32 0, %v2528
        %v2530 = vrot.slane %v2525, %v2529
        %v2548 = vunpack.c.l.b16 %v2509
        %v2549 = vunpack.c.l.b16 %v2510
        %v2550 = vunpack.c.l.b16 %v2511
        %v2551 = vunpack.c.l.b16 %v2512
        %v2552 = vunpack.c.l.b16 %v2513
        %v2553 = vunpack.c.l.b16 %v2514
        %v2554 = vunpack.c.l.b16 %v2515
        %v2555 = vunpack.c.l.b16 %v2516
        %v2556 = vunpack.c.l.b16 %v2517
        %v2557 = vunpack.c.l.b16 %v2518
        %v2558 = vunpack.c.l.b16 %v2519
        %v2559 = vunpack.c.l.b16 %v2520
        %v2560 = vunpack.c.l.b16 %v2521
        %v2561 = vunpack.c.l.b16 %v2522
        %v2562 = vunpack.c.l.b16 %v2523
        %v2563 = vunpack.c.l.b16 %v2524
        %v2564 = vpack.c.b16 %v2549, %v2548
        %v2565 = vpack.c.b16 %v2551, %v2550
        %v2566 = vpack.c.b16 %v2553, %v2552
        %v2567 = vpack.c.b16 %v2555, %v2554
        %v2568 = vpack.c.b16 %v2557, %v2556
        %v2569 = vpack.c.b16 %v2559, %v2558
        %v2570 = vpack.c.b16 %v2561, %v2560
        %v2571 = vpack.c.b16 %v2563, %v2562
        %2580 = vmatprep.subr.bf16.mxu0 0
        %2581 = vmatpush1.bf16.msra.mxu0 %v2571
        %2582 = vmatprep.subr.bf16.mxu0 0
        %2583 = vmatpush1.bf16.msra.mxu0 %v2570
        %2584 = vmatprep.subr.bf16.mxu0 0
        %2585 = vmatpush1.bf16.msra.mxu0 %v2569
        %2586 = vmatprep.subr.bf16.mxu0 0
        %2587 = vmatpush1.bf16.msra.mxu0 %v2568
        %2588 = vmatprep.subr.bf16.mxu0 0
        %2589 = vmatpush1.bf16.msra.mxu0 %v2567
        %2590 = vmatprep.subr.bf16.mxu0 0
        %2591 = vmatpush1.bf16.msra.mxu0 %v2566
        %2592 = vmatprep.subr.bf16.mxu0 0
        %2593 = vmatpush1.bf16.msra.mxu0 %v2565
        %2594 = vmatprep.subr.bf16.mxu0 0
        %2595 = vmatpush1.bf16.msra.mxu0 %v2564
        %2596 = vmatprep.subr.bf16.mxu0 0
        %2597 = vmatpush2.bf16.msra.mxu0 0
        %2598 = vmatprep.subr.bf16.mxu0 0
        %2599 = vmatpush2.bf16.msra.mxu0 0
        %2600 = vmatprep.subr.bf16.mxu0 0
        %2601 = vmatpush2.bf16.msra.mxu0 0
        %2602 = vmatprep.subr.bf16.mxu0 0
        %2603 = vmatpush2.bf16.msra.mxu0 0
        %2604 = vmatprep.subr.bf16.mxu0 0
        %2605 = vmatpush2.bf16.msra.mxu0 0
        %2606 = vmatprep.subr.bf16.mxu0 0
        %2607 = vmatpush2.bf16.msra.mxu0 0
        %2608 = vmatprep.subr.bf16.mxu0 0
        %2609 = vmatpush2.bf16.msra.mxu0 0
        %2610 = vmatprep.subr.bf16.mxu0 0
        %2611 = vmatpush2.bf16.msra.mxu0 0
        %2612 = vmatprep.mubr.bf16.mxu0 0
        %2613 = vmatmul.mubr.bf16.gmra.mxu0 %v2461
        %v2614 = vpop.f32.mrf.mxu0
        %v2615 = vadd.f32 %v2530, %v2614
        %v2616 = vpop.f32.mrf.mxu0
        %v2617 = vpop.f32.mrf.mxu0
        %v2618 = vadd.f32 %v2530, %v2617
        %v2619 = vpop.f32.mrf.mxu0
        %2620 = vmatprep.mubr.bf16.mxu0 0
        %2621 = vmatmul.mubr.bf16.gmra.mxu0 %v2462
        %v2622 = vpop.f32.mrf.mxu0
        %v2623 = vadd.f32 %v2530, %v2622
        %v2624 = vpop.f32.mrf.mxu0
        %v2625 = vpop.f32.mrf.mxu0
        %v2626 = vadd.f32 %v2530, %v2625
        %v2627 = vpop.f32.mrf.mxu0
        %2628 = vmatprep.mubr.bf16.mxu0 0
        %2629 = vmatmul.mubr.bf16.gmra.mxu0 %v2463
        %v2630 = vpop.f32.mrf.mxu0
        %v2631 = vadd.f32 %v2530, %v2630
        %v2632 = vpop.f32.mrf.mxu0
        %v2633 = vpop.f32.mrf.mxu0
        %v2634 = vadd.f32 %v2530, %v2633
        %v2635 = vpop.f32.mrf.mxu0
        %2636 = vmatprep.mubr.bf16.mxu0 0
        %2637 = vmatmul.mubr.bf16.gmra.mxu0 %v2464
        %v2638 = vpop.f32.mrf.mxu0
        %v2639 = vadd.f32 %v2530, %v2638
        %v2640 = vpop.f32.mrf.mxu0
        %v2641 = vpop.f32.mrf.mxu0
        %v2642 = vadd.f32 %v2530, %v2641
        %v2643 = vpop.f32.mrf.mxu0
        %2644 = vmatprep.mubr.bf16.mxu0 0
        %2645 = vmatmul.mubr.bf16.gmra.mxu0 %v2465
        %v2646 = vpop.f32.mrf.mxu0
        %v2647 = vadd.f32 %v2530, %v2646
        %v2648 = vpop.f32.mrf.mxu0
        %v2649 = vpop.f32.mrf.mxu0
        %v2650 = vadd.f32 %v2530, %v2649
        %v2651 = vpop.f32.mrf.mxu0
        %2652 = vmatprep.mubr.bf16.mxu0 0
        %2653 = vmatmul.mubr.bf16.gmra.mxu0 %v2466
        %v2654 = vpop.f32.mrf.mxu0
        %v2655 = vadd.f32 %v2530, %v2654
        %v2656 = vpop.f32.mrf.mxu0
        %v2657 = vpop.f32.mrf.mxu0
        %v2658 = vadd.f32 %v2530, %v2657
        %v2659 = vpop.f32.mrf.mxu0
        %2660 = vmatprep.mubr.bf16.mxu0 0
        %2661 = vmatmul.mubr.bf16.gmra.mxu0 %v2467
        %v2662 = vpop.f32.mrf.mxu0
        %v2663 = vadd.f32 %v2530, %v2662
        %v2664 = vpop.f32.mrf.mxu0
        %v2665 = vpop.f32.mrf.mxu0
        %v2666 = vadd.f32 %v2530, %v2665
        %v2667 = vpop.f32.mrf.mxu0
        %2668 = vmatprep.mubr.bf16.mxu0 0
        %2669 = vmatmul.mubr.bf16.gmra.mxu0 %v2468
        %v2670 = vpop.f32.mrf.mxu0
        %v2671 = vadd.f32 %v2530, %v2670
        %v2672 = vpop.f32.mrf.mxu0
        %v2673 = vpop.f32.mrf.mxu0
        %v2674 = vadd.f32 %v2530, %v2673
        %v2675 = vpop.f32.mrf.mxu0
        %2676 = vmatprep.mubr.bf16.mxu0 0
        %2677 = vmatmul.mubr.bf16.gmra.mxu0 %v2469
        %v2678 = vpop.f32.mrf.mxu0
        %v2679 = vadd.f32 %v2530, %v2678
        %v2680 = vpop.f32.mrf.mxu0
        %v2681 = vpop.f32.mrf.mxu0
        %v2682 = vadd.f32 %v2530, %v2681
        %v2683 = vpop.f32.mrf.mxu0
        %2684 = vmatprep.mubr.bf16.mxu0 0
        %2685 = vmatmul.mubr.bf16.gmra.mxu0 %v2470
        %v2686 = vpop.f32.mrf.mxu0
        %v2687 = vadd.f32 %v2530, %v2686
        %v2688 = vpop.f32.mrf.mxu0
        %v2689 = vpop.f32.mrf.mxu0
        %v2690 = vadd.f32 %v2530, %v2689
        %v2691 = vpop.f32.mrf.mxu0
        %2692 = vmatprep.mubr.bf16.mxu0 0
        %2693 = vmatmul.mubr.bf16.gmra.mxu0 %v2471
        %v2694 = vpop.f32.mrf.mxu0
        %v2695 = vadd.f32 %v2530, %v2694
        %v2696 = vpop.f32.mrf.mxu0
        %v2697 = vpop.f32.mrf.mxu0
        %v2698 = vadd.f32 %v2530, %v2697
        %v2699 = vpop.f32.mrf.mxu0
        %2700 = vmatprep.mubr.bf16.mxu0 0
        %2701 = vmatmul.mubr.bf16.gmra.mxu0 %v2472
        %v2702 = vpop.f32.mrf.mxu0
        %v2703 = vadd.f32 %v2530, %v2702
        %v2704 = vpop.f32.mrf.mxu0
        %v2705 = vpop.f32.mrf.mxu0
        %v2706 = vadd.f32 %v2530, %v2705
        %v2707 = vpop.f32.mrf.mxu0
        %2708 = vmatprep.mubr.bf16.mxu0 0
        %2709 = vmatmul.mubr.bf16.gmra.mxu0 %v2473
        %v2710 = vpop.f32.mrf.mxu0
        %v2711 = vadd.f32 %v2530, %v2710
        %v2712 = vpop.f32.mrf.mxu0
        %v2713 = vpop.f32.mrf.mxu0
        %v2714 = vadd.f32 %v2530, %v2713
        %v2715 = vpop.f32.mrf.mxu0
        %2716 = vmatprep.mubr.bf16.mxu0 0
        %2717 = vmatmul.mubr.bf16.gmra.mxu0 %v2474
        %v2718 = vpop.f32.mrf.mxu0
        %v2719 = vadd.f32 %v2530, %v2718
        %v2720 = vpop.f32.mrf.mxu0
        %v2721 = vpop.f32.mrf.mxu0
        %v2722 = vadd.f32 %v2530, %v2721
        %v2723 = vpop.f32.mrf.mxu0
        %2724 = vmatprep.mubr.bf16.mxu0 0
        %2725 = vmatmul.mubr.bf16.gmra.mxu0 %v2475
        %v2726 = vpop.f32.mrf.mxu0
        %v2727 = vadd.f32 %v2530, %v2726
        %v2728 = vpop.f32.mrf.mxu0
        %v2729 = vpop.f32.mrf.mxu0
        %v2730 = vadd.f32 %v2530, %v2729
        %v2731 = vpop.f32.mrf.mxu0
        %2732 = vmatprep.mubr.bf16.mxu0 0
        %2733 = vmatmul.mubr.bf16.gmra.mxu0 %v2476
        %v2734 = vpop.f32.mrf.mxu0
        %v2735 = vadd.f32 %v2530, %v2734
        %v2736 = vpop.f32.mrf.mxu0
        %v2737 = vpop.f32.mrf.mxu0
        %v2738 = vadd.f32 %v2530, %v2737
        %v2739 = vpop.f32.mrf.mxu0
        %2740 = vmatprep.mubr.bf16.mxu0 0
        %2741 = vmatmul.mubr.bf16.gmra.mxu0 %v2477
        %v2742 = vpop.f32.mrf.mxu0
        %v2743 = vadd.f32 %v2530, %v2742
        %v2744 = vpop.f32.mrf.mxu0
        %v2745 = vpop.f32.mrf.mxu0
        %v2746 = vadd.f32 %v2530, %v2745
        %v2747 = vpop.f32.mrf.mxu0
        %2748 = vmatprep.mubr.bf16.mxu0 0
        %2749 = vmatmul.mubr.bf16.gmra.mxu0 %v2478
        %v2750 = vpop.f32.mrf.mxu0
        %v2751 = vadd.f32 %v2530, %v2750
        %v2752 = vpop.f32.mrf.mxu0
        %v2753 = vpop.f32.mrf.mxu0
        %v2754 = vadd.f32 %v2530, %v2753
        %v2755 = vpop.f32.mrf.mxu0
        %2756 = vmatprep.mubr.bf16.mxu0 0
        %2757 = vmatmul.mubr.bf16.gmra.mxu0 %v2479
        %v2758 = vpop.f32.mrf.mxu0
        %v2759 = vadd.f32 %v2530, %v2758
        %v2760 = vpop.f32.mrf.mxu0
        %v2761 = vpop.f32.mrf.mxu0
        %v2762 = vadd.f32 %v2530, %v2761
        %v2763 = vpop.f32.mrf.mxu0
        %2764 = vmatprep.mubr.bf16.mxu0 0
        %2765 = vmatmul.mubr.bf16.gmra.mxu0 %v2480
        %v2766 = vpop.f32.mrf.mxu0
        %v2767 = vadd.f32 %v2530, %v2766
        %v2768 = vpop.f32.mrf.mxu0
        %v2769 = vpop.f32.mrf.mxu0
        %v2770 = vadd.f32 %v2530, %v2769
        %v2771 = vpop.f32.mrf.mxu0
        %2772 = vmatprep.mubr.bf16.mxu0 0
        %2773 = vmatmul.mubr.bf16.gmra.mxu0 %v2481
        %v2774 = vpop.f32.mrf.mxu0
        %v2775 = vadd.f32 %v2530, %v2774
        %v2776 = vpop.f32.mrf.mxu0
        %v2777 = vpop.f32.mrf.mxu0
        %v2778 = vadd.f32 %v2530, %v2777
        %v2779 = vpop.f32.mrf.mxu0
        %2780 = vmatprep.mubr.bf16.mxu0 0
        %2781 = vmatmul.mubr.bf16.gmra.mxu0 %v2482
        %v2782 = vpop.f32.mrf.mxu0
        %v2783 = vadd.f32 %v2530, %v2782
        %v2784 = vpop.f32.mrf.mxu0
        %v2785 = vpop.f32.mrf.mxu0
        %v2786 = vadd.f32 %v2530, %v2785
        %v2787 = vpop.f32.mrf.mxu0
        %2788 = vmatprep.mubr.bf16.mxu0 0
        %2789 = vmatmul.mubr.bf16.gmra.mxu0 %v2483
        %v2790 = vpop.f32.mrf.mxu0
        %v2791 = vadd.f32 %v2530, %v2790
        %v2792 = vpop.f32.mrf.mxu0
        %v2793 = vpop.f32.mrf.mxu0
        %v2794 = vadd.f32 %v2530, %v2793
        %v2795 = vpop.f32.mrf.mxu0
        %2796 = vmatprep.mubr.bf16.mxu0 0
        %2797 = vmatmul.mubr.bf16.gmra.mxu0 %v2484
        %v2798 = vpop.f32.mrf.mxu0
        %v2799 = vadd.f32 %v2530, %v2798
        %v2800 = vpop.f32.mrf.mxu0
        %v2801 = vpop.f32.mrf.mxu0
        %v2802 = vadd.f32 %v2530, %v2801
        %v2803 = vpop.f32.mrf.mxu0
        %2804 = vmatprep.mubr.bf16.mxu0 0
        %2805 = vmatmul.mubr.bf16.gmra.mxu0 %v2485
        %v2806 = vpop.f32.mrf.mxu0
        %v2807 = vadd.f32 %v2530, %v2806
        %v2808 = vpop.f32.mrf.mxu0
        %v2809 = vpop.f32.mrf.mxu0
        %v2810 = vadd.f32 %v2530, %v2809
        %v2811 = vpop.f32.mrf.mxu0
        %2812 = vmatprep.mubr.bf16.mxu0 0
        %2813 = vmatmul.mubr.bf16.gmra.mxu0 %v2486
        %v2814 = vpop.f32.mrf.mxu0
        %v2815 = vadd.f32 %v2530, %v2814
        %v2816 = vpop.f32.mrf.mxu0
        %v2817 = vpop.f32.mrf.mxu0
        %v2818 = vadd.f32 %v2530, %v2817
        %v2819 = vpop.f32.mrf.mxu0
        %2820 = vmatprep.mubr.bf16.mxu0 0
        %2821 = vmatmul.mubr.bf16.gmra.mxu0 %v2487
        %v2822 = vpop.f32.mrf.mxu0
        %v2823 = vadd.f32 %v2530, %v2822
        %v2824 = vpop.f32.mrf.mxu0
        %v2825 = vpop.f32.mrf.mxu0
        %v2826 = vadd.f32 %v2530, %v2825
        %v2827 = vpop.f32.mrf.mxu0
        %2828 = vmatprep.mubr.bf16.mxu0 0
        %2829 = vmatmul.mubr.bf16.gmra.mxu0 %v2488
        %v2830 = vpop.f32.mrf.mxu0
        %v2831 = vadd.f32 %v2530, %v2830
        %v2832 = vpop.f32.mrf.mxu0
        %v2833 = vpop.f32.mrf.mxu0
        %v2834 = vadd.f32 %v2530, %v2833
        %v2835 = vpop.f32.mrf.mxu0
        %2836 = vmatprep.mubr.bf16.mxu0 0
        %2837 = vmatmul.mubr.bf16.gmra.mxu0 %v2489
        %v2838 = vpop.f32.mrf.mxu0
        %v2839 = vadd.f32 %v2530, %v2838
        %v2840 = vpop.f32.mrf.mxu0
        %v2841 = vpop.f32.mrf.mxu0
        %v2842 = vadd.f32 %v2530, %v2841
        %v2843 = vpop.f32.mrf.mxu0
        %2844 = vmatprep.mubr.bf16.mxu0 0
        %2845 = vmatmul.mubr.bf16.gmra.mxu0 %v2490
        %v2846 = vpop.f32.mrf.mxu0
        %v2847 = vadd.f32 %v2530, %v2846
        %v2848 = vpop.f32.mrf.mxu0
        %v2849 = vpop.f32.mrf.mxu0
        %v2850 = vadd.f32 %v2530, %v2849
        %v2851 = vpop.f32.mrf.mxu0
        %2852 = vmatprep.mubr.bf16.mxu0 0
        %2853 = vmatmul.mubr.bf16.gmra.mxu0 %v2491
        %v2854 = vpop.f32.mrf.mxu0
        %v2855 = vadd.f32 %v2530, %v2854
        %v2856 = vpop.f32.mrf.mxu0
        %v2857 = vpop.f32.mrf.mxu0
        %v2858 = vadd.f32 %v2530, %v2857
        %v2859 = vpop.f32.mrf.mxu0
        %2860 = vmatprep.mubr.bf16.mxu0 0
        %2861 = vmatmul.mubr.bf16.gmra.mxu0 %v2492
        %v2862 = vpop.f32.mrf.mxu0
        %v2863 = vadd.f32 %v2530, %v2862
        %v2864 = vpop.f32.mrf.mxu0
        %v2865 = vpop.f32.mrf.mxu0
        %v2866 = vadd.f32 %v2530, %v2865
        %v2867 = vpop.f32.mrf.mxu0
        %2868 = vmatprep.mubr.bf16.mxu0 0
        %2869 = vmatmul.mubr.bf16.gmra.mxu0 %v2493
        %v2870 = vpop.f32.mrf.mxu0
        %v2871 = vadd.f32 %v2530, %v2870
        %v2872 = vpop.f32.mrf.mxu0
        %v2873 = vpop.f32.mrf.mxu0
        %v2874 = vadd.f32 %v2530, %v2873
        %v2875 = vpop.f32.mrf.mxu0
        %2876 = vmatprep.mubr.bf16.mxu0 0
        %2877 = vmatmul.mubr.bf16.gmra.mxu0 %v2494
        %v2878 = vpop.f32.mrf.mxu0
        %v2879 = vadd.f32 %v2530, %v2878
        %v2880 = vpop.f32.mrf.mxu0
        %v2881 = vpop.f32.mrf.mxu0
        %v2882 = vadd.f32 %v2530, %v2881
        %v2883 = vpop.f32.mrf.mxu0
        %2884 = vmatprep.mubr.bf16.mxu0 0
        %2885 = vmatmul.mubr.bf16.gmra.mxu0 %v2495
        %v2886 = vpop.f32.mrf.mxu0
        %v2887 = vadd.f32 %v2530, %v2886
        %v2888 = vpop.f32.mrf.mxu0
        %v2889 = vpop.f32.mrf.mxu0
        %v2890 = vadd.f32 %v2530, %v2889
        %v2891 = vpop.f32.mrf.mxu0
        %2892 = vmatprep.mubr.bf16.mxu0 0
        %2893 = vmatmul.mubr.bf16.gmra.mxu0 %v2496
        %v2894 = vpop.f32.mrf.mxu0
        %v2895 = vadd.f32 %v2530, %v2894
        %v2896 = vpop.f32.mrf.mxu0
        %v2897 = vpop.f32.mrf.mxu0
        %v2898 = vadd.f32 %v2530, %v2897
        %v2899 = vpop.f32.mrf.mxu0
        %2900 = vmatprep.mubr.bf16.mxu0 0
        %2901 = vmatmul.mubr.bf16.gmra.mxu0 %v2497
        %v2902 = vpop.f32.mrf.mxu0
        %v2903 = vadd.f32 %v2530, %v2902
        %v2904 = vpop.f32.mrf.mxu0
        %v2905 = vpop.f32.mrf.mxu0
        %v2906 = vadd.f32 %v2530, %v2905
        %v2907 = vpop.f32.mrf.mxu0
        %2908 = vmatprep.mubr.bf16.mxu0 0
        %2909 = vmatmul.mubr.bf16.gmra.mxu0 %v2498
        %v2910 = vpop.f32.mrf.mxu0
        %v2911 = vadd.f32 %v2530, %v2910
        %v2912 = vpop.f32.mrf.mxu0
        %v2913 = vpop.f32.mrf.mxu0
        %v2914 = vadd.f32 %v2530, %v2913
        %v2915 = vpop.f32.mrf.mxu0
        %2916 = vmatprep.mubr.bf16.mxu0 0
        %2917 = vmatmul.mubr.bf16.gmra.mxu0 %v2499
        %v2918 = vpop.f32.mrf.mxu0
        %v2919 = vadd.f32 %v2530, %v2918
        %v2920 = vpop.f32.mrf.mxu0
        %v2921 = vpop.f32.mrf.mxu0
        %v2922 = vadd.f32 %v2530, %v2921
        %v2923 = vpop.f32.mrf.mxu0
        %2924 = vmatprep.mubr.bf16.mxu0 0
        %2925 = vmatmul.mubr.bf16.gmra.mxu0 %v2500
        %v2926 = vpop.f32.mrf.mxu0
        %v2927 = vadd.f32 %v2530, %v2926
        %v2928 = vpop.f32.mrf.mxu0
        %v2929 = vpop.f32.mrf.mxu0
        %v2930 = vadd.f32 %v2530, %v2929
        %v2931 = vpop.f32.mrf.mxu0
        %2932 = vmatprep.mubr.bf16.mxu0 0
        %2933 = vmatmul.mubr.bf16.gmra.mxu0 %v2501
        %v2934 = vpop.f32.mrf.mxu0
        %v2935 = vadd.f32 %v2530, %v2934
        %v2936 = vpop.f32.mrf.mxu0
        %v2937 = vpop.f32.mrf.mxu0
        %v2938 = vadd.f32 %v2530, %v2937
        %v2939 = vpop.f32.mrf.mxu0
        %2940 = vmatprep.mubr.bf16.mxu0 0
        %2941 = vmatmul.mubr.bf16.gmra.mxu0 %v2502
        %v2942 = vpop.f32.mrf.mxu0
        %v2943 = vadd.f32 %v2530, %v2942
        %v2944 = vpop.f32.mrf.mxu0
        %v2945 = vpop.f32.mrf.mxu0
        %v2946 = vadd.f32 %v2530, %v2945
        %v2947 = vpop.f32.mrf.mxu0
        %2948 = vmatprep.mubr.bf16.mxu0 0
        %2949 = vmatmul.mubr.bf16.gmra.mxu0 %v2503
        %v2950 = vpop.f32.mrf.mxu0
        %v2951 = vadd.f32 %v2530, %v2950
        %v2952 = vpop.f32.mrf.mxu0
        %v2953 = vpop.f32.mrf.mxu0
        %v2954 = vadd.f32 %v2530, %v2953
        %v2955 = vpop.f32.mrf.mxu0
        %2956 = vmatprep.mubr.bf16.mxu0 0
        %2957 = vmatmul.mubr.bf16.gmra.mxu0 %v2504
        %v2958 = vpop.f32.mrf.mxu0
        %v2959 = vadd.f32 %v2530, %v2958
        %v2960 = vpop.f32.mrf.mxu0
        %v2961 = vpop.f32.mrf.mxu0
        %v2962 = vadd.f32 %v2530, %v2961
        %v2963 = vpop.f32.mrf.mxu0
        %2964 = vmatprep.mubr.bf16.mxu0 0
        %2965 = vmatmul.mubr.bf16.gmra.mxu0 %v2505
        %v2966 = vpop.f32.mrf.mxu0
        %v2967 = vadd.f32 %v2530, %v2966
        %v2968 = vpop.f32.mrf.mxu0
        %v2969 = vpop.f32.mrf.mxu0
        %v2970 = vadd.f32 %v2530, %v2969
        %v2971 = vpop.f32.mrf.mxu0
        %2972 = vmatprep.mubr.bf16.mxu0 0
        %2973 = vmatmul.mubr.bf16.gmra.mxu0 %v2506
        %v2974 = vpop.f32.mrf.mxu0
        %v2975 = vadd.f32 %v2530, %v2974
        %v2976 = vpop.f32.mrf.mxu0
        %v2977 = vpop.f32.mrf.mxu0
        %v2978 = vadd.f32 %v2530, %v2977
        %v2979 = vpop.f32.mrf.mxu0
        %2980 = vmatprep.mubr.bf16.mxu0 0
        %2981 = vmatmul.mubr.bf16.gmra.mxu0 %v2507
        %v2982 = vpop.f32.mrf.mxu0
        %v2983 = vadd.f32 %v2530, %v2982
        %v2984 = vpop.f32.mrf.mxu0
        %v2985 = vpop.f32.mrf.mxu0
        %v2986 = vadd.f32 %v2530, %v2985
        %v2987 = vpop.f32.mrf.mxu0
        %2988 = vmatprep.mubr.bf16.mxu0 0
        %2989 = vmatmul.mubr.bf16.gmra.mxu0 %v2508
        %v2990 = vpop.f32.mrf.mxu0
        %v2991 = vadd.f32 %v2530, %v2990
        %v2992 = vpop.f32.mrf.mxu0
        %v2993 = vpop.f32.mrf.mxu0
        %v2994 = vadd.f32 %v2530, %v2993
        %v2995 = vpop.f32.mrf.mxu0
        %2996 = vdwg.mxu0
        %v2997 = vmax.f32 %v2615, 0.0
        %v2998 = vmax.f32 %v2618, 0.0
        %v2999 = vmax.f32 %v2623, 0.0
        %v3000 = vmax.f32 %v2626, 0.0
        %v3001 = vmax.f32 %v2631, 0.0
        %v3002 = vmax.f32 %v2634, 0.0
        %v3003 = vmax.f32 %v2639, 0.0
        %v3004 = vmax.f32 %v2642, 0.0
        %v3005 = vmax.f32 %v2647, 0.0
        %v3006 = vmax.f32 %v2650, 0.0
        %v3007 = vmax.f32 %v2655, 0.0
        %v3008 = vmax.f32 %v2658, 0.0
        %v3009 = vmax.f32 %v2663, 0.0
        %v3010 = vmax.f32 %v2666, 0.0
        %v3011 = vmax.f32 %v2671, 0.0
        %v3012 = vmax.f32 %v2674, 0.0
        %v3013 = vmax.f32 %v2679, 0.0
        %v3014 = vmax.f32 %v2682, 0.0
        %v3015 = vmax.f32 %v2687, 0.0
        %v3016 = vmax.f32 %v2690, 0.0
        %v3017 = vmax.f32 %v2695, 0.0
        %v3018 = vmax.f32 %v2698, 0.0
        %v3019 = vmax.f32 %v2703, 0.0
        %v3020 = vmax.f32 %v2706, 0.0
        %v3021 = vmax.f32 %v2711, 0.0
        %v3022 = vmax.f32 %v2714, 0.0
        %v3023 = vmax.f32 %v2719, 0.0
        %v3024 = vmax.f32 %v2722, 0.0
        %v3025 = vmax.f32 %v2727, 0.0
        %v3026 = vmax.f32 %v2730, 0.0
        %v3027 = vmax.f32 %v2735, 0.0
        %v3028 = vmax.f32 %v2738, 0.0
        %v3029 = vmax.f32 %v2743, 0.0
        %v3030 = vmax.f32 %v2746, 0.0
        %v3031 = vmax.f32 %v2751, 0.0
        %v3032 = vmax.f32 %v2754, 0.0
        %v3033 = vmax.f32 %v2759, 0.0
        %v3034 = vmax.f32 %v2762, 0.0
        %v3035 = vmax.f32 %v2767, 0.0
        %v3036 = vmax.f32 %v2770, 0.0
        %v3037 = vmax.f32 %v2775, 0.0
        %v3038 = vmax.f32 %v2778, 0.0
        %v3039 = vmax.f32 %v2783, 0.0
        %v3040 = vmax.f32 %v2786, 0.0
        %v3041 = vmax.f32 %v2791, 0.0
        %v3042 = vmax.f32 %v2794, 0.0
        %v3043 = vmax.f32 %v2799, 0.0
        %v3044 = vmax.f32 %v2802, 0.0
        %v3045 = vmax.f32 %v2807, 0.0
        %v3046 = vmax.f32 %v2810, 0.0
        %v3047 = vmax.f32 %v2815, 0.0
        %v3048 = vmax.f32 %v2818, 0.0
        %v3049 = vmax.f32 %v2823, 0.0
        %v3050 = vmax.f32 %v2826, 0.0
        %v3051 = vmax.f32 %v2831, 0.0
        %v3052 = vmax.f32 %v2834, 0.0
        %v3053 = vmax.f32 %v2839, 0.0
        %v3054 = vmax.f32 %v2842, 0.0
        %v3055 = vmax.f32 %v2847, 0.0
        %v3056 = vmax.f32 %v2850, 0.0
        %v3057 = vmax.f32 %v2855, 0.0
        %v3058 = vmax.f32 %v2858, 0.0
        %v3059 = vmax.f32 %v2863, 0.0
        %v3060 = vmax.f32 %v2866, 0.0
        %v3061 = vmax.f32 %v2871, 0.0
        %v3062 = vmax.f32 %v2874, 0.0
        %v3063 = vmax.f32 %v2879, 0.0
        %v3064 = vmax.f32 %v2882, 0.0
        %v3065 = vmax.f32 %v2887, 0.0
        %v3066 = vmax.f32 %v2890, 0.0
        %v3067 = vmax.f32 %v2895, 0.0
        %v3068 = vmax.f32 %v2898, 0.0
        %v3069 = vmax.f32 %v2903, 0.0
        %v3070 = vmax.f32 %v2906, 0.0
        %v3071 = vmax.f32 %v2911, 0.0
        %v3072 = vmax.f32 %v2914, 0.0
        %v3073 = vmax.f32 %v2919, 0.0
        %v3074 = vmax.f32 %v2922, 0.0
        %v3075 = vmax.f32 %v2927, 0.0
        %v3076 = vmax.f32 %v2930, 0.0
        %v3077 = vmax.f32 %v2935, 0.0
        %v3078 = vmax.f32 %v2938, 0.0
        %v3079 = vmax.f32 %v2943, 0.0
        %v3080 = vmax.f32 %v2946, 0.0
        %v3081 = vmax.f32 %v2951, 0.0
        %v3082 = vmax.f32 %v2954, 0.0
        %v3083 = vmax.f32 %v2959, 0.0
        %v3084 = vmax.f32 %v2962, 0.0
        %v3085 = vmax.f32 %v2967, 0.0
        %v3086 = vmax.f32 %v2970, 0.0
        %v3087 = vmax.f32 %v2975, 0.0
        %v3088 = vmax.f32 %v2978, 0.0
        %v3089 = vmax.f32 %v2983, 0.0
        %v3090 = vmax.f32 %v2986, 0.0
        %v3091 = vmax.f32 %v2991, 0.0
        %v3092 = vmax.f32 %v2994, 0.0
        %v3093 = vpack.c.bf16 %v2998, %v2997
        %v3094 = vpack.c.bf16 %v3000, %v2999
        %v3095 = vpack.c.bf16 %v3002, %v3001
        %v3096 = vpack.c.bf16 %v3004, %v3003
        %v3097 = vpack.c.bf16 %v3006, %v3005
        %v3098 = vpack.c.bf16 %v3008, %v3007
        %v3099 = vpack.c.bf16 %v3010, %v3009
        %v3100 = vpack.c.bf16 %v3012, %v3011
        %v3101 = vpack.c.bf16 %v3014, %v3013
        %v3102 = vpack.c.bf16 %v3016, %v3015
        %v3103 = vpack.c.bf16 %v3018, %v3017
        %v3104 = vpack.c.bf16 %v3020, %v3019
        %v3105 = vpack.c.bf16 %v3022, %v3021
        %v3106 = vpack.c.bf16 %v3024, %v3023
        %v3107 = vpack.c.bf16 %v3026, %v3025
        %v3108 = vpack.c.bf16 %v3028, %v3027
        %v3109 = vpack.c.bf16 %v3030, %v3029
        %v3110 = vpack.c.bf16 %v3032, %v3031
        %v3111 = vpack.c.bf16 %v3034, %v3033
        %v3112 = vpack.c.bf16 %v3036, %v3035
        %v3113 = vpack.c.bf16 %v3038, %v3037
        %v3114 = vpack.c.bf16 %v3040, %v3039
        %v3115 = vpack.c.bf16 %v3042, %v3041
        %v3116 = vpack.c.bf16 %v3044, %v3043
        %v3117 = vpack.c.bf16 %v3046, %v3045
        %v3118 = vpack.c.bf16 %v3048, %v3047
        %v3119 = vpack.c.bf16 %v3050, %v3049
        %v3120 = vpack.c.bf16 %v3052, %v3051
        %v3121 = vpack.c.bf16 %v3054, %v3053
        %v3122 = vpack.c.bf16 %v3056, %v3055
        %v3123 = vpack.c.bf16 %v3058, %v3057
        %v3124 = vpack.c.bf16 %v3060, %v3059
        %v3125 = vpack.c.bf16 %v3062, %v3061
        %v3126 = vpack.c.bf16 %v3064, %v3063
        %v3127 = vpack.c.bf16 %v3066, %v3065
        %v3128 = vpack.c.bf16 %v3068, %v3067
        %v3129 = vpack.c.bf16 %v3070, %v3069
        %v3130 = vpack.c.bf16 %v3072, %v3071
        %v3131 = vpack.c.bf16 %v3074, %v3073
        %v3132 = vpack.c.bf16 %v3076, %v3075
        %v3133 = vpack.c.bf16 %v3078, %v3077
        %v3134 = vpack.c.bf16 %v3080, %v3079
        %v3135 = vpack.c.bf16 %v3082, %v3081
        %v3136 = vpack.c.bf16 %v3084, %v3083
        %v3137 = vpack.c.bf16 %v3086, %v3085
        %v3138 = vpack.c.bf16 %v3088, %v3087
        %v3139 = vpack.c.bf16 %v3090, %v3089
        %v3140 = vpack.c.bf16 %v3092, %v3091
        %v3141 = vld [vmem:[%s8] sm:$0xff]
        %v3142 = vld [vmem:[%s8 + $0x8] sm:$0xf]
        %v3143 = vld [vmem:[%s8 + $0xc] sm:$0xff]
        %v3144 = vld [vmem:[%s8 + $0x14] sm:$0xf]
        %v3145 = vld [vmem:[%s8 + $0x18] sm:$0xff]
        %v3146 = vld [vmem:[%s8 + $0x20] sm:$0xf]
        %v3147 = vld [vmem:[%s8 + $0x24] sm:$0xff]
        %v3148 = vld [vmem:[%s8 + $0x2c] sm:$0xf]
        %v3149 = vld [vmem:[%s8 + $0x30] sm:$0xff]
        %v3150 = vld [vmem:[%s8 + $0x38] sm:$0xf]
        %v3151 = vld [vmem:[%s8 + $0x3c] sm:$0xff]
        %v3152 = vld [vmem:[%s8 + $0x44] sm:$0xf]
        %v3153 = vld [vmem:[%s8 + $0x48] sm:$0xff]
        %v3154 = vld [vmem:[%s8 + $0x50] sm:$0xf]
        %v3155 = vld [vmem:[%s8 + $0x54] sm:$0xff]
        %v3156 = vld [vmem:[%s8 + $0x5c] sm:$0xf]
        %v3157 = vld [vmem:[%s8 + $0x60] sm:$0xff]
        %v3158 = vld [vmem:[%s8 + $0x68] sm:$0xf]
        %v3159 = vld [vmem:[%s8 + $0x6c] sm:$0xff]
        %v3160 = vld [vmem:[%s8 + $0x74] sm:$0xf]
        %v3161 = vld [vmem:[%s8 + $0x78] sm:$0xff]
        %v3162 = vld [vmem:[%s8 + $0x80] sm:$0xf]
        %v3163 = vld [vmem:[%s8 + $0x84] sm:$0xff]
        %v3164 = vld [vmem:[%s8 + $0x8c] sm:$0xf]
        %v3165 = vld [vmem:[%s8 + $0x90] sm:$0xff]
        %v3166 = vld [vmem:[%s8 + $0x98] sm:$0xf]
        %v3167 = vld [vmem:[%s8 + $0x9c] sm:$0xff]
        %v3168 = vld [vmem:[%s8 + $0xa4] sm:$0xf]
        %v3169 = vld [vmem:[%s8 + $0xa8] sm:$0xff]
        %v3170 = vld [vmem:[%s8 + $0xb0] sm:$0xf]
        %v3171 = vld [vmem:[%s8 + $0xb4] sm:$0xff]
        %v3172 = vld [vmem:[%s8 + $0xbc] sm:$0xf]
        %v3173 = vld [vmem:[%s9] sm:$0x7]
        %v3175 = vlaneseq
        %v3176 = vshrl.u32 %v3175, 7
        %v3177 = vsub.s32 0, %v3176
        %v3178 = vrot.slane %v3173, %v3177
        %v3179 = vlaneseq
        %v3180 = vshrl.u32 %v3179, 7
        %v3181 = vsub.s32 1, %v3180
        %v3182 = vrot.slane %v3173, %v3181
        %v3183 = vlaneseq
        %v3184 = vshrl.u32 %v3183, 7
        %v3185 = vsub.s32 2, %v3184
        %v3186 = vrot.slane %v3173, %v3185
        %v3222 = vunpack.c.l.b16 %v3141
        %v3223 = vunpack.c.h.b16 %v3141
        %v3224 = vunpack.c.l.b16 %v3142
        %v3225 = vunpack.c.l.b16 %v3143
        %v3226 = vunpack.c.h.b16 %v3143
        %v3227 = vunpack.c.l.b16 %v3144
        %v3228 = vunpack.c.l.b16 %v3145
        %v3229 = vunpack.c.h.b16 %v3145
        %v3230 = vunpack.c.l.b16 %v3146
        %v3231 = vunpack.c.l.b16 %v3147
        %v3232 = vunpack.c.h.b16 %v3147
        %v3233 = vunpack.c.l.b16 %v3148
        %v3234 = vunpack.c.l.b16 %v3149
        %v3235 = vunpack.c.h.b16 %v3149
        %v3236 = vunpack.c.l.b16 %v3150
        %v3237 = vunpack.c.l.b16 %v3151
        %v3238 = vunpack.c.h.b16 %v3151
        %v3239 = vunpack.c.l.b16 %v3152
        %v3240 = vunpack.c.l.b16 %v3153
        %v3241 = vunpack.c.h.b16 %v3153
        %v3242 = vunpack.c.l.b16 %v3154
        %v3243 = vunpack.c.l.b16 %v3155
        %v3244 = vunpack.c.h.b16 %v3155
        %v3245 = vunpack.c.l.b16 %v3156
        %v3246 = vunpack.c.l.b16 %v3157
        %v3247 = vunpack.c.h.b16 %v3157
        %v3248 = vunpack.c.l.b16 %v3158
        %v3249 = vunpack.c.l.b16 %v3159
        %v3250 = vunpack.c.h.b16 %v3159
        %v3251 = vunpack.c.l.b16 %v3160
        %v3252 = vunpack.c.l.b16 %v3161
        %v3253 = vunpack.c.h.b16 %v3161
        %v3254 = vunpack.c.l.b16 %v3162
        %v3255 = vunpack.c.l.b16 %v3163
        %v3256 = vunpack.c.h.b16 %v3163
        %v3257 = vunpack.c.l.b16 %v3164
        %v3258 = vunpack.c.l.b16 %v3165
        %v3259 = vunpack.c.h.b16 %v3165
        %v3260 = vunpack.c.l.b16 %v3166
        %v3261 = vunpack.c.l.b16 %v3167
        %v3262 = vunpack.c.h.b16 %v3167
        %v3263 = vunpack.c.l.b16 %v3168
        %v3264 = vunpack.c.l.b16 %v3169
        %v3265 = vunpack.c.h.b16 %v3169
        %v3266 = vunpack.c.l.b16 %v3170
        %v3267 = vunpack.c.l.b16 %v3171
        %v3268 = vunpack.c.h.b16 %v3171
        %v3269 = vunpack.c.l.b16 %v3172
        %v3270 = vpack.c.b16 %v3225, %v3222
        %v3271 = vpack.c.b16 %v3226, %v3223
        %v3272 = vpack.c.b16 %v3227, %v3224
        %v3273 = vpack.c.b16 %v3231, %v3228
        %v3274 = vpack.c.b16 %v3232, %v3229
        %v3275 = vpack.c.b16 %v3233, %v3230
        %v3276 = vpack.c.b16 %v3237, %v3234
        %v3277 = vpack.c.b16 %v3238, %v3235
        %v3278 = vpack.c.b16 %v3239, %v3236
        %v3279 = vpack.c.b16 %v3243, %v3240
        %v3280 = vpack.c.b16 %v3244, %v3241
        %v3281 = vpack.c.b16 %v3245, %v3242
        %v3282 = vpack.c.b16 %v3249, %v3246
        %v3283 = vpack.c.b16 %v3250, %v3247
        %v3284 = vpack.c.b16 %v3251, %v3248
        %v3285 = vpack.c.b16 %v3255, %v3252
        %v3286 = vpack.c.b16 %v3256, %v3253
        %v3287 = vpack.c.b16 %v3257, %v3254
        %v3288 = vpack.c.b16 %v3261, %v3258
        %v3289 = vpack.c.b16 %v3262, %v3259
        %v3290 = vpack.c.b16 %v3263, %v3260
        %v3291 = vpack.c.b16 %v3267, %v3264
        %v3292 = vpack.c.b16 %v3268, %v3265
        %v3293 = vpack.c.b16 %v3269, %v3266
        %3318 = vmatprep.subr.bf16.mxu0 %v3292
        %3319 = vmatpush1.bf16.msra.mxu0 %v3291
        %3320 = vmatprep.subr.bf16.mxu0 %v3289
        %3321 = vmatpush1.bf16.msra.mxu0 %v3288
        %3322 = vmatprep.subr.bf16.mxu0 %v3286
        %3323 = vmatpush1.bf16.msra.mxu0 %v3285
        %3324 = vmatprep.subr.bf16.mxu0 %v3283
        %3325 = vmatpush1.bf16.msra.mxu0 %v3282
        %3326 = vmatprep.subr.bf16.mxu0 %v3280
        %3327 = vmatpush1.bf16.msra.mxu0 %v3279
        %3328 = vmatprep.subr.bf16.mxu0 %v3277
        %3329 = vmatpush1.bf16.msra.mxu0 %v3276
        %3330 = vmatprep.subr.bf16.mxu0 %v3274
        %3331 = vmatpush1.bf16.msra.mxu0 %v3273
        %3332 = vmatprep.subr.bf16.mxu0 %v3271
        %3333 = vmatpush1.bf16.msra.mxu0 %v3270
        %3334 = vmatprep.subr.bf16.mxu0 0
        %3335 = vmatpush2.bf16.msra.mxu0 0
        %3336 = vmatprep.subr.bf16.mxu0 0
        %3337 = vmatpush2.bf16.msra.mxu0 0
        %3338 = vmatprep.subr.bf16.mxu0 0
        %3339 = vmatpush2.bf16.msra.mxu0 0
        %3340 = vmatprep.subr.bf16.mxu0 0
        %3341 = vmatpush2.bf16.msra.mxu0 0
        %3342 = vmatprep.subr.bf16.mxu0 0
        %3343 = vmatpush2.bf16.msra.mxu0 0
        %3344 = vmatprep.subr.bf16.mxu0 0
        %3345 = vmatpush2.bf16.msra.mxu0 0
        %3346 = vmatprep.subr.bf16.mxu0 0
        %3347 = vmatpush2.bf16.msra.mxu0 0
        %3348 = vmatprep.subr.bf16.mxu0 0
        %3349 = vmatpush2.bf16.msra.mxu0 0
        %3350 = vmatprep.mubr.bf16.mxu0 0
        %3351 = vmatmul.mubr.bf16.gmra.mxu0 %v3093
        %v3352 = vpop.f32.mrf.mxu0
        %v3353 = vadd.f32 %v3178, %v3352
        %v3354 = vpop.f32.mrf.mxu0
        %v3355 = vadd.f32 %v3182, %v3354
        %v3356 = vpop.f32.mrf.mxu0
        %v3357 = vadd.f32 %v3178, %v3356
        %v3358 = vpop.f32.mrf.mxu0
        %v3359 = vadd.f32 %v3182, %v3358
        %3360 = vmatprep.mubr.bf16.mxu0 0
        %3361 = vmatmul.mubr.bf16.gmra.mxu0 %v3094
        %v3362 = vpop.f32.mrf.mxu0
        %v3363 = vadd.f32 %v3178, %v3362
        %v3364 = vpop.f32.mrf.mxu0
        %v3365 = vadd.f32 %v3182, %v3364
        %v3366 = vpop.f32.mrf.mxu0
        %v3367 = vadd.f32 %v3178, %v3366
        %v3368 = vpop.f32.mrf.mxu0
        %v3369 = vadd.f32 %v3182, %v3368
        %3370 = vmatprep.mubr.bf16.mxu0 0
        %3371 = vmatmul.mubr.bf16.gmra.mxu0 %v3095
        %v3372 = vpop.f32.mrf.mxu0
        %v3373 = vadd.f32 %v3178, %v3372
        %v3374 = vpop.f32.mrf.mxu0
        %v3375 = vadd.f32 %v3182, %v3374
        %v3376 = vpop.f32.mrf.mxu0
        %v3377 = vadd.f32 %v3178, %v3376
        %v3378 = vpop.f32.mrf.mxu0
        %v3379 = vadd.f32 %v3182, %v3378
        %3380 = vmatprep.mubr.bf16.mxu0 0
        %3381 = vmatmul.mubr.bf16.gmra.mxu0 %v3096
        %v3382 = vpop.f32.mrf.mxu0
        %v3383 = vadd.f32 %v3178, %v3382
        %v3384 = vpop.f32.mrf.mxu0
        %v3385 = vadd.f32 %v3182, %v3384
        %v3386 = vpop.f32.mrf.mxu0
        %v3387 = vadd.f32 %v3178, %v3386
        %v3388 = vpop.f32.mrf.mxu0
        %v3389 = vadd.f32 %v3182, %v3388
        %3390 = vmatprep.mubr.bf16.mxu0 0
        %3391 = vmatmul.mubr.bf16.gmra.mxu0 %v3097
        %v3392 = vpop.f32.mrf.mxu0
        %v3393 = vadd.f32 %v3178, %v3392
        %v3394 = vpop.f32.mrf.mxu0
        %v3395 = vadd.f32 %v3182, %v3394
        %v3396 = vpop.f32.mrf.mxu0
        %v3397 = vadd.f32 %v3178, %v3396
        %v3398 = vpop.f32.mrf.mxu0
        %v3399 = vadd.f32 %v3182, %v3398
        %3400 = vmatprep.mubr.bf16.mxu0 0
        %3401 = vmatmul.mubr.bf16.gmra.mxu0 %v3098
        %v3402 = vpop.f32.mrf.mxu0
        %v3403 = vadd.f32 %v3178, %v3402
        %v3404 = vpop.f32.mrf.mxu0
        %v3405 = vadd.f32 %v3182, %v3404
        %v3406 = vpop.f32.mrf.mxu0
        %v3407 = vadd.f32 %v3178, %v3406
        %v3408 = vpop.f32.mrf.mxu0
        %v3409 = vadd.f32 %v3182, %v3408
        %3410 = vmatprep.mubr.bf16.mxu0 0
        %3411 = vmatmul.mubr.bf16.gmra.mxu0 %v3099
        %v3412 = vpop.f32.mrf.mxu0
        %v3413 = vadd.f32 %v3178, %v3412
        %v3414 = vpop.f32.mrf.mxu0
        %v3415 = vadd.f32 %v3182, %v3414
        %v3416 = vpop.f32.mrf.mxu0
        %v3417 = vadd.f32 %v3178, %v3416
        %v3418 = vpop.f32.mrf.mxu0
        %v3419 = vadd.f32 %v3182, %v3418
        %3420 = vmatprep.mubr.bf16.mxu0 0
        %3421 = vmatmul.mubr.bf16.gmra.mxu0 %v3100
        %v3422 = vpop.f32.mrf.mxu0
        %v3423 = vadd.f32 %v3178, %v3422
        %v3424 = vpop.f32.mrf.mxu0
        %v3425 = vadd.f32 %v3182, %v3424
        %v3426 = vpop.f32.mrf.mxu0
        %v3427 = vadd.f32 %v3178, %v3426
        %v3428 = vpop.f32.mrf.mxu0
        %v3429 = vadd.f32 %v3182, %v3428
        %3430 = vmatprep.mubr.bf16.mxu0 0
        %3431 = vmatmul.mubr.bf16.gmra.mxu0 %v3101
        %v3432 = vpop.f32.mrf.mxu0
        %v3433 = vadd.f32 %v3178, %v3432
        %v3434 = vpop.f32.mrf.mxu0
        %v3435 = vadd.f32 %v3182, %v3434
        %v3436 = vpop.f32.mrf.mxu0
        %v3437 = vadd.f32 %v3178, %v3436
        %v3438 = vpop.f32.mrf.mxu0
        %v3439 = vadd.f32 %v3182, %v3438
        %3440 = vmatprep.mubr.bf16.mxu0 0
        %3441 = vmatmul.mubr.bf16.gmra.mxu0 %v3102
        %v3442 = vpop.f32.mrf.mxu0
        %v3443 = vadd.f32 %v3178, %v3442
        %v3444 = vpop.f32.mrf.mxu0
        %v3445 = vadd.f32 %v3182, %v3444
        %v3446 = vpop.f32.mrf.mxu0
        %v3447 = vadd.f32 %v3178, %v3446
        %v3448 = vpop.f32.mrf.mxu0
        %v3449 = vadd.f32 %v3182, %v3448
        %3450 = vmatprep.mubr.bf16.mxu0 0
        %3451 = vmatmul.mubr.bf16.gmra.mxu0 %v3103
        %v3452 = vpop.f32.mrf.mxu0
        %v3453 = vadd.f32 %v3178, %v3452
        %v3454 = vpop.f32.mrf.mxu0
        %v3455 = vadd.f32 %v3182, %v3454
        %v3456 = vpop.f32.mrf.mxu0
        %v3457 = vadd.f32 %v3178, %v3456
        %v3458 = vpop.f32.mrf.mxu0
        %v3459 = vadd.f32 %v3182, %v3458
        %3460 = vmatprep.mubr.bf16.mxu0 0
        %3461 = vmatmul.mubr.bf16.gmra.mxu0 %v3104
        %v3462 = vpop.f32.mrf.mxu0
        %v3463 = vadd.f32 %v3178, %v3462
        %v3464 = vpop.f32.mrf.mxu0
        %v3465 = vadd.f32 %v3182, %v3464
        %v3466 = vpop.f32.mrf.mxu0
        %v3467 = vadd.f32 %v3178, %v3466
        %v3468 = vpop.f32.mrf.mxu0
        %v3469 = vadd.f32 %v3182, %v3468
        %3470 = vmatprep.mubr.bf16.mxu0 0
        %3471 = vmatmul.mubr.bf16.gmra.mxu0 %v3105
        %v3472 = vpop.f32.mrf.mxu0
        %v3473 = vadd.f32 %v3178, %v3472
        %v3474 = vpop.f32.mrf.mxu0
        %v3475 = vadd.f32 %v3182, %v3474
        %v3476 = vpop.f32.mrf.mxu0
        %v3477 = vadd.f32 %v3178, %v3476
        %v3478 = vpop.f32.mrf.mxu0
        %v3479 = vadd.f32 %v3182, %v3478
        %3480 = vmatprep.mubr.bf16.mxu0 0
        %3481 = vmatmul.mubr.bf16.gmra.mxu0 %v3106
        %v3482 = vpop.f32.mrf.mxu0
        %v3483 = vadd.f32 %v3178, %v3482
        %v3484 = vpop.f32.mrf.mxu0
        %v3485 = vadd.f32 %v3182, %v3484
        %v3486 = vpop.f32.mrf.mxu0
        %v3487 = vadd.f32 %v3178, %v3486
        %v3488 = vpop.f32.mrf.mxu0
        %v3489 = vadd.f32 %v3182, %v3488
        %3490 = vmatprep.mubr.bf16.mxu0 0
        %3491 = vmatmul.mubr.bf16.gmra.mxu0 %v3107
        %v3492 = vpop.f32.mrf.mxu0
        %v3493 = vadd.f32 %v3178, %v3492
        %v3494 = vpop.f32.mrf.mxu0
        %v3495 = vadd.f32 %v3182, %v3494
        %v3496 = vpop.f32.mrf.mxu0
        %v3497 = vadd.f32 %v3178, %v3496
        %v3498 = vpop.f32.mrf.mxu0
        %v3499 = vadd.f32 %v3182, %v3498
        %3500 = vmatprep.mubr.bf16.mxu0 0
        %3501 = vmatmul.mubr.bf16.gmra.mxu0 %v3108
        %v3502 = vpop.f32.mrf.mxu0
        %v3503 = vadd.f32 %v3178, %v3502
        %v3504 = vpop.f32.mrf.mxu0
        %v3505 = vadd.f32 %v3182, %v3504
        %v3506 = vpop.f32.mrf.mxu0
        %v3507 = vadd.f32 %v3178, %v3506
        %v3508 = vpop.f32.mrf.mxu0
        %v3509 = vadd.f32 %v3182, %v3508
        %3510 = vmatprep.mubr.bf16.mxu0 0
        %3511 = vmatmul.mubr.bf16.gmra.mxu0 %v3109
        %v3512 = vpop.f32.mrf.mxu0
        %v3513 = vadd.f32 %v3178, %v3512
        %v3514 = vpop.f32.mrf.mxu0
        %v3515 = vadd.f32 %v3182, %v3514
        %v3516 = vpop.f32.mrf.mxu0
        %v3517 = vadd.f32 %v3178, %v3516
        %v3518 = vpop.f32.mrf.mxu0
        %v3519 = vadd.f32 %v3182, %v3518
        %3520 = vmatprep.mubr.bf16.mxu0 0
        %3521 = vmatmul.mubr.bf16.gmra.mxu0 %v3110
        %v3522 = vpop.f32.mrf.mxu0
        %v3523 = vadd.f32 %v3178, %v3522
        %v3524 = vpop.f32.mrf.mxu0
        %v3525 = vadd.f32 %v3182, %v3524
        %v3526 = vpop.f32.mrf.mxu0
        %v3527 = vadd.f32 %v3178, %v3526
        %v3528 = vpop.f32.mrf.mxu0
        %v3529 = vadd.f32 %v3182, %v3528
        %3530 = vmatprep.mubr.bf16.mxu0 0
        %3531 = vmatmul.mubr.bf16.gmra.mxu0 %v3111
        %v3532 = vpop.f32.mrf.mxu0
        %v3533 = vadd.f32 %v3178, %v3532
        %v3534 = vpop.f32.mrf.mxu0
        %v3535 = vadd.f32 %v3182, %v3534
        %v3536 = vpop.f32.mrf.mxu0
        %v3537 = vadd.f32 %v3178, %v3536
        %v3538 = vpop.f32.mrf.mxu0
        %v3539 = vadd.f32 %v3182, %v3538
        %3540 = vmatprep.mubr.bf16.mxu0 0
        %3541 = vmatmul.mubr.bf16.gmra.mxu0 %v3112
        %v3542 = vpop.f32.mrf.mxu0
        %v3543 = vadd.f32 %v3178, %v3542
        %v3544 = vpop.f32.mrf.mxu0
        %v3545 = vadd.f32 %v3182, %v3544
        %v3546 = vpop.f32.mrf.mxu0
        %v3547 = vadd.f32 %v3178, %v3546
        %v3548 = vpop.f32.mrf.mxu0
        %v3549 = vadd.f32 %v3182, %v3548
        %3550 = vmatprep.mubr.bf16.mxu0 0
        %3551 = vmatmul.mubr.bf16.gmra.mxu0 %v3113
        %v3552 = vpop.f32.mrf.mxu0
        %v3553 = vadd.f32 %v3178, %v3552
        %v3554 = vpop.f32.mrf.mxu0
        %v3555 = vadd.f32 %v3182, %v3554
        %v3556 = vpop.f32.mrf.mxu0
        %v3557 = vadd.f32 %v3178, %v3556
        %v3558 = vpop.f32.mrf.mxu0
        %v3559 = vadd.f32 %v3182, %v3558
        %3560 = vmatprep.mubr.bf16.mxu0 0
        %3561 = vmatmul.mubr.bf16.gmra.mxu0 %v3114
        %v3562 = vpop.f32.mrf.mxu0
        %v3563 = vadd.f32 %v3178, %v3562
        %v3564 = vpop.f32.mrf.mxu0
        %v3565 = vadd.f32 %v3182, %v3564
        %v3566 = vpop.f32.mrf.mxu0
        %v3567 = vadd.f32 %v3178, %v3566
        %v3568 = vpop.f32.mrf.mxu0
        %v3569 = vadd.f32 %v3182, %v3568
        %3570 = vmatprep.mubr.bf16.mxu0 0
        %3571 = vmatmul.mubr.bf16.gmra.mxu0 %v3115
        %v3572 = vpop.f32.mrf.mxu0
        %v3573 = vadd.f32 %v3178, %v3572
        %v3574 = vpop.f32.mrf.mxu0
        %v3575 = vadd.f32 %v3182, %v3574
        %v3576 = vpop.f32.mrf.mxu0
        %v3577 = vadd.f32 %v3178, %v3576
        %v3578 = vpop.f32.mrf.mxu0
        %v3579 = vadd.f32 %v3182, %v3578
        %3580 = vmatprep.mubr.bf16.mxu0 0
        %3581 = vmatmul.mubr.bf16.gmra.mxu0 %v3116
        %v3582 = vpop.f32.mrf.mxu0
        %v3583 = vadd.f32 %v3178, %v3582
        %v3584 = vpop.f32.mrf.mxu0
        %v3585 = vadd.f32 %v3182, %v3584
        %v3586 = vpop.f32.mrf.mxu0
        %v3587 = vadd.f32 %v3178, %v3586
        %v3588 = vpop.f32.mrf.mxu0
        %v3589 = vadd.f32 %v3182, %v3588
        %3590 = vmatprep.mubr.bf16.mxu0 0
        %3591 = vmatmul.mubr.bf16.gmra.mxu0 %v3117
        %v3592 = vpop.f32.mrf.mxu0
        %v3593 = vadd.f32 %v3178, %v3592
        %v3594 = vpop.f32.mrf.mxu0
        %v3595 = vadd.f32 %v3182, %v3594
        %v3596 = vpop.f32.mrf.mxu0
        %v3597 = vadd.f32 %v3178, %v3596
        %v3598 = vpop.f32.mrf.mxu0
        %v3599 = vadd.f32 %v3182, %v3598
        %3600 = vmatprep.mubr.bf16.mxu0 0
        %3601 = vmatmul.mubr.bf16.gmra.mxu0 %v3118
        %v3602 = vpop.f32.mrf.mxu0
        %v3603 = vadd.f32 %v3178, %v3602
        %v3604 = vpop.f32.mrf.mxu0
        %v3605 = vadd.f32 %v3182, %v3604
        %v3606 = vpop.f32.mrf.mxu0
        %v3607 = vadd.f32 %v3178, %v3606
        %v3608 = vpop.f32.mrf.mxu0
        %v3609 = vadd.f32 %v3182, %v3608
        %3610 = vmatprep.mubr.bf16.mxu0 0
        %3611 = vmatmul.mubr.bf16.gmra.mxu0 %v3119
        %v3612 = vpop.f32.mrf.mxu0
        %v3613 = vadd.f32 %v3178, %v3612
        %v3614 = vpop.f32.mrf.mxu0
        %v3615 = vadd.f32 %v3182, %v3614
        %v3616 = vpop.f32.mrf.mxu0
        %v3617 = vadd.f32 %v3178, %v3616
        %v3618 = vpop.f32.mrf.mxu0
        %v3619 = vadd.f32 %v3182, %v3618
        %3620 = vmatprep.mubr.bf16.mxu0 0
        %3621 = vmatmul.mubr.bf16.gmra.mxu0 %v3120
        %v3622 = vpop.f32.mrf.mxu0
        %v3623 = vadd.f32 %v3178, %v3622
        %v3624 = vpop.f32.mrf.mxu0
        %v3625 = vadd.f32 %v3182, %v3624
        %v3626 = vpop.f32.mrf.mxu0
        %v3627 = vadd.f32 %v3178, %v3626
        %v3628 = vpop.f32.mrf.mxu0
        %v3629 = vadd.f32 %v3182, %v3628
        %3630 = vmatprep.mubr.bf16.mxu0 0
        %3631 = vmatmul.mubr.bf16.gmra.mxu0 %v3121
        %v3632 = vpop.f32.mrf.mxu0
        %v3633 = vadd.f32 %v3178, %v3632
        %v3634 = vpop.f32.mrf.mxu0
        %v3635 = vadd.f32 %v3182, %v3634
        %v3636 = vpop.f32.mrf.mxu0
        %v3637 = vadd.f32 %v3178, %v3636
        %v3638 = vpop.f32.mrf.mxu0
        %v3639 = vadd.f32 %v3182, %v3638
        %3640 = vmatprep.mubr.bf16.mxu0 0
        %3641 = vmatmul.mubr.bf16.gmra.mxu0 %v3122
        %v3642 = vpop.f32.mrf.mxu0
        %v3643 = vadd.f32 %v3178, %v3642
        %v3644 = vpop.f32.mrf.mxu0
        %v3645 = vadd.f32 %v3182, %v3644
        %v3646 = vpop.f32.mrf.mxu0
        %v3647 = vadd.f32 %v3178, %v3646
        %v3648 = vpop.f32.mrf.mxu0
        %v3649 = vadd.f32 %v3182, %v3648
        %3650 = vmatprep.mubr.bf16.mxu0 0
        %3651 = vmatmul.mubr.bf16.gmra.mxu0 %v3123
        %v3652 = vpop.f32.mrf.mxu0
        %v3653 = vadd.f32 %v3178, %v3652
        %v3654 = vpop.f32.mrf.mxu0
        %v3655 = vadd.f32 %v3182, %v3654
        %v3656 = vpop.f32.mrf.mxu0
        %v3657 = vadd.f32 %v3178, %v3656
        %v3658 = vpop.f32.mrf.mxu0
        %v3659 = vadd.f32 %v3182, %v3658
        %3660 = vmatprep.mubr.bf16.mxu0 0
        %3661 = vmatmul.mubr.bf16.gmra.mxu0 %v3124
        %v3662 = vpop.f32.mrf.mxu0
        %v3663 = vadd.f32 %v3178, %v3662
        %v3664 = vpop.f32.mrf.mxu0
        %v3665 = vadd.f32 %v3182, %v3664
        %v3666 = vpop.f32.mrf.mxu0
        %v3667 = vadd.f32 %v3178, %v3666
        %v3668 = vpop.f32.mrf.mxu0
        %v3669 = vadd.f32 %v3182, %v3668
        %3670 = vmatprep.mubr.bf16.mxu0 0
        %3671 = vmatmul.mubr.bf16.gmra.mxu0 %v3125
        %v3672 = vpop.f32.mrf.mxu0
        %v3673 = vadd.f32 %v3178, %v3672
        %v3674 = vpop.f32.mrf.mxu0
        %v3675 = vadd.f32 %v3182, %v3674
        %v3676 = vpop.f32.mrf.mxu0
        %v3677 = vadd.f32 %v3178, %v3676
        %v3678 = vpop.f32.mrf.mxu0
        %v3679 = vadd.f32 %v3182, %v3678
        %3680 = vmatprep.mubr.bf16.mxu0 0
        %3681 = vmatmul.mubr.bf16.gmra.mxu0 %v3126
        %v3682 = vpop.f32.mrf.mxu0
        %v3683 = vadd.f32 %v3178, %v3682
        %v3684 = vpop.f32.mrf.mxu0
        %v3685 = vadd.f32 %v3182, %v3684
        %v3686 = vpop.f32.mrf.mxu0
        %v3687 = vadd.f32 %v3178, %v3686
        %v3688 = vpop.f32.mrf.mxu0
        %v3689 = vadd.f32 %v3182, %v3688
        %3690 = vmatprep.mubr.bf16.mxu0 0
        %3691 = vmatmul.mubr.bf16.gmra.mxu0 %v3127
        %v3692 = vpop.f32.mrf.mxu0
        %v3693 = vadd.f32 %v3178, %v3692
        %v3694 = vpop.f32.mrf.mxu0
        %v3695 = vadd.f32 %v3182, %v3694
        %v3696 = vpop.f32.mrf.mxu0
        %v3697 = vadd.f32 %v3178, %v3696
        %v3698 = vpop.f32.mrf.mxu0
        %v3699 = vadd.f32 %v3182, %v3698
        %3700 = vmatprep.mubr.bf16.mxu0 0
        %3701 = vmatmul.mubr.bf16.gmra.mxu0 %v3128
        %v3702 = vpop.f32.mrf.mxu0
        %v3703 = vadd.f32 %v3178, %v3702
        %v3704 = vpop.f32.mrf.mxu0
        %v3705 = vadd.f32 %v3182, %v3704
        %v3706 = vpop.f32.mrf.mxu0
        %v3707 = vadd.f32 %v3178, %v3706
        %v3708 = vpop.f32.mrf.mxu0
        %v3709 = vadd.f32 %v3182, %v3708
        %3710 = vmatprep.mubr.bf16.mxu0 0
        %3711 = vmatmul.mubr.bf16.gmra.mxu0 %v3129
        %v3712 = vpop.f32.mrf.mxu0
        %v3713 = vadd.f32 %v3178, %v3712
        %v3714 = vpop.f32.mrf.mxu0
        %v3715 = vadd.f32 %v3182, %v3714
        %v3716 = vpop.f32.mrf.mxu0
        %v3717 = vadd.f32 %v3178, %v3716
        %v3718 = vpop.f32.mrf.mxu0
        %v3719 = vadd.f32 %v3182, %v3718
        %3720 = vmatprep.mubr.bf16.mxu0 0
        %3721 = vmatmul.mubr.bf16.gmra.mxu0 %v3130
        %v3722 = vpop.f32.mrf.mxu0
        %v3723 = vadd.f32 %v3178, %v3722
        %v3724 = vpop.f32.mrf.mxu0
        %v3725 = vadd.f32 %v3182, %v3724
        %v3726 = vpop.f32.mrf.mxu0
        %v3727 = vadd.f32 %v3178, %v3726
        %v3728 = vpop.f32.mrf.mxu0
        %v3729 = vadd.f32 %v3182, %v3728
        %3730 = vmatprep.mubr.bf16.mxu0 0
        %3731 = vmatmul.mubr.bf16.gmra.mxu0 %v3131
        %v3732 = vpop.f32.mrf.mxu0
        %v3733 = vadd.f32 %v3178, %v3732
        %v3734 = vpop.f32.mrf.mxu0
        %v3735 = vadd.f32 %v3182, %v3734
        %v3736 = vpop.f32.mrf.mxu0
        %v3737 = vadd.f32 %v3178, %v3736
        %v3738 = vpop.f32.mrf.mxu0
        %v3739 = vadd.f32 %v3182, %v3738
        %3740 = vmatprep.mubr.bf16.mxu0 0
        %3741 = vmatmul.mubr.bf16.gmra.mxu0 %v3132
        %v3742 = vpop.f32.mrf.mxu0
        %v3743 = vadd.f32 %v3178, %v3742
        %v3744 = vpop.f32.mrf.mxu0
        %v3745 = vadd.f32 %v3182, %v3744
        %v3746 = vpop.f32.mrf.mxu0
        %v3747 = vadd.f32 %v3178, %v3746
        %v3748 = vpop.f32.mrf.mxu0
        %v3749 = vadd.f32 %v3182, %v3748
        %3750 = vmatprep.mubr.bf16.mxu0 0
        %3751 = vmatmul.mubr.bf16.gmra.mxu0 %v3133
        %v3752 = vpop.f32.mrf.mxu0
        %v3753 = vadd.f32 %v3178, %v3752
        %v3754 = vpop.f32.mrf.mxu0
        %v3755 = vadd.f32 %v3182, %v3754
        %v3756 = vpop.f32.mrf.mxu0
        %v3757 = vadd.f32 %v3178, %v3756
        %v3758 = vpop.f32.mrf.mxu0
        %v3759 = vadd.f32 %v3182, %v3758
        %3760 = vmatprep.mubr.bf16.mxu0 0
        %3761 = vmatmul.mubr.bf16.gmra.mxu0 %v3134
        %v3762 = vpop.f32.mrf.mxu0
        %v3763 = vadd.f32 %v3178, %v3762
        %v3764 = vpop.f32.mrf.mxu0
        %v3765 = vadd.f32 %v3182, %v3764
        %v3766 = vpop.f32.mrf.mxu0
        %v3767 = vadd.f32 %v3178, %v3766
        %v3768 = vpop.f32.mrf.mxu0
        %v3769 = vadd.f32 %v3182, %v3768
        %3770 = vmatprep.mubr.bf16.mxu0 0
        %3771 = vmatmul.mubr.bf16.gmra.mxu0 %v3135
        %v3772 = vpop.f32.mrf.mxu0
        %v3773 = vadd.f32 %v3178, %v3772
        %v3774 = vpop.f32.mrf.mxu0
        %v3775 = vadd.f32 %v3182, %v3774
        %v3776 = vpop.f32.mrf.mxu0
        %v3777 = vadd.f32 %v3178, %v3776
        %v3778 = vpop.f32.mrf.mxu0
        %v3779 = vadd.f32 %v3182, %v3778
        %3780 = vmatprep.mubr.bf16.mxu0 0
        %3781 = vmatmul.mubr.bf16.gmra.mxu0 %v3136
        %v3782 = vpop.f32.mrf.mxu0
        %v3783 = vadd.f32 %v3178, %v3782
        %v3784 = vpop.f32.mrf.mxu0
        %v3785 = vadd.f32 %v3182, %v3784
        %v3786 = vpop.f32.mrf.mxu0
        %v3787 = vadd.f32 %v3178, %v3786
        %v3788 = vpop.f32.mrf.mxu0
        %v3789 = vadd.f32 %v3182, %v3788
        %3790 = vmatprep.mubr.bf16.mxu0 0
        %3791 = vmatmul.mubr.bf16.gmra.mxu0 %v3137
        %v3792 = vpop.f32.mrf.mxu0
        %v3793 = vadd.f32 %v3178, %v3792
        %v3794 = vpop.f32.mrf.mxu0
        %v3795 = vadd.f32 %v3182, %v3794
        %v3796 = vpop.f32.mrf.mxu0
        %v3797 = vadd.f32 %v3178, %v3796
        %v3798 = vpop.f32.mrf.mxu0
        %v3799 = vadd.f32 %v3182, %v3798
        %3800 = vmatprep.mubr.bf16.mxu0 0
        %3801 = vmatmul.mubr.bf16.gmra.mxu0 %v3138
        %v3802 = vpop.f32.mrf.mxu0
        %v3803 = vadd.f32 %v3178, %v3802
        %v3804 = vpop.f32.mrf.mxu0
        %v3805 = vadd.f32 %v3182, %v3804
        %v3806 = vpop.f32.mrf.mxu0
        %v3807 = vadd.f32 %v3178, %v3806
        %v3808 = vpop.f32.mrf.mxu0
        %v3809 = vadd.f32 %v3182, %v3808
        %3810 = vmatprep.mubr.bf16.mxu0 0
        %3811 = vmatmul.mubr.bf16.gmra.mxu0 %v3139
        %v3812 = vpop.f32.mrf.mxu0
        %v3813 = vadd.f32 %v3178, %v3812
        %v3814 = vpop.f32.mrf.mxu0
        %v3815 = vadd.f32 %v3182, %v3814
        %v3816 = vpop.f32.mrf.mxu0
        %v3817 = vadd.f32 %v3178, %v3816
        %v3818 = vpop.f32.mrf.mxu0
        %v3819 = vadd.f32 %v3182, %v3818
        %3820 = vmatprep.mubr.bf16.mxu0 0
        %3821 = vmatmul.mubr.bf16.gmra.mxu0 %v3140
        %v3822 = vpop.f32.mrf.mxu0
        %v3823 = vadd.f32 %v3178, %v3822
        %v3824 = vpop.f32.mrf.mxu0
        %v3825 = vadd.f32 %v3182, %v3824
        %v3826 = vpop.f32.mrf.mxu0
        %v3827 = vadd.f32 %v3178, %v3826
        %v3828 = vpop.f32.mrf.mxu0
        %v3829 = vadd.f32 %v3182, %v3828
        %3830 = vdwg.mxu0
        %3831 = vmatprep.subr.bf16.mxu0 0
        %3832 = vmatpush1.bf16.msra.mxu0 %v3293
        %3833 = vmatprep.subr.bf16.mxu0 0
        %3834 = vmatpush1.bf16.msra.mxu0 %v3290
        %3835 = vmatprep.subr.bf16.mxu0 0
        %3836 = vmatpush1.bf16.msra.mxu0 %v3287
        %3837 = vmatprep.subr.bf16.mxu0 0
        %3838 = vmatpush1.bf16.msra.mxu0 %v3284
        %3839 = vmatprep.subr.bf16.mxu0 0
        %3840 = vmatpush1.bf16.msra.mxu0 %v3281
        %3841 = vmatprep.subr.bf16.mxu0 0
        %3842 = vmatpush1.bf16.msra.mxu0 %v3278
        %3843 = vmatprep.subr.bf16.mxu0 0
        %3844 = vmatpush1.bf16.msra.mxu0 %v3275
        %3845 = vmatprep.subr.bf16.mxu0 0
        %3846 = vmatpush1.bf16.msra.mxu0 %v3272
        %3847 = vmatprep.subr.bf16.mxu0 0
        %3848 = vmatpush2.bf16.msra.mxu0 0
        %3849 = vmatprep.subr.bf16.mxu0 0
        %3850 = vmatpush2.bf16.msra.mxu0 0
        %3851 = vmatprep.subr.bf16.mxu0 0
        %3852 = vmatpush2.bf16.msra.mxu0 0
        %3853 = vmatprep.subr.bf16.mxu0 0
        %3854 = vmatpush2.bf16.msra.mxu0 0
        %3855 = vmatprep.subr.bf16.mxu0 0
        %3856 = vmatpush2.bf16.msra.mxu0 0
        %3857 = vmatprep.subr.bf16.mxu0 0
        %3858 = vmatpush2.bf16.msra.mxu0 0
        %3859 = vmatprep.subr.bf16.mxu0 0
        %3860 = vmatpush2.bf16.msra.mxu0 0
        %3861 = vmatprep.subr.bf16.mxu0 0
        %3862 = vmatpush2.bf16.msra.mxu0 0
        %3863 = vmatprep.mubr.bf16.mxu0 0
        %3864 = vmatmul.mubr.bf16.gmra.mxu0 %v3093
        %v3865 = vpop.f32.mrf.mxu0
        %v3866 = vadd.f32 %v3186, %v3865
        %v3867 = vpop.f32.mrf.mxu0
        %v3868 = vpop.f32.mrf.mxu0
        %v3869 = vadd.f32 %v3186, %v3868
        %v3870 = vpop.f32.mrf.mxu0
        %3871 = vmatprep.mubr.bf16.mxu0 0
        %3872 = vmatmul.mubr.bf16.gmra.mxu0 %v3094
        %v3873 = vpop.f32.mrf.mxu0
        %v3874 = vadd.f32 %v3186, %v3873
        %v3875 = vpop.f32.mrf.mxu0
        %v3876 = vpop.f32.mrf.mxu0
        %v3877 = vadd.f32 %v3186, %v3876
        %v3878 = vpop.f32.mrf.mxu0
        %3879 = vmatprep.mubr.bf16.mxu0 0
        %3880 = vmatmul.mubr.bf16.gmra.mxu0 %v3095
        %v3881 = vpop.f32.mrf.mxu0
        %v3882 = vadd.f32 %v3186, %v3881
        %v3883 = vpop.f32.mrf.mxu0
        %v3884 = vpop.f32.mrf.mxu0
        %v3885 = vadd.f32 %v3186, %v3884
        %v3886 = vpop.f32.mrf.mxu0
        %3887 = vmatprep.mubr.bf16.mxu0 0
        %3888 = vmatmul.mubr.bf16.gmra.mxu0 %v3096
        %v3889 = vpop.f32.mrf.mxu0
        %v3890 = vadd.f32 %v3186, %v3889
        %v3891 = vpop.f32.mrf.mxu0
        %v3892 = vpop.f32.mrf.mxu0
        %v3893 = vadd.f32 %v3186, %v3892
        %v3894 = vpop.f32.mrf.mxu0
        %3895 = vmatprep.mubr.bf16.mxu0 0
        %3896 = vmatmul.mubr.bf16.gmra.mxu0 %v3097
        %v3897 = vpop.f32.mrf.mxu0
        %v3898 = vadd.f32 %v3186, %v3897
        %v3899 = vpop.f32.mrf.mxu0
        %v3900 = vpop.f32.mrf.mxu0
        %v3901 = vadd.f32 %v3186, %v3900
        %v3902 = vpop.f32.mrf.mxu0
        %3903 = vmatprep.mubr.bf16.mxu0 0
        %3904 = vmatmul.mubr.bf16.gmra.mxu0 %v3098
        %v3905 = vpop.f32.mrf.mxu0
        %v3906 = vadd.f32 %v3186, %v3905
        %v3907 = vpop.f32.mrf.mxu0
        %v3908 = vpop.f32.mrf.mxu0
        %v3909 = vadd.f32 %v3186, %v3908
        %v3910 = vpop.f32.mrf.mxu0
        %3911 = vmatprep.mubr.bf16.mxu0 0
        %3912 = vmatmul.mubr.bf16.gmra.mxu0 %v3099
        %v3913 = vpop.f32.mrf.mxu0
        %v3914 = vadd.f32 %v3186, %v3913
        %v3915 = vpop.f32.mrf.mxu0
        %v3916 = vpop.f32.mrf.mxu0
        %v3917 = vadd.f32 %v3186, %v3916
        %v3918 = vpop.f32.mrf.mxu0
        %3919 = vmatprep.mubr.bf16.mxu0 0
        %3920 = vmatmul.mubr.bf16.gmra.mxu0 %v3100
        %v3921 = vpop.f32.mrf.mxu0
        %v3922 = vadd.f32 %v3186, %v3921
        %v3923 = vpop.f32.mrf.mxu0
        %v3924 = vpop.f32.mrf.mxu0
        %v3925 = vadd.f32 %v3186, %v3924
        %v3926 = vpop.f32.mrf.mxu0
        %3927 = vmatprep.mubr.bf16.mxu0 0
        %3928 = vmatmul.mubr.bf16.gmra.mxu0 %v3101
        %v3929 = vpop.f32.mrf.mxu0
        %v3930 = vadd.f32 %v3186, %v3929
        %v3931 = vpop.f32.mrf.mxu0
        %v3932 = vpop.f32.mrf.mxu0
        %v3933 = vadd.f32 %v3186, %v3932
        %v3934 = vpop.f32.mrf.mxu0
        %3935 = vmatprep.mubr.bf16.mxu0 0
        %3936 = vmatmul.mubr.bf16.gmra.mxu0 %v3102
        %v3937 = vpop.f32.mrf.mxu0
        %v3938 = vadd.f32 %v3186, %v3937
        %v3939 = vpop.f32.mrf.mxu0
        %v3940 = vpop.f32.mrf.mxu0
        %v3941 = vadd.f32 %v3186, %v3940
        %v3942 = vpop.f32.mrf.mxu0
        %3943 = vmatprep.mubr.bf16.mxu0 0
        %3944 = vmatmul.mubr.bf16.gmra.mxu0 %v3103
        %v3945 = vpop.f32.mrf.mxu0
        %v3946 = vadd.f32 %v3186, %v3945
        %v3947 = vpop.f32.mrf.mxu0
        %v3948 = vpop.f32.mrf.mxu0
        %v3949 = vadd.f32 %v3186, %v3948
        %v3950 = vpop.f32.mrf.mxu0
        %3951 = vmatprep.mubr.bf16.mxu0 0
        %3952 = vmatmul.mubr.bf16.gmra.mxu0 %v3104
        %v3953 = vpop.f32.mrf.mxu0
        %v3954 = vadd.f32 %v3186, %v3953
        %v3955 = vpop.f32.mrf.mxu0
        %v3956 = vpop.f32.mrf.mxu0
        %v3957 = vadd.f32 %v3186, %v3956
        %v3958 = vpop.f32.mrf.mxu0
        %3959 = vmatprep.mubr.bf16.mxu0 0
        %3960 = vmatmul.mubr.bf16.gmra.mxu0 %v3105
        %v3961 = vpop.f32.mrf.mxu0
        %v3962 = vadd.f32 %v3186, %v3961
        %v3963 = vpop.f32.mrf.mxu0
        %v3964 = vpop.f32.mrf.mxu0
        %v3965 = vadd.f32 %v3186, %v3964
        %v3966 = vpop.f32.mrf.mxu0
        %3967 = vmatprep.mubr.bf16.mxu0 0
        %3968 = vmatmul.mubr.bf16.gmra.mxu0 %v3106
        %v3969 = vpop.f32.mrf.mxu0
        %v3970 = vadd.f32 %v3186, %v3969
        %v3971 = vpop.f32.mrf.mxu0
        %v3972 = vpop.f32.mrf.mxu0
        %v3973 = vadd.f32 %v3186, %v3972
        %v3974 = vpop.f32.mrf.mxu0
        %3975 = vmatprep.mubr.bf16.mxu0 0
        %3976 = vmatmul.mubr.bf16.gmra.mxu0 %v3107
        %v3977 = vpop.f32.mrf.mxu0
        %v3978 = vadd.f32 %v3186, %v3977
        %v3979 = vpop.f32.mrf.mxu0
        %v3980 = vpop.f32.mrf.mxu0
        %v3981 = vadd.f32 %v3186, %v3980
        %v3982 = vpop.f32.mrf.mxu0
        %3983 = vmatprep.mubr.bf16.mxu0 0
        %3984 = vmatmul.mubr.bf16.gmra.mxu0 %v3108
        %v3985 = vpop.f32.mrf.mxu0
        %v3986 = vadd.f32 %v3186, %v3985
        %v3987 = vpop.f32.mrf.mxu0
        %v3988 = vpop.f32.mrf.mxu0
        %v3989 = vadd.f32 %v3186, %v3988
        %v3990 = vpop.f32.mrf.mxu0
        %3991 = vmatprep.mubr.bf16.mxu0 0
        %3992 = vmatmul.mubr.bf16.gmra.mxu0 %v3109
        %v3993 = vpop.f32.mrf.mxu0
        %v3994 = vadd.f32 %v3186, %v3993
        %v3995 = vpop.f32.mrf.mxu0
        %v3996 = vpop.f32.mrf.mxu0
        %v3997 = vadd.f32 %v3186, %v3996
        %v3998 = vpop.f32.mrf.mxu0
        %3999 = vmatprep.mubr.bf16.mxu0 0
        %4000 = vmatmul.mubr.bf16.gmra.mxu0 %v3110
        %v4001 = vpop.f32.mrf.mxu0
        %v4002 = vadd.f32 %v3186, %v4001
        %v4003 = vpop.f32.mrf.mxu0
        %v4004 = vpop.f32.mrf.mxu0
        %v4005 = vadd.f32 %v3186, %v4004
        %v4006 = vpop.f32.mrf.mxu0
        %4007 = vmatprep.mubr.bf16.mxu0 0
        %4008 = vmatmul.mubr.bf16.gmra.mxu0 %v3111
        %v4009 = vpop.f32.mrf.mxu0
        %v4010 = vadd.f32 %v3186, %v4009
        %v4011 = vpop.f32.mrf.mxu0
        %v4012 = vpop.f32.mrf.mxu0
        %v4013 = vadd.f32 %v3186, %v4012
        %v4014 = vpop.f32.mrf.mxu0
        %4015 = vmatprep.mubr.bf16.mxu0 0
        %4016 = vmatmul.mubr.bf16.gmra.mxu0 %v3112
        %v4017 = vpop.f32.mrf.mxu0
        %v4018 = vadd.f32 %v3186, %v4017
        %v4019 = vpop.f32.mrf.mxu0
        %v4020 = vpop.f32.mrf.mxu0
        %v4021 = vadd.f32 %v3186, %v4020
        %v4022 = vpop.f32.mrf.mxu0
        %4023 = vmatprep.mubr.bf16.mxu0 0
        %4024 = vmatmul.mubr.bf16.gmra.mxu0 %v3113
        %v4025 = vpop.f32.mrf.mxu0
        %v4026 = vadd.f32 %v3186, %v4025
        %v4027 = vpop.f32.mrf.mxu0
        %v4028 = vpop.f32.mrf.mxu0
        %v4029 = vadd.f32 %v3186, %v4028
        %v4030 = vpop.f32.mrf.mxu0
        %4031 = vmatprep.mubr.bf16.mxu0 0
        %4032 = vmatmul.mubr.bf16.gmra.mxu0 %v3114
        %v4033 = vpop.f32.mrf.mxu0
        %v4034 = vadd.f32 %v3186, %v4033
        %v4035 = vpop.f32.mrf.mxu0
        %v4036 = vpop.f32.mrf.mxu0
        %v4037 = vadd.f32 %v3186, %v4036
        %v4038 = vpop.f32.mrf.mxu0
        %4039 = vmatprep.mubr.bf16.mxu0 0
        %4040 = vmatmul.mubr.bf16.gmra.mxu0 %v3115
        %v4041 = vpop.f32.mrf.mxu0
        %v4042 = vadd.f32 %v3186, %v4041
        %v4043 = vpop.f32.mrf.mxu0
        %v4044 = vpop.f32.mrf.mxu0
        %v4045 = vadd.f32 %v3186, %v4044
        %v4046 = vpop.f32.mrf.mxu0
        %4047 = vmatprep.mubr.bf16.mxu0 0
        %4048 = vmatmul.mubr.bf16.gmra.mxu0 %v3116
        %v4049 = vpop.f32.mrf.mxu0
        %v4050 = vadd.f32 %v3186, %v4049
        %v4051 = vpop.f32.mrf.mxu0
        %v4052 = vpop.f32.mrf.mxu0
        %v4053 = vadd.f32 %v3186, %v4052
        %v4054 = vpop.f32.mrf.mxu0
        %4055 = vmatprep.mubr.bf16.mxu0 0
        %4056 = vmatmul.mubr.bf16.gmra.mxu0 %v3117
        %v4057 = vpop.f32.mrf.mxu0
        %v4058 = vadd.f32 %v3186, %v4057
        %v4059 = vpop.f32.mrf.mxu0
        %v4060 = vpop.f32.mrf.mxu0
        %v4061 = vadd.f32 %v3186, %v4060
        %v4062 = vpop.f32.mrf.mxu0
        %4063 = vmatprep.mubr.bf16.mxu0 0
        %4064 = vmatmul.mubr.bf16.gmra.mxu0 %v3118
        %v4065 = vpop.f32.mrf.mxu0
        %v4066 = vadd.f32 %v3186, %v4065
        %v4067 = vpop.f32.mrf.mxu0
        %v4068 = vpop.f32.mrf.mxu0
        %v4069 = vadd.f32 %v3186, %v4068
        %v4070 = vpop.f32.mrf.mxu0
        %4071 = vmatprep.mubr.bf16.mxu0 0
        %4072 = vmatmul.mubr.bf16.gmra.mxu0 %v3119
        %v4073 = vpop.f32.mrf.mxu0
        %v4074 = vadd.f32 %v3186, %v4073
        %v4075 = vpop.f32.mrf.mxu0
        %v4076 = vpop.f32.mrf.mxu0
        %v4077 = vadd.f32 %v3186, %v4076
        %v4078 = vpop.f32.mrf.mxu0
        %4079 = vmatprep.mubr.bf16.mxu0 0
        %4080 = vmatmul.mubr.bf16.gmra.mxu0 %v3120
        %v4081 = vpop.f32.mrf.mxu0
        %v4082 = vadd.f32 %v3186, %v4081
        %v4083 = vpop.f32.mrf.mxu0
        %v4084 = vpop.f32.mrf.mxu0
        %v4085 = vadd.f32 %v3186, %v4084
        %v4086 = vpop.f32.mrf.mxu0
        %4087 = vmatprep.mubr.bf16.mxu0 0
        %4088 = vmatmul.mubr.bf16.gmra.mxu0 %v3121
        %v4089 = vpop.f32.mrf.mxu0
        %v4090 = vadd.f32 %v3186, %v4089
        %v4091 = vpop.f32.mrf.mxu0
        %v4092 = vpop.f32.mrf.mxu0
        %v4093 = vadd.f32 %v3186, %v4092
        %v4094 = vpop.f32.mrf.mxu0
        %4095 = vmatprep.mubr.bf16.mxu0 0
        %4096 = vmatmul.mubr.bf16.gmra.mxu0 %v3122
        %v4097 = vpop.f32.mrf.mxu0
        %v4098 = vadd.f32 %v3186, %v4097
        %v4099 = vpop.f32.mrf.mxu0
        %v4100 = vpop.f32.mrf.mxu0
        %v4101 = vadd.f32 %v3186, %v4100
        %v4102 = vpop.f32.mrf.mxu0
        %4103 = vmatprep.mubr.bf16.mxu0 0
        %4104 = vmatmul.mubr.bf16.gmra.mxu0 %v3123
        %v4105 = vpop.f32.mrf.mxu0
        %v4106 = vadd.f32 %v3186, %v4105
        %v4107 = vpop.f32.mrf.mxu0
        %v4108 = vpop.f32.mrf.mxu0
        %v4109 = vadd.f32 %v3186, %v4108
        %v4110 = vpop.f32.mrf.mxu0
        %4111 = vmatprep.mubr.bf16.mxu0 0
        %4112 = vmatmul.mubr.bf16.gmra.mxu0 %v3124
        %v4113 = vpop.f32.mrf.mxu0
        %v4114 = vadd.f32 %v3186, %v4113
        %v4115 = vpop.f32.mrf.mxu0
        %v4116 = vpop.f32.mrf.mxu0
        %v4117 = vadd.f32 %v3186, %v4116
        %v4118 = vpop.f32.mrf.mxu0
        %4119 = vmatprep.mubr.bf16.mxu0 0
        %4120 = vmatmul.mubr.bf16.gmra.mxu0 %v3125
        %v4121 = vpop.f32.mrf.mxu0
        %v4122 = vadd.f32 %v3186, %v4121
        %v4123 = vpop.f32.mrf.mxu0
        %v4124 = vpop.f32.mrf.mxu0
        %v4125 = vadd.f32 %v3186, %v4124
        %v4126 = vpop.f32.mrf.mxu0
        %4127 = vmatprep.mubr.bf16.mxu0 0
        %4128 = vmatmul.mubr.bf16.gmra.mxu0 %v3126
        %v4129 = vpop.f32.mrf.mxu0
        %v4130 = vadd.f32 %v3186, %v4129
        %v4131 = vpop.f32.mrf.mxu0
        %v4132 = vpop.f32.mrf.mxu0
        %v4133 = vadd.f32 %v3186, %v4132
        %v4134 = vpop.f32.mrf.mxu0
        %4135 = vmatprep.mubr.bf16.mxu0 0
        %4136 = vmatmul.mubr.bf16.gmra.mxu0 %v3127
        %v4137 = vpop.f32.mrf.mxu0
        %v4138 = vadd.f32 %v3186, %v4137
        %v4139 = vpop.f32.mrf.mxu0
        %v4140 = vpop.f32.mrf.mxu0
        %v4141 = vadd.f32 %v3186, %v4140
        %v4142 = vpop.f32.mrf.mxu0
        %4143 = vmatprep.mubr.bf16.mxu0 0
        %4144 = vmatmul.mubr.bf16.gmra.mxu0 %v3128
        %v4145 = vpop.f32.mrf.mxu0
        %v4146 = vadd.f32 %v3186, %v4145
        %v4147 = vpop.f32.mrf.mxu0
        %v4148 = vpop.f32.mrf.mxu0
        %v4149 = vadd.f32 %v3186, %v4148
        %v4150 = vpop.f32.mrf.mxu0
        %4151 = vmatprep.mubr.bf16.mxu0 0
        %4152 = vmatmul.mubr.bf16.gmra.mxu0 %v3129
        %v4153 = vpop.f32.mrf.mxu0
        %v4154 = vadd.f32 %v3186, %v4153
        %v4155 = vpop.f32.mrf.mxu0
        %v4156 = vpop.f32.mrf.mxu0
        %v4157 = vadd.f32 %v3186, %v4156
        %v4158 = vpop.f32.mrf.mxu0
        %4159 = vmatprep.mubr.bf16.mxu0 0
        %4160 = vmatmul.mubr.bf16.gmra.mxu0 %v3130
        %v4161 = vpop.f32.mrf.mxu0
        %v4162 = vadd.f32 %v3186, %v4161
        %v4163 = vpop.f32.mrf.mxu0
        %v4164 = vpop.f32.mrf.mxu0
        %v4165 = vadd.f32 %v3186, %v4164
        %v4166 = vpop.f32.mrf.mxu0
        %4167 = vmatprep.mubr.bf16.mxu0 0
        %4168 = vmatmul.mubr.bf16.gmra.mxu0 %v3131
        %v4169 = vpop.f32.mrf.mxu0
        %v4170 = vadd.f32 %v3186, %v4169
        %v4171 = vpop.f32.mrf.mxu0
        %v4172 = vpop.f32.mrf.mxu0
        %v4173 = vadd.f32 %v3186, %v4172
        %v4174 = vpop.f32.mrf.mxu0
        %4175 = vmatprep.mubr.bf16.mxu0 0
        %4176 = vmatmul.mubr.bf16.gmra.mxu0 %v3132
        %v4177 = vpop.f32.mrf.mxu0
        %v4178 = vadd.f32 %v3186, %v4177
        %v4179 = vpop.f32.mrf.mxu0
        %v4180 = vpop.f32.mrf.mxu0
        %v4181 = vadd.f32 %v3186, %v4180
        %v4182 = vpop.f32.mrf.mxu0
        %4183 = vmatprep.mubr.bf16.mxu0 0
        %4184 = vmatmul.mubr.bf16.gmra.mxu0 %v3133
        %v4185 = vpop.f32.mrf.mxu0
        %v4186 = vadd.f32 %v3186, %v4185
        %v4187 = vpop.f32.mrf.mxu0
        %v4188 = vpop.f32.mrf.mxu0
        %v4189 = vadd.f32 %v3186, %v4188
        %v4190 = vpop.f32.mrf.mxu0
        %4191 = vmatprep.mubr.bf16.mxu0 0
        %4192 = vmatmul.mubr.bf16.gmra.mxu0 %v3134
        %v4193 = vpop.f32.mrf.mxu0
        %v4194 = vadd.f32 %v3186, %v4193
        %v4195 = vpop.f32.mrf.mxu0
        %v4196 = vpop.f32.mrf.mxu0
        %v4197 = vadd.f32 %v3186, %v4196
        %v4198 = vpop.f32.mrf.mxu0
        %4199 = vmatprep.mubr.bf16.mxu0 0
        %4200 = vmatmul.mubr.bf16.gmra.mxu0 %v3135
        %v4201 = vpop.f32.mrf.mxu0
        %v4202 = vadd.f32 %v3186, %v4201
        %v4203 = vpop.f32.mrf.mxu0
        %v4204 = vpop.f32.mrf.mxu0
        %v4205 = vadd.f32 %v3186, %v4204
        %v4206 = vpop.f32.mrf.mxu0
        %4207 = vmatprep.mubr.bf16.mxu0 0
        %4208 = vmatmul.mubr.bf16.gmra.mxu0 %v3136
        %v4209 = vpop.f32.mrf.mxu0
        %v4210 = vadd.f32 %v3186, %v4209
        %v4211 = vpop.f32.mrf.mxu0
        %v4212 = vpop.f32.mrf.mxu0
        %v4213 = vadd.f32 %v3186, %v4212
        %v4214 = vpop.f32.mrf.mxu0
        %4215 = vmatprep.mubr.bf16.mxu0 0
        %4216 = vmatmul.mubr.bf16.gmra.mxu0 %v3137
        %v4217 = vpop.f32.mrf.mxu0
        %v4218 = vadd.f32 %v3186, %v4217
        %v4219 = vpop.f32.mrf.mxu0
        %v4220 = vpop.f32.mrf.mxu0
        %v4221 = vadd.f32 %v3186, %v4220
        %v4222 = vpop.f32.mrf.mxu0
        %4223 = vmatprep.mubr.bf16.mxu0 0
        %4224 = vmatmul.mubr.bf16.gmra.mxu0 %v3138
        %v4225 = vpop.f32.mrf.mxu0
        %v4226 = vadd.f32 %v3186, %v4225
        %v4227 = vpop.f32.mrf.mxu0
        %v4228 = vpop.f32.mrf.mxu0
        %v4229 = vadd.f32 %v3186, %v4228
        %v4230 = vpop.f32.mrf.mxu0
        %4231 = vmatprep.mubr.bf16.mxu0 0
        %4232 = vmatmul.mubr.bf16.gmra.mxu0 %v3139
        %v4233 = vpop.f32.mrf.mxu0
        %v4234 = vadd.f32 %v3186, %v4233
        %v4235 = vpop.f32.mrf.mxu0
        %v4236 = vpop.f32.mrf.mxu0
        %v4237 = vadd.f32 %v3186, %v4236
        %v4238 = vpop.f32.mrf.mxu0
        %4239 = vmatprep.mubr.bf16.mxu0 0
        %4240 = vmatmul.mubr.bf16.gmra.mxu0 %v3140
        %v4241 = vpop.f32.mrf.mxu0
        %v4242 = vadd.f32 %v3186, %v4241
        %v4243 = vpop.f32.mrf.mxu0
        %v4244 = vpop.f32.mrf.mxu0
        %v4245 = vadd.f32 %v3186, %v4244
        %v4246 = vpop.f32.mrf.mxu0
        %4247 = vdwg.mxu0
        %4248 = vst.msk [vmem:[%s450] sm:$0xff] %vm1700, %v3353
        %4249 = vst.msk [vmem:[%s450 + $0x8] sm:$0xff] %vm1700, %v3357
        %4250 = vst.msk [vmem:[%s450 + $0x10] sm:$0xff] %vm1700, %v3363
        %4251 = vst.msk [vmem:[%s450 + $0x18] sm:$0xff] %vm1700, %v3367
        %4252 = vst.msk [vmem:[%s450 + $0x20] sm:$0xff] %vm1700, %v3373
        %4253 = vst.msk [vmem:[%s450 + $0x28] sm:$0xff] %vm1700, %v3377
        %4254 = vst.msk [vmem:[%s450 + $0x30] sm:$0xff] %vm1700, %v3383
        %4255 = vst.msk [vmem:[%s450 + $0x38] sm:$0xff] %vm1700, %v3387
        %4256 = vst.msk [vmem:[%s450 + $0x40] sm:$0xff] %vm1700, %v3393
        %4257 = vst.msk [vmem:[%s450 + $0x48] sm:$0xff] %vm1700, %v3397
        %4258 = vst.msk [vmem:[%s450 + $0x50] sm:$0xff] %vm1700, %v3403
        %4259 = vst.msk [vmem:[%s450 + $0x58] sm:$0xff] %vm1700, %v3407
        %4260 = vst.msk [vmem:[%s450 + $0x60] sm:$0xff] %vm1700, %v3413
        %4261 = vst.msk [vmem:[%s450 + $0x68] sm:$0xff] %vm1700, %v3417
        %4262 = vst.msk [vmem:[%s450 + $0x70] sm:$0xff] %vm1700, %v3423
        %4263 = vst.msk [vmem:[%s450 + $0x78] sm:$0xff] %vm1700, %v3427
        %4264 = vst.msk [vmem:[%s450 + $0x80] sm:$0xff] %vm1700, %v3433
        %4265 = vst.msk [vmem:[%s450 + $0x88] sm:$0xff] %vm1700, %v3437
        %4266 = vst.msk [vmem:[%s450 + $0x90] sm:$0xff] %vm1700, %v3443
        %4267 = vst.msk [vmem:[%s450 + $0x98] sm:$0xff] %vm1700, %v3447
        %4268 = vst.msk [vmem:[%s450 + $0xa0] sm:$0xff] %vm1700, %v3453
        %4269 = vst.msk [vmem:[%s450 + $0xa8] sm:$0xff] %vm1700, %v3457
        %4270 = vst.msk [vmem:[%s450 + $0xb0] sm:$0xff] %vm1700, %v3463
        %4271 = vst.msk [vmem:[%s450 + $0xb8] sm:$0xff] %vm1700, %v3467
        %4272 = vst.msk [vmem:[%s450 + $0xc0] sm:$0xff] %vm1700, %v3473
        %4273 = vst.msk [vmem:[%s450 + $0xc8] sm:$0xff] %vm1700, %v3477
        %4274 = vst.msk [vmem:[%s450 + $0xd0] sm:$0xff] %vm1700, %v3483
        %4275 = vst.msk [vmem:[%s450 + $0xd8] sm:$0xff] %vm1700, %v3487
        %4276 = vst.msk [vmem:[%s450 + $0xe0] sm:$0xff] %vm1700, %v3493
        %4277 = vst.msk [vmem:[%s450 + $0xe8] sm:$0xff] %vm1700, %v3497
        %4278 = vst.msk [vmem:[%s450 + $0xf0] sm:$0xff] %vm1700, %v3503
        %4279 = vst.msk [vmem:[%s450 + $0xf8] sm:$0xff] %vm1700, %v3507
        %4280 = vst.msk [vmem:[%s450 + $0x100] sm:$0xff] %vm1700, %v3513
        %4281 = vst.msk [vmem:[%s450 + $0x108] sm:$0xff] %vm1700, %v3517
        %4282 = vst.msk [vmem:[%s450 + $0x110] sm:$0xff] %vm1700, %v3523
        %4283 = vst.msk [vmem:[%s450 + $0x118] sm:$0xff] %vm1700, %v3527
        %4284 = vst.msk [vmem:[%s450 + $0x120] sm:$0xff] %vm1700, %v3533
        %4285 = vst.msk [vmem:[%s450 + $0x128] sm:$0xff] %vm1700, %v3537
        %4286 = vst.msk [vmem:[%s450 + $0x130] sm:$0xff] %vm1700, %v3543
        %4287 = vst.msk [vmem:[%s450 + $0x138] sm:$0xff] %vm1700, %v3547
        %4288 = vst.msk [vmem:[%s450 + $0x140] sm:$0xff] %vm1700, %v3553
        %4289 = vst.msk [vmem:[%s450 + $0x148] sm:$0xff] %vm1700, %v3557
        %4290 = vst.msk [vmem:[%s450 + $0x150] sm:$0xff] %vm1700, %v3563
        %4291 = vst.msk [vmem:[%s450 + $0x158] sm:$0xff] %vm1700, %v3567
        %4292 = vst.msk [vmem:[%s450 + $0x160] sm:$0xff] %vm1700, %v3573
        %4293 = vst.msk [vmem:[%s450 + $0x168] sm:$0xff] %vm1700, %v3577
        %4294 = vst.msk [vmem:[%s450 + $0x170] sm:$0xff] %vm1700, %v3583
        %4295 = vst.msk [vmem:[%s450 + $0x178] sm:$0xff] %vm1700, %v3587
        %4296 = vst.msk [vmem:[%s450 + $0x180] sm:$0xff] %vm1700, %v3593
        %4297 = vst.msk [vmem:[%s450 + $0x188] sm:$0xff] %vm1700, %v3597
        %4298 = vst.msk [vmem:[%s450 + $0x190] sm:$0xff] %vm1700, %v3603
        %4299 = vst.msk [vmem:[%s450 + $0x198] sm:$0xff] %vm1700, %v3607
        %4300 = vst.msk [vmem:[%s450 + $0x1a0] sm:$0xff] %vm1700, %v3613
        %4301 = vst.msk [vmem:[%s450 + $0x1a8] sm:$0xff] %vm1700, %v3617
        %4302 = vst.msk [vmem:[%s450 + $0x1b0] sm:$0xff] %vm1700, %v3623
        %4303 = vst.msk [vmem:[%s450 + $0x1b8] sm:$0xff] %vm1700, %v3627
        %4304 = vst.msk [vmem:[%s450 + $0x1c0] sm:$0xff] %vm1700, %v3633
        %4305 = vst.msk [vmem:[%s450 + $0x1c8] sm:$0xff] %vm1700, %v3637
        %4306 = vst.msk [vmem:[%s450 + $0x1d0] sm:$0xff] %vm1700, %v3643
        %4307 = vst.msk [vmem:[%s450 + $0x1d8] sm:$0xff] %vm1700, %v3647
        %4308 = vst.msk [vmem:[%s450 + $0x1e0] sm:$0xff] %vm1700, %v3653
        %4309 = vst.msk [vmem:[%s450 + $0x1e8] sm:$0xff] %vm1700, %v3657
        %4310 = vst.msk [vmem:[%s450 + $0x1f0] sm:$0xff] %vm1700, %v3663
        %4311 = vst.msk [vmem:[%s450 + $0x1f8] sm:$0xff] %vm1700, %v3667
        %4312 = vst.msk [vmem:[%s450 + $0x200] sm:$0xff] %vm1700, %v3673
        %4313 = vst.msk [vmem:[%s450 + $0x208] sm:$0xff] %vm1700, %v3677
        %4314 = vst.msk [vmem:[%s450 + $0x210] sm:$0xff] %vm1700, %v3683
        %4315 = vst.msk [vmem:[%s450 + $0x218] sm:$0xff] %vm1700, %v3687
        %4316 = vst.msk [vmem:[%s450 + $0x220] sm:$0xff] %vm1700, %v3693
        %4317 = vst.msk [vmem:[%s450 + $0x228] sm:$0xff] %vm1700, %v3697
        %4318 = vst.msk [vmem:[%s450 + $0x230] sm:$0xff] %vm1700, %v3703
        %4319 = vst.msk [vmem:[%s450 + $0x238] sm:$0xff] %vm1700, %v3707
        %4320 = vst.msk [vmem:[%s450 + $0x240] sm:$0xff] %vm1700, %v3713
        %4321 = vst.msk [vmem:[%s450 + $0x248] sm:$0xff] %vm1700, %v3717
        %4322 = vst.msk [vmem:[%s450 + $0x250] sm:$0xff] %vm1700, %v3723
        %4323 = vst.msk [vmem:[%s450 + $0x258] sm:$0xff] %vm1700, %v3727
        %4324 = vst.msk [vmem:[%s450 + $0x260] sm:$0xff] %vm1700, %v3733
        %4325 = vst.msk [vmem:[%s450 + $0x268] sm:$0xff] %vm1700, %v3737
        %4326 = vst.msk [vmem:[%s450 + $0x270] sm:$0xff] %vm1700, %v3743
        %4327 = vst.msk [vmem:[%s450 + $0x278] sm:$0xff] %vm1700, %v3747
        %4328 = vst.msk [vmem:[%s450 + $0x280] sm:$0xff] %vm1700, %v3753
        %4329 = vst.msk [vmem:[%s450 + $0x288] sm:$0xff] %vm1700, %v3757
        %4330 = vst.msk [vmem:[%s450 + $0x290] sm:$0xff] %vm1700, %v3763
        %4331 = vst.msk [vmem:[%s450 + $0x298] sm:$0xff] %vm1700, %v3767
        %4332 = vst.msk [vmem:[%s450 + $0x2a0] sm:$0xff] %vm1700, %v3773
        %4333 = vst.msk [vmem:[%s450 + $0x2a8] sm:$0xff] %vm1700, %v3777
        %4334 = vst.msk [vmem:[%s450 + $0x2b0] sm:$0xff] %vm1700, %v3783
        %4335 = vst.msk [vmem:[%s450 + $0x2b8] sm:$0xff] %vm1700, %v3787
        %4336 = vst.msk [vmem:[%s450 + $0x2c0] sm:$0xff] %vm1700, %v3793
        %4337 = vst.msk [vmem:[%s450 + $0x2c8] sm:$0xff] %vm1700, %v3797
        %4338 = vst.msk [vmem:[%s450 + $0x2d0] sm:$0xff] %vm1700, %v3803
        %4339 = vst.msk [vmem:[%s450 + $0x2d8] sm:$0xff] %vm1700, %v3807
        %4340 = vst.msk [vmem:[%s450 + $0x2e0] sm:$0xff] %vm1700, %v3813
        %4341 = vst.msk [vmem:[%s450 + $0x2e8] sm:$0xff] %vm1700, %v3817
        %4342 = vst.msk [vmem:[%s450 + $0x2f0] sm:$0xff] %vm1700, %v3823
        %4343 = vst.msk [vmem:[%s450 + $0x2f8] sm:$0xff] %vm1700, %v3827
        %v4344 = vmul.f32 %v3355, %v3866
        %v4345 = vmul.f32 %v3359, %v3869
        %v4346 = vmul.f32 %v3365, %v3874
        %v4347 = vmul.f32 %v3369, %v3877
        %v4348 = vmul.f32 %v3375, %v3882
        %v4349 = vmul.f32 %v3379, %v3885
        %v4350 = vmul.f32 %v3385, %v3890
        %v4351 = vmul.f32 %v3389, %v3893
        %v4352 = vmul.f32 %v3395, %v3898
        %v4353 = vmul.f32 %v3399, %v3901
        %v4354 = vmul.f32 %v3405, %v3906
        %v4355 = vmul.f32 %v3409, %v3909
        %v4356 = vmul.f32 %v3415, %v3914
        %v4357 = vmul.f32 %v3419, %v3917
        %v4358 = vmul.f32 %v3425, %v3922
        %v4359 = vmul.f32 %v3429, %v3925
        %v4360 = vmul.f32 %v3435, %v3930
        %v4361 = vmul.f32 %v3439, %v3933
        %v4362 = vmul.f32 %v3445, %v3938
        %v4363 = vmul.f32 %v3449, %v3941
        %v4364 = vmul.f32 %v3455, %v3946
        %v4365 = vmul.f32 %v3459, %v3949
        %v4366 = vmul.f32 %v3465, %v3954
        %v4367 = vmul.f32 %v3469, %v3957
        %v4368 = vmul.f32 %v3475, %v3962
        %v4369 = vmul.f32 %v3479, %v3965
        %v4370 = vmul.f32 %v3485, %v3970
        %v4371 = vmul.f32 %v3489, %v3973
        %v4372 = vmul.f32 %v3495, %v3978
        %v4373 = vmul.f32 %v3499, %v3981
        %v4374 = vmul.f32 %v3505, %v3986
        %v4375 = vmul.f32 %v3509, %v3989
        %v4376 = vmul.f32 %v3515, %v3994
        %v4377 = vmul.f32 %v3519, %v3997
        %v4378 = vmul.f32 %v3525, %v4002
        %v4379 = vmul.f32 %v3529, %v4005
        %v4380 = vmul.f32 %v3535, %v4010
        %v4381 = vmul.f32 %v3539, %v4013
        %v4382 = vmul.f32 %v3545, %v4018
        %v4383 = vmul.f32 %v3549, %v4021
        %v4384 = vmul.f32 %v3555, %v4026
        %v4385 = vmul.f32 %v3559, %v4029
        %v4386 = vmul.f32 %v3565, %v4034
        %v4387 = vmul.f32 %v3569, %v4037
        %v4388 = vmul.f32 %v3575, %v4042
        %v4389 = vmul.f32 %v3579, %v4045
        %v4390 = vmul.f32 %v3585, %v4050
        %v4391 = vmul.f32 %v3589, %v4053
        %v4392 = vmul.f32 %v3595, %v4058
        %v4393 = vmul.f32 %v3599, %v4061
        %v4394 = vmul.f32 %v3605, %v4066
        %v4395 = vmul.f32 %v3609, %v4069
        %v4396 = vmul.f32 %v3615, %v4074
        %v4397 = vmul.f32 %v3619, %v4077
        %v4398 = vmul.f32 %v3625, %v4082
        %v4399 = vmul.f32 %v3629, %v4085
        %v4400 = vmul.f32 %v3635, %v4090
        %v4401 = vmul.f32 %v3639, %v4093
        %v4402 = vmul.f32 %v3645, %v4098
        %v4403 = vmul.f32 %v3649, %v4101
        %v4404 = vmul.f32 %v3655, %v4106
        %v4405 = vmul.f32 %v3659, %v4109
        %v4406 = vmul.f32 %v3665, %v4114
        %v4407 = vmul.f32 %v3669, %v4117
        %v4408 = vmul.f32 %v3675, %v4122
        %v4409 = vmul.f32 %v3679, %v4125
        %v4410 = vmul.f32 %v3685, %v4130
        %v4411 = vmul.f32 %v3689, %v4133
        %v4412 = vmul.f32 %v3695, %v4138
        %v4413 = vmul.f32 %v3699, %v4141
        %v4414 = vmul.f32 %v3705, %v4146
        %v4415 = vmul.f32 %v3709, %v4149
        %v4416 = vmul.f32 %v3715, %v4154
        %v4417 = vmul.f32 %v3719, %v4157
        %v4418 = vmul.f32 %v3725, %v4162
        %v4419 = vmul.f32 %v3729, %v4165
        %v4420 = vmul.f32 %v3735, %v4170
        %v4421 = vmul.f32 %v3739, %v4173
        %v4422 = vmul.f32 %v3745, %v4178
        %v4423 = vmul.f32 %v3749, %v4181
        %v4424 = vmul.f32 %v3755, %v4186
        %v4425 = vmul.f32 %v3759, %v4189
        %v4426 = vmul.f32 %v3765, %v4194
        %v4427 = vmul.f32 %v3769, %v4197
        %v4428 = vmul.f32 %v3775, %v4202
        %v4429 = vmul.f32 %v3779, %v4205
        %v4430 = vmul.f32 %v3785, %v4210
        %v4431 = vmul.f32 %v3789, %v4213
        %v4432 = vmul.f32 %v3795, %v4218
        %v4433 = vmul.f32 %v3799, %v4221
        %v4434 = vmul.f32 %v3805, %v4226
        %v4435 = vmul.f32 %v3809, %v4229
        %v4436 = vmul.f32 %v3815, %v4234
        %v4437 = vmul.f32 %v3819, %v4237
        %v4438 = vmul.f32 %v3825, %v4242
        %v4439 = vmul.f32 %v3829, %v4245
        %v4440 = vld [vmem:[%s10] sm:$0xff]
        %v4441 = vld [vmem:[%s10 + $0x8] sm:$0xff]
        %v4442 = vld [vmem:[%s10 + $0x10] sm:$0xff]
        %v4443 = vld [vmem:[%s10 + $0x18] sm:$0xff]
        %v4444 = vld [vmem:[%s10 + $0x20] sm:$0xff]
        %v4445 = vld [vmem:[%s10 + $0x28] sm:$0xff]
        %v4446 = vld [vmem:[%s10 + $0x30] sm:$0xff]
        %v4447 = vld [vmem:[%s10 + $0x38] sm:$0xff]
        %v4448 = vld [vmem:[%s10 + $0x40] sm:$0xff]
        %v4449 = vld [vmem:[%s10 + $0x48] sm:$0xff]
        %v4450 = vld [vmem:[%s10 + $0x50] sm:$0xff]
        %v4451 = vld [vmem:[%s10 + $0x58] sm:$0xff]
        %v4452 = vld [vmem:[%s10 + $0x60] sm:$0xff]
        %v4453 = vld [vmem:[%s10 + $0x68] sm:$0xff]
        %v4454 = vld [vmem:[%s10 + $0x70] sm:$0xff]
        %v4455 = vld [vmem:[%s10 + $0x78] sm:$0xff]
        %4456 = vmatprep.subr.mxu0 0.0
        %4457 = vmatpush1.msra.mxu0 %v4455
        %4458 = vmatprep.subr.mxu0 0.0
        %4459 = vmatpush1.msra.mxu0 %v4454
        %4460 = vmatprep.subr.mxu0 0.0
        %4461 = vmatpush1.msra.mxu0 %v4453
        %4462 = vmatprep.subr.mxu0 0.0
        %4463 = vmatpush1.msra.mxu0 %v4452
        %4464 = vmatprep.subr.mxu0 0.0
        %4465 = vmatpush1.msra.mxu0 %v4451
        %4466 = vmatprep.subr.mxu0 0.0
        %4467 = vmatpush1.msra.mxu0 %v4450
        %4468 = vmatprep.subr.mxu0 0.0
        %4469 = vmatpush1.msra.mxu0 %v4449
        %4470 = vmatprep.subr.mxu0 0.0
        %4471 = vmatpush1.msra.mxu0 %v4448
        %4472 = vmatprep.subr.mxu0 0.0
        %4473 = vmatpush1.msra.mxu0 %v4447
        %4474 = vmatprep.subr.mxu0 0.0
        %4475 = vmatpush1.msra.mxu0 %v4446
        %4476 = vmatprep.subr.mxu0 0.0
        %4477 = vmatpush1.msra.mxu0 %v4445
        %4478 = vmatprep.subr.mxu0 0.0
        %4479 = vmatpush1.msra.mxu0 %v4444
        %4480 = vmatprep.subr.mxu0 0.0
        %4481 = vmatpush1.msra.mxu0 %v4443
        %4482 = vmatprep.subr.mxu0 0.0
        %4483 = vmatpush1.msra.mxu0 %v4442
        %4484 = vmatprep.subr.mxu0 0.0
        %4485 = vmatpush1.msra.mxu0 %v4441
        %4486 = vmatprep.subr.mxu0 0.0
        %4487 = vmatpush1.msra.mxu0 %v4440
        %4488 = vmatprep.subr.mxu0 0.0
        %4489 = vmatpush2.msra.mxu0 0.0
        %4490 = vmatprep.subr.mxu0 0.0
        %4491 = vmatpush2.msra.mxu0 0.0
        %4492 = vmatprep.subr.mxu0 0.0
        %4493 = vmatpush2.msra.mxu0 0.0
        %4494 = vmatprep.subr.mxu0 0.0
        %4495 = vmatpush2.msra.mxu0 0.0
        %4496 = vmatprep.subr.mxu0 0.0
        %4497 = vmatpush2.msra.mxu0 0.0
        %4498 = vmatprep.subr.mxu0 0.0
        %4499 = vmatpush2.msra.mxu0 0.0
        %4500 = vmatprep.subr.mxu0 0.0
        %4501 = vmatpush2.msra.mxu0 0.0
        %4502 = vmatprep.subr.mxu0 0.0
        %4503 = vmatpush2.msra.mxu0 0.0
        %4504 = vmatprep.subr.mxu0 0.0
        %4505 = vmatpush2.msra.mxu0 0.0
        %4506 = vmatprep.subr.mxu0 0.0
        %4507 = vmatpush2.msra.mxu0 0.0
        %4508 = vmatprep.subr.mxu0 0.0
        %4509 = vmatpush2.msra.mxu0 0.0
        %4510 = vmatprep.subr.mxu0 0.0
        %4511 = vmatpush2.msra.mxu0 0.0
        %4512 = vmatprep.subr.mxu0 0.0
        %4513 = vmatpush2.msra.mxu0 0.0
        %4514 = vmatprep.subr.mxu0 0.0
        %4515 = vmatpush2.msra.mxu0 0.0
        %4516 = vmatprep.subr.mxu0 0.0
        %4517 = vmatpush2.msra.mxu0 0.0
        %4518 = vmatprep.subr.mxu0 0.0
        %4519 = vmatpush2.msra.mxu0 0.0
        %4520 = vmatprep.mubr.f32.mxu0 0.0
        %4521 = vmatmul.mubr.f32.gmra.mxu0 %v4344
        %v4522 = vpop.f32.mrf.mxu0
        %v4523 = vadd.f32 0.0, %v4522
        %v4524 = vpop.f32.mrf.mxu0
        %4525 = vmatprep.mubr.f32.mxu0 0.0
        %4526 = vmatmul.mubr.f32.gmra.mxu0 %v4345
        %v4527 = vpop.f32.mrf.mxu0
        %v4528 = vadd.f32 0.0, %v4527
        %v4529 = vpop.f32.mrf.mxu0
        %4530 = vmatprep.mubr.f32.mxu0 0.0
        %4531 = vmatmul.mubr.f32.gmra.mxu0 %v4346
        %v4532 = vpop.f32.mrf.mxu0
        %v4533 = vadd.f32 0.0, %v4532
        %v4534 = vpop.f32.mrf.mxu0
        %4535 = vmatprep.mubr.f32.mxu0 0.0
        %4536 = vmatmul.mubr.f32.gmra.mxu0 %v4347
        %v4537 = vpop.f32.mrf.mxu0
        %v4538 = vadd.f32 0.0, %v4537
        %v4539 = vpop.f32.mrf.mxu0
        %4540 = vmatprep.mubr.f32.mxu0 0.0
        %4541 = vmatmul.mubr.f32.gmra.mxu0 %v4348
        %v4542 = vpop.f32.mrf.mxu0
        %v4543 = vadd.f32 0.0, %v4542
        %v4544 = vpop.f32.mrf.mxu0
        %4545 = vmatprep.mubr.f32.mxu0 0.0
        %4546 = vmatmul.mubr.f32.gmra.mxu0 %v4349
        %v4547 = vpop.f32.mrf.mxu0
        %v4548 = vadd.f32 0.0, %v4547
        %v4549 = vpop.f32.mrf.mxu0
        %4550 = vmatprep.mubr.f32.mxu0 0.0
        %4551 = vmatmul.mubr.f32.gmra.mxu0 %v4350
        %v4552 = vpop.f32.mrf.mxu0
        %v4553 = vadd.f32 0.0, %v4552
        %v4554 = vpop.f32.mrf.mxu0
        %4555 = vmatprep.mubr.f32.mxu0 0.0
        %4556 = vmatmul.mubr.f32.gmra.mxu0 %v4351
        %v4557 = vpop.f32.mrf.mxu0
        %v4558 = vadd.f32 0.0, %v4557
        %v4559 = vpop.f32.mrf.mxu0
        %4560 = vmatprep.mubr.f32.mxu0 0.0
        %4561 = vmatmul.mubr.f32.gmra.mxu0 %v4352
        %v4562 = vpop.f32.mrf.mxu0
        %v4563 = vadd.f32 0.0, %v4562
        %v4564 = vpop.f32.mrf.mxu0
        %4565 = vmatprep.mubr.f32.mxu0 0.0
        %4566 = vmatmul.mubr.f32.gmra.mxu0 %v4353
        %v4567 = vpop.f32.mrf.mxu0
        %v4568 = vadd.f32 0.0, %v4567
        %v4569 = vpop.f32.mrf.mxu0
        %4570 = vmatprep.mubr.f32.mxu0 0.0
        %4571 = vmatmul.mubr.f32.gmra.mxu0 %v4354
        %v4572 = vpop.f32.mrf.mxu0
        %v4573 = vadd.f32 0.0, %v4572
        %v4574 = vpop.f32.mrf.mxu0
        %4575 = vmatprep.mubr.f32.mxu0 0.0
        %4576 = vmatmul.mubr.f32.gmra.mxu0 %v4355
        %v4577 = vpop.f32.mrf.mxu0
        %v4578 = vadd.f32 0.0, %v4577
        %v4579 = vpop.f32.mrf.mxu0
        %4580 = vmatprep.mubr.f32.mxu0 0.0
        %4581 = vmatmul.mubr.f32.gmra.mxu0 %v4356
        %v4582 = vpop.f32.mrf.mxu0
        %v4583 = vadd.f32 0.0, %v4582
        %v4584 = vpop.f32.mrf.mxu0
        %4585 = vmatprep.mubr.f32.mxu0 0.0
        %4586 = vmatmul.mubr.f32.gmra.mxu0 %v4357
        %v4587 = vpop.f32.mrf.mxu0
        %v4588 = vadd.f32 0.0, %v4587
        %v4589 = vpop.f32.mrf.mxu0
        %4590 = vmatprep.mubr.f32.mxu0 0.0
        %4591 = vmatmul.mubr.f32.gmra.mxu0 %v4358
        %v4592 = vpop.f32.mrf.mxu0
        %v4593 = vadd.f32 0.0, %v4592
        %v4594 = vpop.f32.mrf.mxu0
        %4595 = vmatprep.mubr.f32.mxu0 0.0
        %4596 = vmatmul.mubr.f32.gmra.mxu0 %v4359
        %v4597 = vpop.f32.mrf.mxu0
        %v4598 = vadd.f32 0.0, %v4597
        %v4599 = vpop.f32.mrf.mxu0
        %4600 = vmatprep.mubr.f32.mxu0 0.0
        %4601 = vmatmul.mubr.f32.gmra.mxu0 %v4360
        %v4602 = vpop.f32.mrf.mxu0
        %v4603 = vadd.f32 0.0, %v4602
        %v4604 = vpop.f32.mrf.mxu0
        %4605 = vmatprep.mubr.f32.mxu0 0.0
        %4606 = vmatmul.mubr.f32.gmra.mxu0 %v4361
        %v4607 = vpop.f32.mrf.mxu0
        %v4608 = vadd.f32 0.0, %v4607
        %v4609 = vpop.f32.mrf.mxu0
        %4610 = vmatprep.mubr.f32.mxu0 0.0
        %4611 = vmatmul.mubr.f32.gmra.mxu0 %v4362
        %v4612 = vpop.f32.mrf.mxu0
        %v4613 = vadd.f32 0.0, %v4612
        %v4614 = vpop.f32.mrf.mxu0
        %4615 = vmatprep.mubr.f32.mxu0 0.0
        %4616 = vmatmul.mubr.f32.gmra.mxu0 %v4363
        %v4617 = vpop.f32.mrf.mxu0
        %v4618 = vadd.f32 0.0, %v4617
        %v4619 = vpop.f32.mrf.mxu0
        %4620 = vmatprep.mubr.f32.mxu0 0.0
        %4621 = vmatmul.mubr.f32.gmra.mxu0 %v4364
        %v4622 = vpop.f32.mrf.mxu0
        %v4623 = vadd.f32 0.0, %v4622
        %v4624 = vpop.f32.mrf.mxu0
        %4625 = vmatprep.mubr.f32.mxu0 0.0
        %4626 = vmatmul.mubr.f32.gmra.mxu0 %v4365
        %v4627 = vpop.f32.mrf.mxu0
        %v4628 = vadd.f32 0.0, %v4627
        %v4629 = vpop.f32.mrf.mxu0
        %4630 = vmatprep.mubr.f32.mxu0 0.0
        %4631 = vmatmul.mubr.f32.gmra.mxu0 %v4366
        %v4632 = vpop.f32.mrf.mxu0
        %v4633 = vadd.f32 0.0, %v4632
        %v4634 = vpop.f32.mrf.mxu0
        %4635 = vmatprep.mubr.f32.mxu0 0.0
        %4636 = vmatmul.mubr.f32.gmra.mxu0 %v4367
        %v4637 = vpop.f32.mrf.mxu0
        %v4638 = vadd.f32 0.0, %v4637
        %v4639 = vpop.f32.mrf.mxu0
        %4640 = vmatprep.mubr.f32.mxu0 0.0
        %4641 = vmatmul.mubr.f32.gmra.mxu0 %v4368
        %v4642 = vpop.f32.mrf.mxu0
        %v4643 = vadd.f32 0.0, %v4642
        %v4644 = vpop.f32.mrf.mxu0
        %4645 = vmatprep.mubr.f32.mxu0 0.0
        %4646 = vmatmul.mubr.f32.gmra.mxu0 %v4369
        %v4647 = vpop.f32.mrf.mxu0
        %v4648 = vadd.f32 0.0, %v4647
        %v4649 = vpop.f32.mrf.mxu0
        %4650 = vmatprep.mubr.f32.mxu0 0.0
        %4651 = vmatmul.mubr.f32.gmra.mxu0 %v4370
        %v4652 = vpop.f32.mrf.mxu0
        %v4653 = vadd.f32 0.0, %v4652
        %v4654 = vpop.f32.mrf.mxu0
        %4655 = vmatprep.mubr.f32.mxu0 0.0
        %4656 = vmatmul.mubr.f32.gmra.mxu0 %v4371
        %v4657 = vpop.f32.mrf.mxu0
        %v4658 = vadd.f32 0.0, %v4657
        %v4659 = vpop.f32.mrf.mxu0
        %4660 = vmatprep.mubr.f32.mxu0 0.0
        %4661 = vmatmul.mubr.f32.gmra.mxu0 %v4372
        %v4662 = vpop.f32.mrf.mxu0
        %v4663 = vadd.f32 0.0, %v4662
        %v4664 = vpop.f32.mrf.mxu0
        %4665 = vmatprep.mubr.f32.mxu0 0.0
        %4666 = vmatmul.mubr.f32.gmra.mxu0 %v4373
        %v4667 = vpop.f32.mrf.mxu0
        %v4668 = vadd.f32 0.0, %v4667
        %v4669 = vpop.f32.mrf.mxu0
        %4670 = vmatprep.mubr.f32.mxu0 0.0
        %4671 = vmatmul.mubr.f32.gmra.mxu0 %v4374
        %v4672 = vpop.f32.mrf.mxu0
        %v4673 = vadd.f32 0.0, %v4672
        %v4674 = vpop.f32.mrf.mxu0
        %4675 = vmatprep.mubr.f32.mxu0 0.0
        %4676 = vmatmul.mubr.f32.gmra.mxu0 %v4375
        %v4677 = vpop.f32.mrf.mxu0
        %v4678 = vadd.f32 0.0, %v4677
        %v4679 = vpop.f32.mrf.mxu0
        %4680 = vmatprep.mubr.f32.mxu0 0.0
        %4681 = vmatmul.mubr.f32.gmra.mxu0 %v4376
        %v4682 = vpop.f32.mrf.mxu0
        %v4683 = vadd.f32 0.0, %v4682
        %v4684 = vpop.f32.mrf.mxu0
        %4685 = vmatprep.mubr.f32.mxu0 0.0
        %4686 = vmatmul.mubr.f32.gmra.mxu0 %v4377
        %v4687 = vpop.f32.mrf.mxu0
        %v4688 = vadd.f32 0.0, %v4687
        %v4689 = vpop.f32.mrf.mxu0
        %4690 = vmatprep.mubr.f32.mxu0 0.0
        %4691 = vmatmul.mubr.f32.gmra.mxu0 %v4378
        %v4692 = vpop.f32.mrf.mxu0
        %v4693 = vadd.f32 0.0, %v4692
        %v4694 = vpop.f32.mrf.mxu0
        %4695 = vmatprep.mubr.f32.mxu0 0.0
        %4696 = vmatmul.mubr.f32.gmra.mxu0 %v4379
        %v4697 = vpop.f32.mrf.mxu0
        %v4698 = vadd.f32 0.0, %v4697
        %v4699 = vpop.f32.mrf.mxu0
        %4700 = vmatprep.mubr.f32.mxu0 0.0
        %4701 = vmatmul.mubr.f32.gmra.mxu0 %v4380
        %v4702 = vpop.f32.mrf.mxu0
        %v4703 = vadd.f32 0.0, %v4702
        %v4704 = vpop.f32.mrf.mxu0
        %4705 = vmatprep.mubr.f32.mxu0 0.0
        %4706 = vmatmul.mubr.f32.gmra.mxu0 %v4381
        %v4707 = vpop.f32.mrf.mxu0
        %v4708 = vadd.f32 0.0, %v4707
        %v4709 = vpop.f32.mrf.mxu0
        %4710 = vmatprep.mubr.f32.mxu0 0.0
        %4711 = vmatmul.mubr.f32.gmra.mxu0 %v4382
        %v4712 = vpop.f32.mrf.mxu0
        %v4713 = vadd.f32 0.0, %v4712
        %v4714 = vpop.f32.mrf.mxu0
        %4715 = vmatprep.mubr.f32.mxu0 0.0
        %4716 = vmatmul.mubr.f32.gmra.mxu0 %v4383
        %v4717 = vpop.f32.mrf.mxu0
        %v4718 = vadd.f32 0.0, %v4717
        %v4719 = vpop.f32.mrf.mxu0
        %4720 = vmatprep.mubr.f32.mxu0 0.0
        %4721 = vmatmul.mubr.f32.gmra.mxu0 %v4384
        %v4722 = vpop.f32.mrf.mxu0
        %v4723 = vadd.f32 0.0, %v4722
        %v4724 = vpop.f32.mrf.mxu0
        %4725 = vmatprep.mubr.f32.mxu0 0.0
        %4726 = vmatmul.mubr.f32.gmra.mxu0 %v4385
        %v4727 = vpop.f32.mrf.mxu0
        %v4728 = vadd.f32 0.0, %v4727
        %v4729 = vpop.f32.mrf.mxu0
        %4730 = vmatprep.mubr.f32.mxu0 0.0
        %4731 = vmatmul.mubr.f32.gmra.mxu0 %v4386
        %v4732 = vpop.f32.mrf.mxu0
        %v4733 = vadd.f32 0.0, %v4732
        %v4734 = vpop.f32.mrf.mxu0
        %4735 = vmatprep.mubr.f32.mxu0 0.0
        %4736 = vmatmul.mubr.f32.gmra.mxu0 %v4387
        %v4737 = vpop.f32.mrf.mxu0
        %v4738 = vadd.f32 0.0, %v4737
        %v4739 = vpop.f32.mrf.mxu0
        %4740 = vmatprep.mubr.f32.mxu0 0.0
        %4741 = vmatmul.mubr.f32.gmra.mxu0 %v4388
        %v4742 = vpop.f32.mrf.mxu0
        %v4743 = vadd.f32 0.0, %v4742
        %v4744 = vpop.f32.mrf.mxu0
        %4745 = vmatprep.mubr.f32.mxu0 0.0
        %4746 = vmatmul.mubr.f32.gmra.mxu0 %v4389
        %v4747 = vpop.f32.mrf.mxu0
        %v4748 = vadd.f32 0.0, %v4747
        %v4749 = vpop.f32.mrf.mxu0
        %4750 = vmatprep.mubr.f32.mxu0 0.0
        %4751 = vmatmul.mubr.f32.gmra.mxu0 %v4390
        %v4752 = vpop.f32.mrf.mxu0
        %v4753 = vadd.f32 0.0, %v4752
        %v4754 = vpop.f32.mrf.mxu0
        %4755 = vmatprep.mubr.f32.mxu0 0.0
        %4756 = vmatmul.mubr.f32.gmra.mxu0 %v4391
        %v4757 = vpop.f32.mrf.mxu0
        %v4758 = vadd.f32 0.0, %v4757
        %v4759 = vpop.f32.mrf.mxu0
        %4760 = vmatprep.mubr.f32.mxu0 0.0
        %4761 = vmatmul.mubr.f32.gmra.mxu0 %v4392
        %v4762 = vpop.f32.mrf.mxu0
        %v4763 = vadd.f32 0.0, %v4762
        %v4764 = vpop.f32.mrf.mxu0
        %4765 = vmatprep.mubr.f32.mxu0 0.0
        %4766 = vmatmul.mubr.f32.gmra.mxu0 %v4393
        %v4767 = vpop.f32.mrf.mxu0
        %v4768 = vadd.f32 0.0, %v4767
        %v4769 = vpop.f32.mrf.mxu0
        %4770 = vmatprep.mubr.f32.mxu0 0.0
        %4771 = vmatmul.mubr.f32.gmra.mxu0 %v4394
        %v4772 = vpop.f32.mrf.mxu0
        %v4773 = vadd.f32 0.0, %v4772
        %v4774 = vpop.f32.mrf.mxu0
        %4775 = vmatprep.mubr.f32.mxu0 0.0
        %4776 = vmatmul.mubr.f32.gmra.mxu0 %v4395
        %v4777 = vpop.f32.mrf.mxu0
        %v4778 = vadd.f32 0.0, %v4777
        %v4779 = vpop.f32.mrf.mxu0
        %4780 = vmatprep.mubr.f32.mxu0 0.0
        %4781 = vmatmul.mubr.f32.gmra.mxu0 %v4396
        %v4782 = vpop.f32.mrf.mxu0
        %v4783 = vadd.f32 0.0, %v4782
        %v4784 = vpop.f32.mrf.mxu0
        %4785 = vmatprep.mubr.f32.mxu0 0.0
        %4786 = vmatmul.mubr.f32.gmra.mxu0 %v4397
        %v4787 = vpop.f32.mrf.mxu0
        %v4788 = vadd.f32 0.0, %v4787
        %v4789 = vpop.f32.mrf.mxu0
        %4790 = vmatprep.mubr.f32.mxu0 0.0
        %4791 = vmatmul.mubr.f32.gmra.mxu0 %v4398
        %v4792 = vpop.f32.mrf.mxu0
        %v4793 = vadd.f32 0.0, %v4792
        %v4794 = vpop.f32.mrf.mxu0
        %4795 = vmatprep.mubr.f32.mxu0 0.0
        %4796 = vmatmul.mubr.f32.gmra.mxu0 %v4399
        %v4797 = vpop.f32.mrf.mxu0
        %v4798 = vadd.f32 0.0, %v4797
        %v4799 = vpop.f32.mrf.mxu0
        %4800 = vmatprep.mubr.f32.mxu0 0.0
        %4801 = vmatmul.mubr.f32.gmra.mxu0 %v4400
        %v4802 = vpop.f32.mrf.mxu0
        %v4803 = vadd.f32 0.0, %v4802
        %v4804 = vpop.f32.mrf.mxu0
        %4805 = vmatprep.mubr.f32.mxu0 0.0
        %4806 = vmatmul.mubr.f32.gmra.mxu0 %v4401
        %v4807 = vpop.f32.mrf.mxu0
        %v4808 = vadd.f32 0.0, %v4807
        %v4809 = vpop.f32.mrf.mxu0
        %4810 = vmatprep.mubr.f32.mxu0 0.0
        %4811 = vmatmul.mubr.f32.gmra.mxu0 %v4402
        %v4812 = vpop.f32.mrf.mxu0
        %v4813 = vadd.f32 0.0, %v4812
        %v4814 = vpop.f32.mrf.mxu0
        %4815 = vmatprep.mubr.f32.mxu0 0.0
        %4816 = vmatmul.mubr.f32.gmra.mxu0 %v4403
        %v4817 = vpop.f32.mrf.mxu0
        %v4818 = vadd.f32 0.0, %v4817
        %v4819 = vpop.f32.mrf.mxu0
        %4820 = vmatprep.mubr.f32.mxu0 0.0
        %4821 = vmatmul.mubr.f32.gmra.mxu0 %v4404
        %v4822 = vpop.f32.mrf.mxu0
        %v4823 = vadd.f32 0.0, %v4822
        %v4824 = vpop.f32.mrf.mxu0
        %4825 = vmatprep.mubr.f32.mxu0 0.0
        %4826 = vmatmul.mubr.f32.gmra.mxu0 %v4405
        %v4827 = vpop.f32.mrf.mxu0
        %v4828 = vadd.f32 0.0, %v4827
        %v4829 = vpop.f32.mrf.mxu0
        %4830 = vmatprep.mubr.f32.mxu0 0.0
        %4831 = vmatmul.mubr.f32.gmra.mxu0 %v4406
        %v4832 = vpop.f32.mrf.mxu0
        %v4833 = vadd.f32 0.0, %v4832
        %v4834 = vpop.f32.mrf.mxu0
        %4835 = vmatprep.mubr.f32.mxu0 0.0
        %4836 = vmatmul.mubr.f32.gmra.mxu0 %v4407
        %v4837 = vpop.f32.mrf.mxu0
        %v4838 = vadd.f32 0.0, %v4837
        %v4839 = vpop.f32.mrf.mxu0
        %4840 = vmatprep.mubr.f32.mxu0 0.0
        %4841 = vmatmul.mubr.f32.gmra.mxu0 %v4408
        %v4842 = vpop.f32.mrf.mxu0
        %v4843 = vadd.f32 0.0, %v4842
        %v4844 = vpop.f32.mrf.mxu0
        %4845 = vmatprep.mubr.f32.mxu0 0.0
        %4846 = vmatmul.mubr.f32.gmra.mxu0 %v4409
        %v4847 = vpop.f32.mrf.mxu0
        %v4848 = vadd.f32 0.0, %v4847
        %v4849 = vpop.f32.mrf.mxu0
        %4850 = vmatprep.mubr.f32.mxu0 0.0
        %4851 = vmatmul.mubr.f32.gmra.mxu0 %v4410
        %v4852 = vpop.f32.mrf.mxu0
        %v4853 = vadd.f32 0.0, %v4852
        %v4854 = vpop.f32.mrf.mxu0
        %4855 = vmatprep.mubr.f32.mxu0 0.0
        %4856 = vmatmul.mubr.f32.gmra.mxu0 %v4411
        %v4857 = vpop.f32.mrf.mxu0
        %v4858 = vadd.f32 0.0, %v4857
        %v4859 = vpop.f32.mrf.mxu0
        %4860 = vmatprep.mubr.f32.mxu0 0.0
        %4861 = vmatmul.mubr.f32.gmra.mxu0 %v4412
        %v4862 = vpop.f32.mrf.mxu0
        %v4863 = vadd.f32 0.0, %v4862
        %v4864 = vpop.f32.mrf.mxu0
        %4865 = vmatprep.mubr.f32.mxu0 0.0
        %4866 = vmatmul.mubr.f32.gmra.mxu0 %v4413
        %v4867 = vpop.f32.mrf.mxu0
        %v4868 = vadd.f32 0.0, %v4867
        %v4869 = vpop.f32.mrf.mxu0
        %4870 = vmatprep.mubr.f32.mxu0 0.0
        %4871 = vmatmul.mubr.f32.gmra.mxu0 %v4414
        %v4872 = vpop.f32.mrf.mxu0
        %v4873 = vadd.f32 0.0, %v4872
        %v4874 = vpop.f32.mrf.mxu0
        %4875 = vmatprep.mubr.f32.mxu0 0.0
        %4876 = vmatmul.mubr.f32.gmra.mxu0 %v4415
        %v4877 = vpop.f32.mrf.mxu0
        %v4878 = vadd.f32 0.0, %v4877
        %v4879 = vpop.f32.mrf.mxu0
        %4880 = vmatprep.mubr.f32.mxu0 0.0
        %4881 = vmatmul.mubr.f32.gmra.mxu0 %v4416
        %v4882 = vpop.f32.mrf.mxu0
        %v4883 = vadd.f32 0.0, %v4882
        %v4884 = vpop.f32.mrf.mxu0
        %4885 = vmatprep.mubr.f32.mxu0 0.0
        %4886 = vmatmul.mubr.f32.gmra.mxu0 %v4417
        %v4887 = vpop.f32.mrf.mxu0
        %v4888 = vadd.f32 0.0, %v4887
        %v4889 = vpop.f32.mrf.mxu0
        %4890 = vmatprep.mubr.f32.mxu0 0.0
        %4891 = vmatmul.mubr.f32.gmra.mxu0 %v4418
        %v4892 = vpop.f32.mrf.mxu0
        %v4893 = vadd.f32 0.0, %v4892
        %v4894 = vpop.f32.mrf.mxu0
        %4895 = vmatprep.mubr.f32.mxu0 0.0
        %4896 = vmatmul.mubr.f32.gmra.mxu0 %v4419
        %v4897 = vpop.f32.mrf.mxu0
        %v4898 = vadd.f32 0.0, %v4897
        %v4899 = vpop.f32.mrf.mxu0
        %4900 = vmatprep.mubr.f32.mxu0 0.0
        %4901 = vmatmul.mubr.f32.gmra.mxu0 %v4420
        %v4902 = vpop.f32.mrf.mxu0
        %v4903 = vadd.f32 0.0, %v4902
        %v4904 = vpop.f32.mrf.mxu0
        %4905 = vmatprep.mubr.f32.mxu0 0.0
        %4906 = vmatmul.mubr.f32.gmra.mxu0 %v4421
        %v4907 = vpop.f32.mrf.mxu0
        %v4908 = vadd.f32 0.0, %v4907
        %v4909 = vpop.f32.mrf.mxu0
        %4910 = vmatprep.mubr.f32.mxu0 0.0
        %4911 = vmatmul.mubr.f32.gmra.mxu0 %v4422
        %v4912 = vpop.f32.mrf.mxu0
        %v4913 = vadd.f32 0.0, %v4912
        %v4914 = vpop.f32.mrf.mxu0
        %4915 = vmatprep.mubr.f32.mxu0 0.0
        %4916 = vmatmul.mubr.f32.gmra.mxu0 %v4423
        %v4917 = vpop.f32.mrf.mxu0
        %v4918 = vadd.f32 0.0, %v4917
        %v4919 = vpop.f32.mrf.mxu0
        %4920 = vmatprep.mubr.f32.mxu0 0.0
        %4921 = vmatmul.mubr.f32.gmra.mxu0 %v4424
        %v4922 = vpop.f32.mrf.mxu0
        %v4923 = vadd.f32 0.0, %v4922
        %v4924 = vpop.f32.mrf.mxu0
        %4925 = vmatprep.mubr.f32.mxu0 0.0
        %4926 = vmatmul.mubr.f32.gmra.mxu0 %v4425
        %v4927 = vpop.f32.mrf.mxu0
        %v4928 = vadd.f32 0.0, %v4927
        %v4929 = vpop.f32.mrf.mxu0
        %4930 = vmatprep.mubr.f32.mxu0 0.0
        %4931 = vmatmul.mubr.f32.gmra.mxu0 %v4426
        %v4932 = vpop.f32.mrf.mxu0
        %v4933 = vadd.f32 0.0, %v4932
        %v4934 = vpop.f32.mrf.mxu0
        %4935 = vmatprep.mubr.f32.mxu0 0.0
        %4936 = vmatmul.mubr.f32.gmra.mxu0 %v4427
        %v4937 = vpop.f32.mrf.mxu0
        %v4938 = vadd.f32 0.0, %v4937
        %v4939 = vpop.f32.mrf.mxu0
        %4940 = vmatprep.mubr.f32.mxu0 0.0
        %4941 = vmatmul.mubr.f32.gmra.mxu0 %v4428
        %v4942 = vpop.f32.mrf.mxu0
        %v4943 = vadd.f32 0.0, %v4942
        %v4944 = vpop.f32.mrf.mxu0
        %4945 = vmatprep.mubr.f32.mxu0 0.0
        %4946 = vmatmul.mubr.f32.gmra.mxu0 %v4429
        %v4947 = vpop.f32.mrf.mxu0
        %v4948 = vadd.f32 0.0, %v4947
        %v4949 = vpop.f32.mrf.mxu0
        %4950 = vmatprep.mubr.f32.mxu0 0.0
        %4951 = vmatmul.mubr.f32.gmra.mxu0 %v4430
        %v4952 = vpop.f32.mrf.mxu0
        %v4953 = vadd.f32 0.0, %v4952
        %v4954 = vpop.f32.mrf.mxu0
        %4955 = vmatprep.mubr.f32.mxu0 0.0
        %4956 = vmatmul.mubr.f32.gmra.mxu0 %v4431
        %v4957 = vpop.f32.mrf.mxu0
        %v4958 = vadd.f32 0.0, %v4957
        %v4959 = vpop.f32.mrf.mxu0
        %4960 = vmatprep.mubr.f32.mxu0 0.0
        %4961 = vmatmul.mubr.f32.gmra.mxu0 %v4432
        %v4962 = vpop.f32.mrf.mxu0
        %v4963 = vadd.f32 0.0, %v4962
        %v4964 = vpop.f32.mrf.mxu0
        %4965 = vmatprep.mubr.f32.mxu0 0.0
        %4966 = vmatmul.mubr.f32.gmra.mxu0 %v4433
        %v4967 = vpop.f32.mrf.mxu0
        %v4968 = vadd.f32 0.0, %v4967
        %v4969 = vpop.f32.mrf.mxu0
        %4970 = vmatprep.mubr.f32.mxu0 0.0
        %4971 = vmatmul.mubr.f32.gmra.mxu0 %v4434
        %v4972 = vpop.f32.mrf.mxu0
        %v4973 = vadd.f32 0.0, %v4972
        %v4974 = vpop.f32.mrf.mxu0
        %4975 = vmatprep.mubr.f32.mxu0 0.0
        %4976 = vmatmul.mubr.f32.gmra.mxu0 %v4435
        %v4977 = vpop.f32.mrf.mxu0
        %v4978 = vadd.f32 0.0, %v4977
        %v4979 = vpop.f32.mrf.mxu0
        %4980 = vmatprep.mubr.f32.mxu0 0.0
        %4981 = vmatmul.mubr.f32.gmra.mxu0 %v4436
        %v4982 = vpop.f32.mrf.mxu0
        %v4983 = vadd.f32 0.0, %v4982
        %v4984 = vpop.f32.mrf.mxu0
        %4985 = vmatprep.mubr.f32.mxu0 0.0
        %4986 = vmatmul.mubr.f32.gmra.mxu0 %v4437
        %v4987 = vpop.f32.mrf.mxu0
        %v4988 = vadd.f32 0.0, %v4987
        %v4989 = vpop.f32.mrf.mxu0
        %4990 = vmatprep.mubr.f32.mxu0 0.0
        %4991 = vmatmul.mubr.f32.gmra.mxu0 %v4438
        %v4992 = vpop.f32.mrf.mxu0
        %v4993 = vadd.f32 0.0, %v4992
        %v4994 = vpop.f32.mrf.mxu0
        %4995 = vmatprep.mubr.f32.mxu0 0.0
        %4996 = vmatmul.mubr.f32.gmra.mxu0 %v4439
        %v4997 = vpop.f32.mrf.mxu0
        %v4998 = vadd.f32 0.0, %v4997
        %v4999 = vpop.f32.mrf.mxu0
        %5000 = vdwg.mxu0
        %v5001 = vld [vmem:[%s11] sm:$0x1]
        %v5003 = vlaneseq
        %v5004 = vshrl.u32 %v5003, 7
        %v5005 = vsub.s32 0, %v5004
        %v5006 = vrot.slane %v5001, %v5005
        %v5008 = vsub.f32 %v4523, %v5006
        %v5009 = vsub.f32 %v4528, %v5006
        %v5010 = vsub.f32 %v4533, %v5006
        %v5011 = vsub.f32 %v4538, %v5006
        %v5012 = vsub.f32 %v4543, %v5006
        %v5013 = vsub.f32 %v4548, %v5006
        %v5014 = vsub.f32 %v4553, %v5006
        %v5015 = vsub.f32 %v4558, %v5006
        %v5016 = vsub.f32 %v4563, %v5006
        %v5017 = vsub.f32 %v4568, %v5006
        %v5018 = vsub.f32 %v4573, %v5006
        %v5019 = vsub.f32 %v4578, %v5006
        %v5020 = vsub.f32 %v4583, %v5006
        %v5021 = vsub.f32 %v4588, %v5006
        %v5022 = vsub.f32 %v4593, %v5006
        %v5023 = vsub.f32 %v4598, %v5006
        %v5024 = vsub.f32 %v4603, %v5006
        %v5025 = vsub.f32 %v4608, %v5006
        %v5026 = vsub.f32 %v4613, %v5006
        %v5027 = vsub.f32 %v4618, %v5006
        %v5028 = vsub.f32 %v4623, %v5006
        %v5029 = vsub.f32 %v4628, %v5006
        %v5030 = vsub.f32 %v4633, %v5006
        %v5031 = vsub.f32 %v4638, %v5006
        %v5032 = vsub.f32 %v4643, %v5006
        %v5033 = vsub.f32 %v4648, %v5006
        %v5034 = vsub.f32 %v4653, %v5006
        %v5035 = vsub.f32 %v4658, %v5006
        %v5036 = vsub.f32 %v4663, %v5006
        %v5037 = vsub.f32 %v4668, %v5006
        %v5038 = vsub.f32 %v4673, %v5006
        %v5039 = vsub.f32 %v4678, %v5006
        %v5040 = vsub.f32 %v4683, %v5006
        %v5041 = vsub.f32 %v4688, %v5006
        %v5042 = vsub.f32 %v4693, %v5006
        %v5043 = vsub.f32 %v4698, %v5006
        %v5044 = vsub.f32 %v4703, %v5006
        %v5045 = vsub.f32 %v4708, %v5006
        %v5046 = vsub.f32 %v4713, %v5006
        %v5047 = vsub.f32 %v4718, %v5006
        %v5048 = vsub.f32 %v4723, %v5006
        %v5049 = vsub.f32 %v4728, %v5006
        %v5050 = vsub.f32 %v4733, %v5006
        %v5051 = vsub.f32 %v4738, %v5006
        %v5052 = vsub.f32 %v4743, %v5006
        %v5053 = vsub.f32 %v4748, %v5006
        %v5054 = vsub.f32 %v4753, %v5006
        %v5055 = vsub.f32 %v4758, %v5006
        %v5056 = vsub.f32 %v4763, %v5006
        %v5057 = vsub.f32 %v4768, %v5006
        %v5058 = vsub.f32 %v4773, %v5006
        %v5059 = vsub.f32 %v4778, %v5006
        %v5060 = vsub.f32 %v4783, %v5006
        %v5061 = vsub.f32 %v4788, %v5006
        %v5062 = vsub.f32 %v4793, %v5006
        %v5063 = vsub.f32 %v4798, %v5006
        %v5064 = vsub.f32 %v4803, %v5006
        %v5065 = vsub.f32 %v4808, %v5006
        %v5066 = vsub.f32 %v4813, %v5006
        %v5067 = vsub.f32 %v4818, %v5006
        %v5068 = vsub.f32 %v4823, %v5006
        %v5069 = vsub.f32 %v4828, %v5006
        %v5070 = vsub.f32 %v4833, %v5006
        %v5071 = vsub.f32 %v4838, %v5006
        %v5072 = vsub.f32 %v4843, %v5006
        %v5073 = vsub.f32 %v4848, %v5006
        %v5074 = vsub.f32 %v4853, %v5006
        %v5075 = vsub.f32 %v4858, %v5006
        %v5076 = vsub.f32 %v4863, %v5006
        %v5077 = vsub.f32 %v4868, %v5006
        %v5078 = vsub.f32 %v4873, %v5006
        %v5079 = vsub.f32 %v4878, %v5006
        %v5080 = vsub.f32 %v4883, %v5006
        %v5081 = vsub.f32 %v4888, %v5006
        %v5082 = vsub.f32 %v4893, %v5006
        %v5083 = vsub.f32 %v4898, %v5006
        %v5084 = vsub.f32 %v4903, %v5006
        %v5085 = vsub.f32 %v4908, %v5006
        %v5086 = vsub.f32 %v4913, %v5006
        %v5087 = vsub.f32 %v4918, %v5006
        %v5088 = vsub.f32 %v4923, %v5006
        %v5089 = vsub.f32 %v4928, %v5006
        %v5090 = vsub.f32 %v4933, %v5006
        %v5091 = vsub.f32 %v4938, %v5006
        %v5092 = vsub.f32 %v4943, %v5006
        %v5093 = vsub.f32 %v4948, %v5006
        %v5094 = vsub.f32 %v4953, %v5006
        %v5095 = vsub.f32 %v4958, %v5006
        %v5096 = vsub.f32 %v4963, %v5006
        %v5097 = vsub.f32 %v4968, %v5006
        %v5098 = vsub.f32 %v4973, %v5006
        %v5099 = vsub.f32 %v4978, %v5006
        %v5100 = vsub.f32 %v4983, %v5006
        %v5101 = vsub.f32 %v4988, %v5006
        %v5102 = vsub.f32 %v4993, %v5006
        %v5103 = vsub.f32 %v4998, %v5006
        %v5104 = vand.u32 2147483647, %v5008
        %v5105 = vand.u32 2147483647, %v5009
        %v5106 = vand.u32 2147483647, %v5010
        %v5107 = vand.u32 2147483647, %v5011
        %v5108 = vand.u32 2147483647, %v5012
        %v5109 = vand.u32 2147483647, %v5013
        %v5110 = vand.u32 2147483647, %v5014
        %v5111 = vand.u32 2147483647, %v5015
        %v5112 = vand.u32 2147483647, %v5016
        %v5113 = vand.u32 2147483647, %v5017
        %v5114 = vand.u32 2147483647, %v5018
        %v5115 = vand.u32 2147483647, %v5019
        %v5116 = vand.u32 2147483647, %v5020
        %v5117 = vand.u32 2147483647, %v5021
        %v5118 = vand.u32 2147483647, %v5022
        %v5119 = vand.u32 2147483647, %v5023
        %v5120 = vand.u32 2147483647, %v5024
        %v5121 = vand.u32 2147483647, %v5025
        %v5122 = vand.u32 2147483647, %v5026
        %v5123 = vand.u32 2147483647, %v5027
        %v5124 = vand.u32 2147483647, %v5028
        %v5125 = vand.u32 2147483647, %v5029
        %v5126 = vand.u32 2147483647, %v5030
        %v5127 = vand.u32 2147483647, %v5031
        %v5128 = vand.u32 2147483647, %v5032
        %v5129 = vand.u32 2147483647, %v5033
        %v5130 = vand.u32 2147483647, %v5034
        %v5131 = vand.u32 2147483647, %v5035
        %v5132 = vand.u32 2147483647, %v5036
        %v5133 = vand.u32 2147483647, %v5037
        %v5134 = vand.u32 2147483647, %v5038
        %v5135 = vand.u32 2147483647, %v5039
        %v5136 = vand.u32 2147483647, %v5040
        %v5137 = vand.u32 2147483647, %v5041
        %v5138 = vand.u32 2147483647, %v5042
        %v5139 = vand.u32 2147483647, %v5043
        %v5140 = vand.u32 2147483647, %v5044
        %v5141 = vand.u32 2147483647, %v5045
        %v5142 = vand.u32 2147483647, %v5046
        %v5143 = vand.u32 2147483647, %v5047
        %v5144 = vand.u32 2147483647, %v5048
        %v5145 = vand.u32 2147483647, %v5049
        %v5146 = vand.u32 2147483647, %v5050
        %v5147 = vand.u32 2147483647, %v5051
        %v5148 = vand.u32 2147483647, %v5052
        %v5149 = vand.u32 2147483647, %v5053
        %v5150 = vand.u32 2147483647, %v5054
        %v5151 = vand.u32 2147483647, %v5055
        %v5152 = vand.u32 2147483647, %v5056
        %v5153 = vand.u32 2147483647, %v5057
        %v5154 = vand.u32 2147483647, %v5058
        %v5155 = vand.u32 2147483647, %v5059
        %v5156 = vand.u32 2147483647, %v5060
        %v5157 = vand.u32 2147483647, %v5061
        %v5158 = vand.u32 2147483647, %v5062
        %v5159 = vand.u32 2147483647, %v5063
        %v5160 = vand.u32 2147483647, %v5064
        %v5161 = vand.u32 2147483647, %v5065
        %v5162 = vand.u32 2147483647, %v5066
        %v5163 = vand.u32 2147483647, %v5067
        %v5164 = vand.u32 2147483647, %v5068
        %v5165 = vand.u32 2147483647, %v5069
        %v5166 = vand.u32 2147483647, %v5070
        %v5167 = vand.u32 2147483647, %v5071
        %v5168 = vand.u32 2147483647, %v5072
        %v5169 = vand.u32 2147483647, %v5073
        %v5170 = vand.u32 2147483647, %v5074
        %v5171 = vand.u32 2147483647, %v5075
        %v5172 = vand.u32 2147483647, %v5076
        %v5173 = vand.u32 2147483647, %v5077
        %v5174 = vand.u32 2147483647, %v5078
        %v5175 = vand.u32 2147483647, %v5079
        %v5176 = vand.u32 2147483647, %v5080
        %v5177 = vand.u32 2147483647, %v5081
        %v5178 = vand.u32 2147483647, %v5082
        %v5179 = vand.u32 2147483647, %v5083
        %v5180 = vand.u32 2147483647, %v5084
        %v5181 = vand.u32 2147483647, %v5085
        %v5182 = vand.u32 2147483647, %v5086
        %v5183 = vand.u32 2147483647, %v5087
        %v5184 = vand.u32 2147483647, %v5088
        %v5185 = vand.u32 2147483647, %v5089
        %v5186 = vand.u32 2147483647, %v5090
        %v5187 = vand.u32 2147483647, %v5091
        %v5188 = vand.u32 2147483647, %v5092
        %v5189 = vand.u32 2147483647, %v5093
        %v5190 = vand.u32 2147483647, %v5094
        %v5191 = vand.u32 2147483647, %v5095
        %v5192 = vand.u32 2147483647, %v5096
        %v5193 = vand.u32 2147483647, %v5097
        %v5194 = vand.u32 2147483647, %v5098
        %v5195 = vand.u32 2147483647, %v5099
        %v5196 = vand.u32 2147483647, %v5100
        %v5197 = vand.u32 2147483647, %v5101
        %v5198 = vand.u32 2147483647, %v5102
        %v5199 = vand.u32 2147483647, %v5103
        %s5200 = smul.u32 %s29, 768
        %v5201 = vlaneseq
        %v5202 = vshrl.u32 %v5201, 7
        %v5203 = vadd.s32 %v5202, 8
        %v5204 = vadd.s32 %v5202, 16
        %v5205 = vadd.s32 %v5202, 24
        %v5206 = vadd.s32 %v5202, 32
        %v5207 = vadd.s32 %v5202, 40
        %v5208 = vadd.s32 %v5202, 48
        %v5209 = vadd.s32 %v5202, 56
        %v5210 = vadd.s32 %v5202, 64
        %v5211 = vadd.s32 %v5202, 72
        %v5212 = vadd.s32 %v5202, 80
        %v5213 = vadd.s32 %v5202, 88
        %v5214 = vadd.s32 %v5202, 96
        %v5215 = vadd.s32 %v5202, 104
        %v5216 = vadd.s32 %v5202, 112
        %v5217 = vadd.s32 %v5202, 120
        %v5218 = vadd.s32 %v5202, 128
        %v5219 = vadd.s32 %v5202, 136
        %v5220 = vadd.s32 %v5202, 144
        %v5221 = vadd.s32 %v5202, 152
        %v5222 = vadd.s32 %v5202, 160
        %v5223 = vadd.s32 %v5202, 168
        %v5224 = vadd.s32 %v5202, 176
        %v5225 = vadd.s32 %v5202, 184
        %v5226 = vadd.s32 %v5202, 192
        %v5227 = vadd.s32 %v5202, 200
        %v5228 = vadd.s32 %v5202, 208
        %v5229 = vadd.s32 %v5202, 216
        %v5230 = vadd.s32 %v5202, 224
        %v5231 = vadd.s32 %v5202, 232
        %v5232 = vadd.s32 %v5202, 240
        %v5233 = vadd.s32 %v5202, 248
        %v5234 = vadd.s32 %v5202, 256
        %v5235 = vadd.s32 %v5202, 264
        %v5236 = vadd.s32 %v5202, 272
        %v5237 = vadd.s32 %v5202, 280
        %v5238 = vadd.s32 %v5202, 288
        %v5239 = vadd.s32 %v5202, 296
        %v5240 = vadd.s32 %v5202, 304
        %v5241 = vadd.s32 %v5202, 312
        %v5242 = vadd.s32 %v5202, 320
        %v5243 = vadd.s32 %v5202, 328
        %v5244 = vadd.s32 %v5202, 336
        %v5245 = vadd.s32 %v5202, 344
        %v5246 = vadd.s32 %v5202, 352
        %v5247 = vadd.s32 %v5202, 360
        %v5248 = vadd.s32 %v5202, 368
        %v5249 = vadd.s32 %v5202, 376
        %v5250 = vadd.s32 %v5202, 384
        %v5251 = vadd.s32 %v5202, 392
        %v5252 = vadd.s32 %v5202, 400
        %v5253 = vadd.s32 %v5202, 408
        %v5254 = vadd.s32 %v5202, 416
        %v5255 = vadd.s32 %v5202, 424
        %v5256 = vadd.s32 %v5202, 432
        %v5257 = vadd.s32 %v5202, 440
        %v5258 = vadd.s32 %v5202, 448
        %v5259 = vadd.s32 %v5202, 456
        %v5260 = vadd.s32 %v5202, 464
        %v5261 = vadd.s32 %v5202, 472
        %v5262 = vadd.s32 %v5202, 480
        %v5263 = vadd.s32 %v5202, 488
        %v5264 = vadd.s32 %v5202, 496
        %v5265 = vadd.s32 %v5202, 504
        %v5266 = vadd.s32 %v5202, 512
        %v5267 = vadd.s32 %v5202, 520
        %v5268 = vadd.s32 %v5202, 528
        %v5269 = vadd.s32 %v5202, 536
        %v5270 = vadd.s32 %v5202, 544
        %v5271 = vadd.s32 %v5202, 552
        %v5272 = vadd.s32 %v5202, 560
        %v5273 = vadd.s32 %v5202, 568
        %v5274 = vadd.s32 %v5202, 576
        %v5275 = vadd.s32 %v5202, 584
        %v5276 = vadd.s32 %v5202, 592
        %v5277 = vadd.s32 %v5202, 600
        %v5278 = vadd.s32 %v5202, 608
        %v5279 = vadd.s32 %v5202, 616
        %v5280 = vadd.s32 %v5202, 624
        %v5281 = vadd.s32 %v5202, 632
        %v5282 = vadd.s32 %v5202, 640
        %v5283 = vadd.s32 %v5202, 648
        %v5284 = vadd.s32 %v5202, 656
        %v5285 = vadd.s32 %v5202, 664
        %v5286 = vadd.s32 %v5202, 672
        %v5287 = vadd.s32 %v5202, 680
        %v5288 = vadd.s32 %v5202, 688
        %v5289 = vadd.s32 %v5202, 696
        %v5290 = vadd.s32 %v5202, 704
        %v5291 = vadd.s32 %v5202, 712
        %v5292 = vadd.s32 %v5202, 720
        %v5293 = vadd.s32 %v5202, 728
        %v5294 = vadd.s32 %v5202, 736
        %v5295 = vadd.s32 %v5202, 744
        %v5296 = vadd.s32 %v5202, 752
        %v5297 = vadd.s32 %v5202, 760
        %v5298 = vstv %s5200
        %v5299 = vadd.s32 %v5298, %v5202
        %v5300 = vadd.s32 %v5298, %v5203
        %v5301 = vadd.s32 %v5298, %v5204
        %v5302 = vadd.s32 %v5298, %v5205
        %v5303 = vadd.s32 %v5298, %v5206
        %v5304 = vadd.s32 %v5298, %v5207
        %v5305 = vadd.s32 %v5298, %v5208
        %v5306 = vadd.s32 %v5298, %v5209
        %v5307 = vadd.s32 %v5298, %v5210
        %v5308 = vadd.s32 %v5298, %v5211
        %v5309 = vadd.s32 %v5298, %v5212
        %v5310 = vadd.s32 %v5298, %v5213
        %v5311 = vadd.s32 %v5298, %v5214
        %v5312 = vadd.s32 %v5298, %v5215
        %v5313 = vadd.s32 %v5298, %v5216
        %v5314 = vadd.s32 %v5298, %v5217
        %v5315 = vadd.s32 %v5298, %v5218
        %v5316 = vadd.s32 %v5298, %v5219
        %v5317 = vadd.s32 %v5298, %v5220
        %v5318 = vadd.s32 %v5298, %v5221
        %v5319 = vadd.s32 %v5298, %v5222
        %v5320 = vadd.s32 %v5298, %v5223
        %v5321 = vadd.s32 %v5298, %v5224
        %v5322 = vadd.s32 %v5298, %v5225
        %v5323 = vadd.s32 %v5298, %v5226
        %v5324 = vadd.s32 %v5298, %v5227
        %v5325 = vadd.s32 %v5298, %v5228
        %v5326 = vadd.s32 %v5298, %v5229
        %v5327 = vadd.s32 %v5298, %v5230
        %v5328 = vadd.s32 %v5298, %v5231
        %v5329 = vadd.s32 %v5298, %v5232
        %v5330 = vadd.s32 %v5298, %v5233
        %v5331 = vadd.s32 %v5298, %v5234
        %v5332 = vadd.s32 %v5298, %v5235
        %v5333 = vadd.s32 %v5298, %v5236
        %v5334 = vadd.s32 %v5298, %v5237
        %v5335 = vadd.s32 %v5298, %v5238
        %v5336 = vadd.s32 %v5298, %v5239
        %v5337 = vadd.s32 %v5298, %v5240
        %v5338 = vadd.s32 %v5298, %v5241
        %v5339 = vadd.s32 %v5298, %v5242
        %v5340 = vadd.s32 %v5298, %v5243
        %v5341 = vadd.s32 %v5298, %v5244
        %v5342 = vadd.s32 %v5298, %v5245
        %v5343 = vadd.s32 %v5298, %v5246
        %v5344 = vadd.s32 %v5298, %v5247
        %v5345 = vadd.s32 %v5298, %v5248
        %v5346 = vadd.s32 %v5298, %v5249
        %v5347 = vadd.s32 %v5298, %v5250
        %v5348 = vadd.s32 %v5298, %v5251
        %v5349 = vadd.s32 %v5298, %v5252
        %v5350 = vadd.s32 %v5298, %v5253
        %v5351 = vadd.s32 %v5298, %v5254
        %v5352 = vadd.s32 %v5298, %v5255
        %v5353 = vadd.s32 %v5298, %v5256
        %v5354 = vadd.s32 %v5298, %v5257
        %v5355 = vadd.s32 %v5298, %v5258
        %v5356 = vadd.s32 %v5298, %v5259
        %v5357 = vadd.s32 %v5298, %v5260
        %v5358 = vadd.s32 %v5298, %v5261
        %v5359 = vadd.s32 %v5298, %v5262
        %v5360 = vadd.s32 %v5298, %v5263
        %v5361 = vadd.s32 %v5298, %v5264
        %v5362 = vadd.s32 %v5298, %v5265
        %v5363 = vadd.s32 %v5298, %v5266
        %v5364 = vadd.s32 %v5298, %v5267
        %v5365 = vadd.s32 %v5298, %v5268
        %v5366 = vadd.s32 %v5298, %v5269
        %v5367 = vadd.s32 %v5298, %v5270
        %v5368 = vadd.s32 %v5298, %v5271
        %v5369 = vadd.s32 %v5298, %v5272
        %v5370 = vadd.s32 %v5298, %v5273
        %v5371 = vadd.s32 %v5298, %v5274
        %v5372 = vadd.s32 %v5298, %v5275
        %v5373 = vadd.s32 %v5298, %v5276
        %v5374 = vadd.s32 %v5298, %v5277
        %v5375 = vadd.s32 %v5298, %v5278
        %v5376 = vadd.s32 %v5298, %v5279
        %v5377 = vadd.s32 %v5298, %v5280
        %v5378 = vadd.s32 %v5298, %v5281
        %v5379 = vadd.s32 %v5298, %v5282
        %v5380 = vadd.s32 %v5298, %v5283
        %v5381 = vadd.s32 %v5298, %v5284
        %v5382 = vadd.s32 %v5298, %v5285
        %v5383 = vadd.s32 %v5298, %v5286
        %v5384 = vadd.s32 %v5298, %v5287
        %v5385 = vadd.s32 %v5298, %v5288
        %v5386 = vadd.s32 %v5298, %v5289
        %v5387 = vadd.s32 %v5298, %v5290
        %v5388 = vadd.s32 %v5298, %v5291
        %v5389 = vadd.s32 %v5298, %v5292
        %v5390 = vadd.s32 %v5298, %v5293
        %v5391 = vadd.s32 %v5298, %v5294
        %v5392 = vadd.s32 %v5298, %v5295
        %v5393 = vadd.s32 %v5298, %v5296
        %v5394 = vadd.s32 %v5298, %v5297
        %s5395 = sld [smem:[#allocation3]]
        %v5396 = vstv %s5395
        %vm5397 = vcmp.lt.s32.totalorder %v5299, %v5396
        %vm5398 = vcmp.lt.s32.totalorder %v5300, %v5396
        %vm5399 = vcmp.lt.s32.totalorder %v5301, %v5396
        %vm5400 = vcmp.lt.s32.totalorder %v5302, %v5396
        %vm5401 = vcmp.lt.s32.totalorder %v5303, %v5396
        %vm5402 = vcmp.lt.s32.totalorder %v5304, %v5396
        %vm5403 = vcmp.lt.s32.totalorder %v5305, %v5396
        %vm5404 = vcmp.lt.s32.totalorder %v5306, %v5396
        %vm5405 = vcmp.lt.s32.totalorder %v5307, %v5396
        %vm5406 = vcmp.lt.s32.totalorder %v5308, %v5396
        %vm5407 = vcmp.lt.s32.totalorder %v5309, %v5396
        %vm5408 = vcmp.lt.s32.totalorder %v5310, %v5396
        %vm5409 = vcmp.lt.s32.totalorder %v5311, %v5396
        %vm5410 = vcmp.lt.s32.totalorder %v5312, %v5396
        %vm5411 = vcmp.lt.s32.totalorder %v5313, %v5396
        %vm5412 = vcmp.lt.s32.totalorder %v5314, %v5396
        %vm5413 = vcmp.lt.s32.totalorder %v5315, %v5396
        %vm5414 = vcmp.lt.s32.totalorder %v5316, %v5396
        %vm5415 = vcmp.lt.s32.totalorder %v5317, %v5396
        %vm5416 = vcmp.lt.s32.totalorder %v5318, %v5396
        %vm5417 = vcmp.lt.s32.totalorder %v5319, %v5396
        %vm5418 = vcmp.lt.s32.totalorder %v5320, %v5396
        %vm5419 = vcmp.lt.s32.totalorder %v5321, %v5396
        %vm5420 = vcmp.lt.s32.totalorder %v5322, %v5396
        %vm5421 = vcmp.lt.s32.totalorder %v5323, %v5396
        %vm5422 = vcmp.lt.s32.totalorder %v5324, %v5396
        %vm5423 = vcmp.lt.s32.totalorder %v5325, %v5396
        %vm5424 = vcmp.lt.s32.totalorder %v5326, %v5396
        %vm5425 = vcmp.lt.s32.totalorder %v5327, %v5396
        %vm5426 = vcmp.lt.s32.totalorder %v5328, %v5396
        %vm5427 = vcmp.lt.s32.totalorder %v5329, %v5396
        %vm5428 = vcmp.lt.s32.totalorder %v5330, %v5396
        %vm5429 = vcmp.lt.s32.totalorder %v5331, %v5396
        %vm5430 = vcmp.lt.s32.totalorder %v5332, %v5396
        %vm5431 = vcmp.lt.s32.totalorder %v5333, %v5396
        %vm5432 = vcmp.lt.s32.totalorder %v5334, %v5396
        %vm5433 = vcmp.lt.s32.totalorder %v5335, %v5396
        %vm5434 = vcmp.lt.s32.totalorder %v5336, %v5396
        %vm5435 = vcmp.lt.s32.totalorder %v5337, %v5396
        %vm5436 = vcmp.lt.s32.totalorder %v5338, %v5396
        %vm5437 = vcmp.lt.s32.totalorder %v5339, %v5396
        %vm5438 = vcmp.lt.s32.totalorder %v5340, %v5396
        %vm5439 = vcmp.lt.s32.totalorder %v5341, %v5396
        %vm5440 = vcmp.lt.s32.totalorder %v5342, %v5396
        %vm5441 = vcmp.lt.s32.totalorder %v5343, %v5396
        %vm5442 = vcmp.lt.s32.totalorder %v5344, %v5396
        %vm5443 = vcmp.lt.s32.totalorder %v5345, %v5396
        %vm5444 = vcmp.lt.s32.totalorder %v5346, %v5396
        %vm5445 = vcmp.lt.s32.totalorder %v5347, %v5396
        %vm5446 = vcmp.lt.s32.totalorder %v5348, %v5396
        %vm5447 = vcmp.lt.s32.totalorder %v5349, %v5396
        %vm5448 = vcmp.lt.s32.totalorder %v5350, %v5396
        %vm5449 = vcmp.lt.s32.totalorder %v5351, %v5396
        %vm5450 = vcmp.lt.s32.totalorder %v5352, %v5396
        %vm5451 = vcmp.lt.s32.totalorder %v5353, %v5396
        %vm5452 = vcmp.lt.s32.totalorder %v5354, %v5396
        %vm5453 = vcmp.lt.s32.totalorder %v5355, %v5396
        %vm5454 = vcmp.lt.s32.totalorder %v5356, %v5396
        %vm5455 = vcmp.lt.s32.totalorder %v5357, %v5396
        %vm5456 = vcmp.lt.s32.totalorder %v5358, %v5396
        %vm5457 = vcmp.lt.s32.totalorder %v5359, %v5396
        %vm5458 = vcmp.lt.s32.totalorder %v5360, %v5396
        %vm5459 = vcmp.lt.s32.totalorder %v5361, %v5396
        %vm5460 = vcmp.lt.s32.totalorder %v5362, %v5396
        %vm5461 = vcmp.lt.s32.totalorder %v5363, %v5396
        %vm5462 = vcmp.lt.s32.totalorder %v5364, %v5396
        %vm5463 = vcmp.lt.s32.totalorder %v5365, %v5396
        %vm5464 = vcmp.lt.s32.totalorder %v5366, %v5396
        %vm5465 = vcmp.lt.s32.totalorder %v5367, %v5396
        %vm5466 = vcmp.lt.s32.totalorder %v5368, %v5396
        %vm5467 = vcmp.lt.s32.totalorder %v5369, %v5396
        %vm5468 = vcmp.lt.s32.totalorder %v5370, %v5396
        %vm5469 = vcmp.lt.s32.totalorder %v5371, %v5396
        %vm5470 = vcmp.lt.s32.totalorder %v5372, %v5396
        %vm5471 = vcmp.lt.s32.totalorder %v5373, %v5396
        %vm5472 = vcmp.lt.s32.totalorder %v5374, %v5396
        %vm5473 = vcmp.lt.s32.totalorder %v5375, %v5396
        %vm5474 = vcmp.lt.s32.totalorder %v5376, %v5396
        %vm5475 = vcmp.lt.s32.totalorder %v5377, %v5396
        %vm5476 = vcmp.lt.s32.totalorder %v5378, %v5396
        %vm5477 = vcmp.lt.s32.totalorder %v5379, %v5396
        %vm5478 = vcmp.lt.s32.totalorder %v5380, %v5396
        %vm5479 = vcmp.lt.s32.totalorder %v5381, %v5396
        %vm5480 = vcmp.lt.s32.totalorder %v5382, %v5396
        %vm5481 = vcmp.lt.s32.totalorder %v5383, %v5396
        %vm5482 = vcmp.lt.s32.totalorder %v5384, %v5396
        %vm5483 = vcmp.lt.s32.totalorder %v5385, %v5396
        %vm5484 = vcmp.lt.s32.totalorder %v5386, %v5396
        %vm5485 = vcmp.lt.s32.totalorder %v5387, %v5396
        %vm5486 = vcmp.lt.s32.totalorder %v5388, %v5396
        %vm5487 = vcmp.lt.s32.totalorder %v5389, %v5396
        %vm5488 = vcmp.lt.s32.totalorder %v5390, %v5396
        %vm5489 = vcmp.lt.s32.totalorder %v5391, %v5396
        %vm5490 = vcmp.lt.s32.totalorder %v5392, %v5396
        %vm5491 = vcmp.lt.s32.totalorder %v5393, %v5396
        %vm5492 = vcmp.lt.s32.totalorder %v5394, %v5396
        %v5493 = vsel %vm5397, 1, 0
        %v5494 = vsel %vm5398, 1, 0
        %v5495 = vsel %vm5399, 1, 0
        %v5496 = vsel %vm5400, 1, 0
        %v5497 = vsel %vm5401, 1, 0
        %v5498 = vsel %vm5402, 1, 0
        %v5499 = vsel %vm5403, 1, 0
        %v5500 = vsel %vm5404, 1, 0
        %v5501 = vsel %vm5405, 1, 0
        %v5502 = vsel %vm5406, 1, 0
        %v5503 = vsel %vm5407, 1, 0
        %v5504 = vsel %vm5408, 1, 0
        %v5505 = vsel %vm5409, 1, 0
        %v5506 = vsel %vm5410, 1, 0
        %v5507 = vsel %vm5411, 1, 0
        %v5508 = vsel %vm5412, 1, 0
        %v5509 = vsel %vm5413, 1, 0
        %v5510 = vsel %vm5414, 1, 0
        %v5511 = vsel %vm5415, 1, 0
        %v5512 = vsel %vm5416, 1, 0
        %v5513 = vsel %vm5417, 1, 0
        %v5514 = vsel %vm5418, 1, 0
        %v5515 = vsel %vm5419, 1, 0
        %v5516 = vsel %vm5420, 1, 0
        %v5517 = vsel %vm5421, 1, 0
        %v5518 = vsel %vm5422, 1, 0
        %v5519 = vsel %vm5423, 1, 0
        %v5520 = vsel %vm5424, 1, 0
        %v5521 = vsel %vm5425, 1, 0
        %v5522 = vsel %vm5426, 1, 0
        %v5523 = vsel %vm5427, 1, 0
        %v5524 = vsel %vm5428, 1, 0
        %v5525 = vsel %vm5429, 1, 0
        %v5526 = vsel %vm5430, 1, 0
        %v5527 = vsel %vm5431, 1, 0
        %v5528 = vsel %vm5432, 1, 0
        %v5529 = vsel %vm5433, 1, 0
        %v5530 = vsel %vm5434, 1, 0
        %v5531 = vsel %vm5435, 1, 0
        %v5532 = vsel %vm5436, 1, 0
        %v5533 = vsel %vm5437, 1, 0
        %v5534 = vsel %vm5438, 1, 0
        %v5535 = vsel %vm5439, 1, 0
        %v5536 = vsel %vm5440, 1, 0
        %v5537 = vsel %vm5441, 1, 0
        %v5538 = vsel %vm5442, 1, 0
        %v5539 = vsel %vm5443, 1, 0
        %v5540 = vsel %vm5444, 1, 0
        %v5541 = vsel %vm5445, 1, 0
        %v5542 = vsel %vm5446, 1, 0
        %v5543 = vsel %vm5447, 1, 0
        %v5544 = vsel %vm5448, 1, 0
        %v5545 = vsel %vm5449, 1, 0
        %v5546 = vsel %vm5450, 1, 0
        %v5547 = vsel %vm5451, 1, 0
        %v5548 = vsel %vm5452, 1, 0
        %v5549 = vsel %vm5453, 1, 0
        %v5550 = vsel %vm5454, 1, 0
        %v5551 = vsel %vm5455, 1, 0
        %v5552 = vsel %vm5456, 1, 0
        %v5553 = vsel %vm5457, 1, 0
        %v5554 = vsel %vm5458, 1, 0
        %v5555 = vsel %vm5459, 1, 0
        %v5556 = vsel %vm5460, 1, 0
        %v5557 = vsel %vm5461, 1, 0
        %v5558 = vsel %vm5462, 1, 0
        %v5559 = vsel %vm5463, 1, 0
        %v5560 = vsel %vm5464, 1, 0
        %v5561 = vsel %vm5465, 1, 0
        %v5562 = vsel %vm5466, 1, 0
        %v5563 = vsel %vm5467, 1, 0
        %v5564 = vsel %vm5468, 1, 0
        %v5565 = vsel %vm5469, 1, 0
        %v5566 = vsel %vm5470, 1, 0
        %v5567 = vsel %vm5471, 1, 0
        %v5568 = vsel %vm5472, 1, 0
        %v5569 = vsel %vm5473, 1, 0
        %v5570 = vsel %vm5474, 1, 0
        %v5571 = vsel %vm5475, 1, 0
        %v5572 = vsel %vm5476, 1, 0
        %v5573 = vsel %vm5477, 1, 0
        %v5574 = vsel %vm5478, 1, 0
        %v5575 = vsel %vm5479, 1, 0
        %v5576 = vsel %vm5480, 1, 0
        %v5577 = vsel %vm5481, 1, 0
        %v5578 = vsel %vm5482, 1, 0
        %v5579 = vsel %vm5483, 1, 0
        %v5580 = vsel %vm5484, 1, 0
        %v5581 = vsel %vm5485, 1, 0
        %v5582 = vsel %vm5486, 1, 0
        %v5583 = vsel %vm5487, 1, 0
        %v5584 = vsel %vm5488, 1, 0
        %v5585 = vsel %vm5489, 1, 0
        %v5586 = vsel %vm5490, 1, 0
        %v5587 = vsel %vm5491, 1, 0
        %v5588 = vsel %vm5492, 1, 0
        %vm5589 = vcmp.eq.s32.totalorder %v5493, 1
        %vm5590 = vcmp.eq.s32.totalorder %v5494, 1
        %vm5591 = vcmp.eq.s32.totalorder %v5495, 1
        %vm5592 = vcmp.eq.s32.totalorder %v5496, 1
        %vm5593 = vcmp.eq.s32.totalorder %v5497, 1
        %vm5594 = vcmp.eq.s32.totalorder %v5498, 1
        %vm5595 = vcmp.eq.s32.totalorder %v5499, 1
        %vm5596 = vcmp.eq.s32.totalorder %v5500, 1
        %vm5597 = vcmp.eq.s32.totalorder %v5501, 1
        %vm5598 = vcmp.eq.s32.totalorder %v5502, 1
        %vm5599 = vcmp.eq.s32.totalorder %v5503, 1
        %vm5600 = vcmp.eq.s32.totalorder %v5504, 1
        %vm5601 = vcmp.eq.s32.totalorder %v5505, 1
        %vm5602 = vcmp.eq.s32.totalorder %v5506, 1
        %vm5603 = vcmp.eq.s32.totalorder %v5507, 1
        %vm5604 = vcmp.eq.s32.totalorder %v5508, 1
        %vm5605 = vcmp.eq.s32.totalorder %v5509, 1
        %vm5606 = vcmp.eq.s32.totalorder %v5510, 1
        %vm5607 = vcmp.eq.s32.totalorder %v5511, 1
        %vm5608 = vcmp.eq.s32.totalorder %v5512, 1
        %vm5609 = vcmp.eq.s32.totalorder %v5513, 1
        %vm5610 = vcmp.eq.s32.totalorder %v5514, 1
        %vm5611 = vcmp.eq.s32.totalorder %v5515, 1
        %vm5612 = vcmp.eq.s32.totalorder %v5516, 1
        %vm5613 = vcmp.eq.s32.totalorder %v5517, 1
        %vm5614 = vcmp.eq.s32.totalorder %v5518, 1
        %vm5615 = vcmp.eq.s32.totalorder %v5519, 1
        %vm5616 = vcmp.eq.s32.totalorder %v5520, 1
        %vm5617 = vcmp.eq.s32.totalorder %v5521, 1
        %vm5618 = vcmp.eq.s32.totalorder %v5522, 1
        %vm5619 = vcmp.eq.s32.totalorder %v5523, 1
        %vm5620 = vcmp.eq.s32.totalorder %v5524, 1
        %vm5621 = vcmp.eq.s32.totalorder %v5525, 1
        %vm5622 = vcmp.eq.s32.totalorder %v5526, 1
        %vm5623 = vcmp.eq.s32.totalorder %v5527, 1
        %vm5624 = vcmp.eq.s32.totalorder %v5528, 1
        %vm5625 = vcmp.eq.s32.totalorder %v5529, 1
        %vm5626 = vcmp.eq.s32.totalorder %v5530, 1
        %vm5627 = vcmp.eq.s32.totalorder %v5531, 1
        %vm5628 = vcmp.eq.s32.totalorder %v5532, 1
        %vm5629 = vcmp.eq.s32.totalorder %v5533, 1
        %vm5630 = vcmp.eq.s32.totalorder %v5534, 1
        %vm5631 = vcmp.eq.s32.totalorder %v5535, 1
        %vm5632 = vcmp.eq.s32.totalorder %v5536, 1
        %vm5633 = vcmp.eq.s32.totalorder %v5537, 1
        %vm5634 = vcmp.eq.s32.totalorder %v5538, 1
        %vm5635 = vcmp.eq.s32.totalorder %v5539, 1
        %vm5636 = vcmp.eq.s32.totalorder %v5540, 1
        %vm5637 = vcmp.eq.s32.totalorder %v5541, 1
        %vm5638 = vcmp.eq.s32.totalorder %v5542, 1
        %vm5639 = vcmp.eq.s32.totalorder %v5543, 1
        %vm5640 = vcmp.eq.s32.totalorder %v5544, 1
        %vm5641 = vcmp.eq.s32.totalorder %v5545, 1
        %vm5642 = vcmp.eq.s32.totalorder %v5546, 1
        %vm5643 = vcmp.eq.s32.totalorder %v5547, 1
        %vm5644 = vcmp.eq.s32.totalorder %v5548, 1
        %vm5645 = vcmp.eq.s32.totalorder %v5549, 1
        %vm5646 = vcmp.eq.s32.totalorder %v5550, 1
        %vm5647 = vcmp.eq.s32.totalorder %v5551, 1
        %vm5648 = vcmp.eq.s32.totalorder %v5552, 1
        %vm5649 = vcmp.eq.s32.totalorder %v5553, 1
        %vm5650 = vcmp.eq.s32.totalorder %v5554, 1
        %vm5651 = vcmp.eq.s32.totalorder %v5555, 1
        %vm5652 = vcmp.eq.s32.totalorder %v5556, 1
        %vm5653 = vcmp.eq.s32.totalorder %v5557, 1
        %vm5654 = vcmp.eq.s32.totalorder %v5558, 1
        %vm5655 = vcmp.eq.s32.totalorder %v5559, 1
        %vm5656 = vcmp.eq.s32.totalorder %v5560, 1
        %vm5657 = vcmp.eq.s32.totalorder %v5561, 1
        %vm5658 = vcmp.eq.s32.totalorder %v5562, 1
        %vm5659 = vcmp.eq.s32.totalorder %v5563, 1
        %vm5660 = vcmp.eq.s32.totalorder %v5564, 1
        %vm5661 = vcmp.eq.s32.totalorder %v5565, 1
        %vm5662 = vcmp.eq.s32.totalorder %v5566, 1
        %vm5663 = vcmp.eq.s32.totalorder %v5567, 1
        %vm5664 = vcmp.eq.s32.totalorder %v5568, 1
        %vm5665 = vcmp.eq.s32.totalorder %v5569, 1
        %vm5666 = vcmp.eq.s32.totalorder %v5570, 1
        %vm5667 = vcmp.eq.s32.totalorder %v5571, 1
        %vm5668 = vcmp.eq.s32.totalorder %v5572, 1
        %vm5669 = vcmp.eq.s32.totalorder %v5573, 1
        %vm5670 = vcmp.eq.s32.totalorder %v5574, 1
        %vm5671 = vcmp.eq.s32.totalorder %v5575, 1
        %vm5672 = vcmp.eq.s32.totalorder %v5576, 1
        %vm5673 = vcmp.eq.s32.totalorder %v5577, 1
        %vm5674 = vcmp.eq.s32.totalorder %v5578, 1
        %vm5675 = vcmp.eq.s32.totalorder %v5579, 1
        %vm5676 = vcmp.eq.s32.totalorder %v5580, 1
        %vm5677 = vcmp.eq.s32.totalorder %v5581, 1
        %vm5678 = vcmp.eq.s32.totalorder %v5582, 1
        %vm5679 = vcmp.eq.s32.totalorder %v5583, 1
        %vm5680 = vcmp.eq.s32.totalorder %v5584, 1
        %vm5681 = vcmp.eq.s32.totalorder %v5585, 1
        %vm5682 = vcmp.eq.s32.totalorder %v5586, 1
        %vm5683 = vcmp.eq.s32.totalorder %v5587, 1
        %vm5684 = vcmp.eq.s32.totalorder %v5588, 1
        %v5685 = vsel %vm5589, %v5104, 0.0
        %v5686 = vsel %vm5590, %v5105, 0.0
        %v5687 = vsel %vm5591, %v5106, 0.0
        %v5688 = vsel %vm5592, %v5107, 0.0
        %v5689 = vsel %vm5593, %v5108, 0.0
        %v5690 = vsel %vm5594, %v5109, 0.0
        %v5691 = vsel %vm5595, %v5110, 0.0
        %v5692 = vsel %vm5596, %v5111, 0.0
        %v5693 = vsel %vm5597, %v5112, 0.0
        %v5694 = vsel %vm5598, %v5113, 0.0
        %v5695 = vsel %vm5599, %v5114, 0.0
        %v5696 = vsel %vm5600, %v5115, 0.0
        %v5697 = vsel %vm5601, %v5116, 0.0
        %v5698 = vsel %vm5602, %v5117, 0.0
        %v5699 = vsel %vm5603, %v5118, 0.0
        %v5700 = vsel %vm5604, %v5119, 0.0
        %v5701 = vsel %vm5605, %v5120, 0.0
        %v5702 = vsel %vm5606, %v5121, 0.0
        %v5703 = vsel %vm5607, %v5122, 0.0
        %v5704 = vsel %vm5608, %v5123, 0.0
        %v5705 = vsel %vm5609, %v5124, 0.0
        %v5706 = vsel %vm5610, %v5125, 0.0
        %v5707 = vsel %vm5611, %v5126, 0.0
        %v5708 = vsel %vm5612, %v5127, 0.0
        %v5709 = vsel %vm5613, %v5128, 0.0
        %v5710 = vsel %vm5614, %v5129, 0.0
        %v5711 = vsel %vm5615, %v5130, 0.0
        %v5712 = vsel %vm5616, %v5131, 0.0
        %v5713 = vsel %vm5617, %v5132, 0.0
        %v5714 = vsel %vm5618, %v5133, 0.0
        %v5715 = vsel %vm5619, %v5134, 0.0
        %v5716 = vsel %vm5620, %v5135, 0.0
        %v5717 = vsel %vm5621, %v5136, 0.0
        %v5718 = vsel %vm5622, %v5137, 0.0
        %v5719 = vsel %vm5623, %v5138, 0.0
        %v5720 = vsel %vm5624, %v5139, 0.0
        %v5721 = vsel %vm5625, %v5140, 0.0
        %v5722 = vsel %vm5626, %v5141, 0.0
        %v5723 = vsel %vm5627, %v5142, 0.0
        %v5724 = vsel %vm5628, %v5143, 0.0
        %v5725 = vsel %vm5629, %v5144, 0.0
        %v5726 = vsel %vm5630, %v5145, 0.0
        %v5727 = vsel %vm5631, %v5146, 0.0
        %v5728 = vsel %vm5632, %v5147, 0.0
        %v5729 = vsel %vm5633, %v5148, 0.0
        %v5730 = vsel %vm5634, %v5149, 0.0
        %v5731 = vsel %vm5635, %v5150, 0.0
        %v5732 = vsel %vm5636, %v5151, 0.0
        %v5733 = vsel %vm5637, %v5152, 0.0
        %v5734 = vsel %vm5638, %v5153, 0.0
        %v5735 = vsel %vm5639, %v5154, 0.0
        %v5736 = vsel %vm5640, %v5155, 0.0
        %v5737 = vsel %vm5641, %v5156, 0.0
        %v5738 = vsel %vm5642, %v5157, 0.0
        %v5739 = vsel %vm5643, %v5158, 0.0
        %v5740 = vsel %vm5644, %v5159, 0.0
        %v5741 = vsel %vm5645, %v5160, 0.0
        %v5742 = vsel %vm5646, %v5161, 0.0
        %v5743 = vsel %vm5647, %v5162, 0.0
        %v5744 = vsel %vm5648, %v5163, 0.0
        %v5745 = vsel %vm5649, %v5164, 0.0
        %v5746 = vsel %vm5650, %v5165, 0.0
        %v5747 = vsel %vm5651, %v5166, 0.0
        %v5748 = vsel %vm5652, %v5167, 0.0
        %v5749 = vsel %vm5653, %v5168, 0.0
        %v5750 = vsel %vm5654, %v5169, 0.0
        %v5751 = vsel %vm5655, %v5170, 0.0
        %v5752 = vsel %vm5656, %v5171, 0.0
        %v5753 = vsel %vm5657, %v5172, 0.0
        %v5754 = vsel %vm5658, %v5173, 0.0
        %v5755 = vsel %vm5659, %v5174, 0.0
        %v5756 = vsel %vm5660, %v5175, 0.0
        %v5757 = vsel %vm5661, %v5176, 0.0
        %v5758 = vsel %vm5662, %v5177, 0.0
        %v5759 = vsel %vm5663, %v5178, 0.0
        %v5760 = vsel %vm5664, %v5179, 0.0
        %v5761 = vsel %vm5665, %v5180, 0.0
        %v5762 = vsel %vm5666, %v5181, 0.0
        %v5763 = vsel %vm5667, %v5182, 0.0
        %v5764 = vsel %vm5668, %v5183, 0.0
        %v5765 = vsel %vm5669, %v5184, 0.0
        %v5766 = vsel %vm5670, %v5185, 0.0
        %v5767 = vsel %vm5671, %v5186, 0.0
        %v5768 = vsel %vm5672, %v5187, 0.0
        %v5769 = vsel %vm5673, %v5188, 0.0
        %v5770 = vsel %vm5674, %v5189, 0.0
        %v5771 = vsel %vm5675, %v5190, 0.0
        %v5772 = vsel %vm5676, %v5191, 0.0
        %v5773 = vsel %vm5677, %v5192, 0.0
        %v5774 = vsel %vm5678, %v5193, 0.0
        %v5775 = vsel %vm5679, %v5194, 0.0
        %v5776 = vsel %vm5680, %v5195, 0.0
        %v5777 = vsel %vm5681, %v5196, 0.0
        %v5778 = vsel %vm5682, %v5197, 0.0
        %v5779 = vsel %vm5683, %v5198, 0.0
        %v5780 = vsel %vm5684, %v5199, 0.0
        %v5781 = vsel %vm1700, %v5685, 0.0
        %v5782 = vsel %vm1700, %v5686, 0.0
        %v5783 = vadd.f32 %v5781, %v5782
        %v5784 = vsel %vm1700, %v5687, 0.0
        %v5785 = vadd.f32 %v5783, %v5784
        %v5786 = vsel %vm1700, %v5688, 0.0
        %v5787 = vadd.f32 %v5785, %v5786
        %v5788 = vsel %vm1700, %v5689, 0.0
        %v5789 = vadd.f32 %v5787, %v5788
        %v5790 = vsel %vm1700, %v5690, 0.0
        %v5791 = vadd.f32 %v5789, %v5790
        %v5792 = vsel %vm1700, %v5691, 0.0
        %v5793 = vadd.f32 %v5791, %v5792
        %v5794 = vsel %vm1700, %v5692, 0.0
        %v5795 = vadd.f32 %v5793, %v5794
        %v5796 = vsel %vm1700, %v5693, 0.0
        %v5797 = vadd.f32 %v5795, %v5796
        %v5798 = vsel %vm1700, %v5694, 0.0
        %v5799 = vadd.f32 %v5797, %v5798
        %v5800 = vsel %vm1700, %v5695, 0.0
        %v5801 = vadd.f32 %v5799, %v5800
        %v5802 = vsel %vm1700, %v5696, 0.0
        %v5803 = vadd.f32 %v5801, %v5802
        %v5804 = vsel %vm1700, %v5697, 0.0
        %v5805 = vadd.f32 %v5803, %v5804
        %v5806 = vsel %vm1700, %v5698, 0.0
        %v5807 = vadd.f32 %v5805, %v5806
        %v5808 = vsel %vm1700, %v5699, 0.0
        %v5809 = vadd.f32 %v5807, %v5808
        %v5810 = vsel %vm1700, %v5700, 0.0
        %v5811 = vadd.f32 %v5809, %v5810
        %v5812 = vsel %vm1700, %v5701, 0.0
        %v5813 = vadd.f32 %v5811, %v5812
        %v5814 = vsel %vm1700, %v5702, 0.0
        %v5815 = vadd.f32 %v5813, %v5814
        %v5816 = vsel %vm1700, %v5703, 0.0
        %v5817 = vadd.f32 %v5815, %v5816
        %v5818 = vsel %vm1700, %v5704, 0.0
        %v5819 = vadd.f32 %v5817, %v5818
        %v5820 = vsel %vm1700, %v5705, 0.0
        %v5821 = vadd.f32 %v5819, %v5820
        %v5822 = vsel %vm1700, %v5706, 0.0
        %v5823 = vadd.f32 %v5821, %v5822
        %v5824 = vsel %vm1700, %v5707, 0.0
        %v5825 = vadd.f32 %v5823, %v5824
        %v5826 = vsel %vm1700, %v5708, 0.0
        %v5827 = vadd.f32 %v5825, %v5826
        %v5828 = vsel %vm1700, %v5709, 0.0
        %v5829 = vadd.f32 %v5827, %v5828
        %v5830 = vsel %vm1700, %v5710, 0.0
        %v5831 = vadd.f32 %v5829, %v5830
        %v5832 = vsel %vm1700, %v5711, 0.0
        %v5833 = vadd.f32 %v5831, %v5832
        %v5834 = vsel %vm1700, %v5712, 0.0
        %v5835 = vadd.f32 %v5833, %v5834
        %v5836 = vsel %vm1700, %v5713, 0.0
        %v5837 = vadd.f32 %v5835, %v5836
        %v5838 = vsel %vm1700, %v5714, 0.0
        %v5839 = vadd.f32 %v5837, %v5838
        %v5840 = vsel %vm1700, %v5715, 0.0
        %v5841 = vadd.f32 %v5839, %v5840
        %v5842 = vsel %vm1700, %v5716, 0.0
        %v5843 = vadd.f32 %v5841, %v5842
        %v5844 = vsel %vm1700, %v5717, 0.0
        %v5845 = vadd.f32 %v5843, %v5844
        %v5846 = vsel %vm1700, %v5718, 0.0
        %v5847 = vadd.f32 %v5845, %v5846
        %v5848 = vsel %vm1700, %v5719, 0.0
        %v5849 = vadd.f32 %v5847, %v5848
        %v5850 = vsel %vm1700, %v5720, 0.0
        %v5851 = vadd.f32 %v5849, %v5850
        %v5852 = vsel %vm1700, %v5721, 0.0
        %v5853 = vadd.f32 %v5851, %v5852
        %v5854 = vsel %vm1700, %v5722, 0.0
        %v5855 = vadd.f32 %v5853, %v5854
        %v5856 = vsel %vm1700, %v5723, 0.0
        %v5857 = vadd.f32 %v5855, %v5856
        %v5858 = vsel %vm1700, %v5724, 0.0
        %v5859 = vadd.f32 %v5857, %v5858
        %v5860 = vsel %vm1700, %v5725, 0.0
        %v5861 = vadd.f32 %v5859, %v5860
        %v5862 = vsel %vm1700, %v5726, 0.0
        %v5863 = vadd.f32 %v5861, %v5862
        %v5864 = vsel %vm1700, %v5727, 0.0
        %v5865 = vadd.f32 %v5863, %v5864
        %v5866 = vsel %vm1700, %v5728, 0.0
        %v5867 = vadd.f32 %v5865, %v5866
        %v5868 = vsel %vm1700, %v5729, 0.0
        %v5869 = vadd.f32 %v5867, %v5868
        %v5870 = vsel %vm1700, %v5730, 0.0
        %v5871 = vadd.f32 %v5869, %v5870
        %v5872 = vsel %vm1700, %v5731, 0.0
        %v5873 = vadd.f32 %v5871, %v5872
        %v5874 = vsel %vm1700, %v5732, 0.0
        %v5875 = vadd.f32 %v5873, %v5874
        %v5876 = vsel %vm1700, %v5733, 0.0
        %v5877 = vadd.f32 %v5875, %v5876
        %v5878 = vsel %vm1700, %v5734, 0.0
        %v5879 = vadd.f32 %v5877, %v5878
        %v5880 = vsel %vm1700, %v5735, 0.0
        %v5881 = vadd.f32 %v5879, %v5880
        %v5882 = vsel %vm1700, %v5736, 0.0
        %v5883 = vadd.f32 %v5881, %v5882
        %v5884 = vsel %vm1700, %v5737, 0.0
        %v5885 = vadd.f32 %v5883, %v5884
        %v5886 = vsel %vm1700, %v5738, 0.0
        %v5887 = vadd.f32 %v5885, %v5886
        %v5888 = vsel %vm1700, %v5739, 0.0
        %v5889 = vadd.f32 %v5887, %v5888
        %v5890 = vsel %vm1700, %v5740, 0.0
        %v5891 = vadd.f32 %v5889, %v5890
        %v5892 = vsel %vm1700, %v5741, 0.0
        %v5893 = vadd.f32 %v5891, %v5892
        %v5894 = vsel %vm1700, %v5742, 0.0
        %v5895 = vadd.f32 %v5893, %v5894
        %v5896 = vsel %vm1700, %v5743, 0.0
        %v5897 = vadd.f32 %v5895, %v5896
        %v5898 = vsel %vm1700, %v5744, 0.0
        %v5899 = vadd.f32 %v5897, %v5898
        %v5900 = vsel %vm1700, %v5745, 0.0
        %v5901 = vadd.f32 %v5899, %v5900
        %v5902 = vsel %vm1700, %v5746, 0.0
        %v5903 = vadd.f32 %v5901, %v5902
        %v5904 = vsel %vm1700, %v5747, 0.0
        %v5905 = vadd.f32 %v5903, %v5904
        %v5906 = vsel %vm1700, %v5748, 0.0
        %v5907 = vadd.f32 %v5905, %v5906
        %v5908 = vsel %vm1700, %v5749, 0.0
        %v5909 = vadd.f32 %v5907, %v5908
        %v5910 = vsel %vm1700, %v5750, 0.0
        %v5911 = vadd.f32 %v5909, %v5910
        %v5912 = vsel %vm1700, %v5751, 0.0
        %v5913 = vadd.f32 %v5911, %v5912
        %v5914 = vsel %vm1700, %v5752, 0.0
        %v5915 = vadd.f32 %v5913, %v5914
        %v5916 = vsel %vm1700, %v5753, 0.0
        %v5917 = vadd.f32 %v5915, %v5916
        %v5918 = vsel %vm1700, %v5754, 0.0
        %v5919 = vadd.f32 %v5917, %v5918
        %v5920 = vsel %vm1700, %v5755, 0.0
        %v5921 = vadd.f32 %v5919, %v5920
        %v5922 = vsel %vm1700, %v5756, 0.0
        %v5923 = vadd.f32 %v5921, %v5922
        %v5924 = vsel %vm1700, %v5757, 0.0
        %v5925 = vadd.f32 %v5923, %v5924
        %v5926 = vsel %vm1700, %v5758, 0.0
        %v5927 = vadd.f32 %v5925, %v5926
        %v5928 = vsel %vm1700, %v5759, 0.0
        %v5929 = vadd.f32 %v5927, %v5928
        %v5930 = vsel %vm1700, %v5760, 0.0
        %v5931 = vadd.f32 %v5929, %v5930
        %v5932 = vsel %vm1700, %v5761, 0.0
        %v5933 = vadd.f32 %v5931, %v5932
        %v5934 = vsel %vm1700, %v5762, 0.0
        %v5935 = vadd.f32 %v5933, %v5934
        %v5936 = vsel %vm1700, %v5763, 0.0
        %v5937 = vadd.f32 %v5935, %v5936
        %v5938 = vsel %vm1700, %v5764, 0.0
        %v5939 = vadd.f32 %v5937, %v5938
        %v5940 = vsel %vm1700, %v5765, 0.0
        %v5941 = vadd.f32 %v5939, %v5940
        %v5942 = vsel %vm1700, %v5766, 0.0
        %v5943 = vadd.f32 %v5941, %v5942
        %v5944 = vsel %vm1700, %v5767, 0.0
        %v5945 = vadd.f32 %v5943, %v5944
        %v5946 = vsel %vm1700, %v5768, 0.0
        %v5947 = vadd.f32 %v5945, %v5946
        %v5948 = vsel %vm1700, %v5769, 0.0
        %v5949 = vadd.f32 %v5947, %v5948
        %v5950 = vsel %vm1700, %v5770, 0.0
        %v5951 = vadd.f32 %v5949, %v5950
        %v5952 = vsel %vm1700, %v5771, 0.0
        %v5953 = vadd.f32 %v5951, %v5952
        %v5954 = vsel %vm1700, %v5772, 0.0
        %v5955 = vadd.f32 %v5953, %v5954
        %v5956 = vsel %vm1700, %v5773, 0.0
        %v5957 = vadd.f32 %v5955, %v5956
        %v5958 = vsel %vm1700, %v5774, 0.0
        %v5959 = vadd.f32 %v5957, %v5958
        %v5960 = vsel %vm1700, %v5775, 0.0
        %v5961 = vadd.f32 %v5959, %v5960
        %v5962 = vsel %vm1700, %v5776, 0.0
        %v5963 = vadd.f32 %v5961, %v5962
        %v5964 = vsel %vm1700, %v5777, 0.0
        %v5965 = vadd.f32 %v5963, %v5964
        %v5966 = vsel %vm1700, %v5778, 0.0
        %v5967 = vadd.f32 %v5965, %v5966
        %v5968 = vsel %vm1700, %v5779, 0.0
        %v5969 = vadd.f32 %v5967, %v5968
        %v5970 = vsel %vm1700, %v5780, 0.0
        %v5971 = vadd.f32 %v5969, %v5970
        %v5972 = vrot.slane %v5971, 4
        %v5973 = vadd.f32 %v5971, %v5972
        %v5974 = vrot.slane %v5973, 2
        %v5975 = vadd.f32 %v5973, %v5974
        %v5976 = vrot.slane %v5975, 1
        %v5977 = vadd.f32 %v5975, %v5976
        %5978 = vst.msk [vmem:[%s433] sm:$0xff] %vm1700, %v5977
        %s5979 = smul.u32 96, %s29
        %p5980 = scmp.lt.s32.totalorder %s5979, 191
        %s5981 = scalar_select %p5980, %s5979, 191
        %s5982 = smul.addr %s5981, 8
        %s5983 = scalar_lea.vmem %s12, %s5982
        %s5984 = sand.u32 %s304, 1
        %s5985 = scalar_lea.sflag [#allocation5], %s5984
        %s5986 = sand.u32 %s304, 1
        %s5987 = smul.addr %s5986, 8
        %s5988 = scalar_lea.vmem [#allocation4], %s5987
        // Predicated region
        $region65: #{tpu_custom_call.1} parent=63 // pred_check
          %p5989 = pneg %p288
        $region66: #{tpu_custom_call.1} parent=63 // pred_check_branch
          %5991 = sbr.rel (%p5989) target = $region68
        $region67: #{tpu_custom_call.1} parent=63 // pred_region
          %s5992 = smul.u32 96, %s29
        $region68: #{tpu_custom_call.1} parent=63 // pred_fallthru
          _
        // Predicated region
        $region69: #{tpu_custom_call.1} parent=63 // pred_check
          %p5993 = pneg %p314
        $region70: #{tpu_custom_call.1} parent=63 // pred_check_branch
          %5995 = sbr.rel (%p5993) target = $region72
        $region71: #{tpu_custom_call.1} parent=63 // pred_region
          %s5997 = ssub.s32 128, 128
          %5998 = vsyncadd %s5985, %s5997
          %s5999 = smul.addr %s29, 128
          %s6000 = scalar_lea.hbm %s13, %s5999
          %s6002 = sshll.u32 %s5988, 4
          %s6003 = int_to_ptr.vmem [resolvable:$true] %s6002
          %6005 = dma.vmem_to_hbm [thread:$0]  %s6003, 128, %s6000, %s5985
        $region72: #{tpu_custom_call.1} parent=63 // pred_fallthru
          _
      $region64: #{tpu_custom_call.1} parent=5 // pred_fallthru
        _
      %p6006 = scmp.le.s32.totalorder 2, %s24
      // Predicated region
      $region73: #{tpu_custom_call.1} parent=5 // pred_check
        %p6007 = pneg %p6006
      $region74: #{tpu_custom_call.1} parent=5 // pred_check_branch
        %6009 = sbr.rel (%p6007) target = $region76
      $region75: #{tpu_custom_call.1} parent=5 // pred_region
        %s6010 = ssub.s32 %s24, 2
        // Predicated region
        $region77: #{tpu_custom_call.1} parent=75 // pred_check
          %p6011 = pneg %p294
        $region78: #{tpu_custom_call.1} parent=75 // pred_check_branch
          %6013 = sbr.rel (%p6011) target = $region80
        $region79: #{tpu_custom_call.1} parent=75 // pred_region
          %s6014 = smul.u32 96, %s30
          %p6015 = scmp.lt.s32.totalorder %s6014, 191
          %s6016 = scalar_select %p6015, %s6014, 191
          %s6017 = smul.addr %s6016, 8
          %s6018 = scalar_lea.vmem %s12, %s6017
        $region80: #{tpu_custom_call.1} parent=75 // pred_fallthru
          _
        // Predicated region
        $region81: #{tpu_custom_call.1} parent=75 // pred_check
          %p6019 = pneg %p320
        $region82: #{tpu_custom_call.1} parent=75 // pred_check_branch
          %6021 = sbr.rel (%p6019) target = $region84
        $region83: #{tpu_custom_call.1} parent=75 // pred_region
          %s6022 = sand.u32 %s305, 1
          %s6023 = scalar_lea.sflag [#allocation5], %s6022
          %s6024 = sand.u32 %s305, 1
          %s6025 = smul.addr %s6024, 8
          %s6026 = scalar_lea.vmem [#allocation4], %s6025
          %6027 = dma.done %s6023, 128
        $region84: #{tpu_custom_call.1} parent=75 // pred_fallthru
          _
      $region76: #{tpu_custom_call.1} parent=5 // pred_fallthru
        _
    $region6: #{tpu_custom_call.1} parent=1 // loop_footer
      %s28 = sadd.s32 1, %s24
    $region7: #{tpu_custom_call.1} parent=1 // loop_footer_branch
      %23 = sbr.rel target = $region3
    $region8: #{tpu_custom_call.1} parent=1 // loop_exit
      _
    %6028 = vsyncpa [#allocation5], 1
    %s6029 = scalar_lea.sflag [#allocation5], 1
    %6030 = vsyncpa %s6029, 1

</llo_original>
